<compile_context>
chip_gen: v7x
topology: tpu7x:2x2x1
jax: 0.10.0
libtpu: 0.0.40
codegen_flags: <defaults>
</compile_context>

<pallas_src>
import jax
import jax.numpy as jnp
from jax.experimental import pallas as pl
from jax.experimental.pallas import tpu as pltpu  # noqa: F401  (TPU backend)

# ----------------------------- static config -------------------------------
CP   = 128            # lane-padded channel width
C1   = 10             # conv1 out channels (real)
C2   = 20             # conv2 out channels (real)
K    = 5              # conv kernel size
HIN  = 28             # input spatial size (MNIST-like, 1x28x28)
H1   = HIN - K + 1    # 24 : conv1 output spatial
H2V  = H1 - K + 1     # 20 : conv2 valid output spatial
POOL = H2V // 2       # 10 : pooled spatial
RF   = 2 * K - 1      # 9  : conv1->conv2 stacked receptive field
TAP1 = 32             # conv1 im2col K (25 taps -> 32)
TAP9 = 128            # 9x9 receptive-field K (81 -> 128)
P2K  = 256            # conv2 im2col K (25 taps * 10 ch = 250 -> 256)
F1   = 256            # fc1 out features
F2   = 10             # fc2 out features (real)
FCK  = 2048           # fc1 contraction K (100 pos * 20 ch = 2000 -> 2048)


# --------------------------- kernel A: conv + pool --------------------------
def _conv_pool_kernel(p1_ref, x9_ref, w1_ref, b1_ref, w1f_ref, b1f_ref,
                      w2_ref, b2_ref, t1_ref, t2_ref):
    # conv1 + ReLU over the full 24x24 grid (the t1 output): one MXU matmul.
    t1_ref[...] = jnp.maximum(
        jnp.dot(p1_ref[...], w1_ref[...], preferred_element_type=jnp.float32)
        + b1_ref[...], 0.0)

    # conv1 replayed over conv2's 25 taps (valid 20x20 window only) through the
    # block-structured weight w1f: one matmul directly yields conv2's
    # lane-dense im2col patch matrix.  Rows are ordered
    # (pool-quadrant k, batch b, pooled-position p) by construction of x9.
    p2 = jnp.maximum(
        jnp.dot(x9_ref[...], w1f_ref[...], preferred_element_type=jnp.float32)
        + b1f_ref[...], 0.0).astype(jnp.bfloat16)          # (4*n*100, 256)

    # conv2: ONE big-K matmul (K = 256).
    c2 = (jnp.dot(p2, w2_ref[...], preferred_element_type=jnp.float32)
          + b2_ref[...])                                    # (4*n*100, 128)

    # 2x2 max-pool == max across the 4 quadrant row-blocks, then ReLU.
    q = t2_ref.shape[0]                                     # n*100
    pooled = jnp.maximum(jnp.maximum(c2[0 * q:1 * q], c2[1 * q:2 * q]),
                         jnp.maximum(c2[2 * q:3 * q], c2[3 * q:4 * q]))
    t2_ref[...] = jnp.maximum(pooled, 0.0)                  # (n*100, 128)


# ----------------------------- kernel B: fc --------------------------------
def _fc_kernel(a_ref, wf1_ref, bf1_ref, wf2_ref, bf2_ref, t3_ref, t4_ref):
    h = jnp.maximum(
        jnp.dot(a_ref[...], wf1_ref[...], preferred_element_type=jnp.float32)
        + bf1_ref[...], 0.0)                                # (n, 256)
    t3_ref[...] = h
    t4_ref[...] = (jnp.dot(h.astype(jnp.bfloat16), wf2_ref[...],
                           preferred_element_type=jnp.float32)
                   + bf2_ref[...])                          # (n, 128)


# ------------------------------- wrapper ------------------------------------
def cnn_forward(kp, x):
    """Forward pass.  x: (N, 1, 28, 28) NCHW f32.  Returns (t1, t2, t3, t4)
    with the same shapes/semantics as the PyTorch module in eval mode."""
    n = x.shape[0]
    x2d = x[:, 0, :, :].astype(jnp.float32)                          # (n,28,28)

    # conv1 im2col over the full 24x24 grid (layout plumbing only).
    p1 = jnp.stack([x2d[:, ty:ty + H1, tx:tx + H1]
                    for ty in range(K) for tx in range(K)], axis=-1)  # (n,24,24,25)
    p1 = jnp.pad(p1, ((0, 0), (0, 0), (0, 0), (0, TAP1 - K * K)))
    p1 = p1.reshape(n * H1 * H1, TAP1).astype(jnp.bfloat16)

    # 9x9 receptive-field patches over the valid 20x20 conv2 grid, rows ordered
    # (pool-quadrant, batch, pooled-position) so the kernel pools by row-block max.
    p9 = jnp.stack([x2d[:, dy:dy + H2V, dx:dx + H2V]
                    for dy in range(RF) for dx in range(RF)], axis=-1)  # (n,20,20,81)
    p9 = p9.reshape(n, POOL, 2, POOL, 2, RF * RF)
    p9 = p9.transpose(2, 4, 0, 1, 3, 5)                     # (dyq,dxq,b,i,j,d)
    x9 = p9.reshape(4 * n * POOL * POOL, RF * RF)
    x9 = jnp.pad(x9, ((0, 0), (0, TAP9 - RF * RF))).astype(jnp.bfloat16)

    t1_raw, t2_raw = pl.pallas_call(
        _conv_pool_kernel,
        out_shape=(
            jax.ShapeDtypeStruct((n * H1 * H1, CP), jnp.float32),        # t1
            jax.ShapeDtypeStruct((n * POOL * POOL, CP), jnp.float32),    # t2
        ),
    )(p1, x9, kp['w1'], kp['b1'], kp['w1f'], kp['b1f'], kp['w2'], kp['b2'])

    # fc1 input: lane-dense (n, 2048) bf16; column order p*20 + c is folded
    # into wf1's row permutation in prepare_params.
    flat = t2_raw.reshape(n, POOL * POOL, CP)[:, :, :C2]
    flat = flat.reshape(n, POOL * POOL * C2)
    flat = jnp.pad(flat, ((0, 0), (0, FCK - POOL * POOL * C2))).astype(jnp.bfloat16)

    t3, t4_raw = pl.pallas_call(
        _fc_kernel,
        out_shape=(
            jax.ShapeDtypeStruct((n, F1), jnp.float32),                  # t3
            jax.ShapeDtypeStruct((n, CP), jnp.float32),                  # t4
        ),
    )(flat, kp['wf1'], kp['bf1'], kp['wf2'], kp['bf2'])

    t1 = t1_raw.reshape(n, H1, H1, CP)[..., :C1].transpose(0, 3, 1, 2)   # (n,10,24,24)
    t2 = t2_raw.reshape(n, POOL, POOL, CP)[..., :C2].transpose(0, 3, 1, 2)  # (n,20,10,10)
    t4 = t4_raw[:, :F2]                                                  # (n,10)
    return t1, t2, t3, t4


# ------------------------------- parameters --------------------------------
def init_params(key):
    """Deterministic init matching the PyTorch module's parameter shapes."""
    ks = jax.random.split(key, 8)

    def u(k, shape, fan_in):
        bound = 1.0 / jnp.sqrt(float(fan_in))
        return jax.random.uniform(k, shape, jnp.float32, -bound, bound)

    return {
        'conv1_w': u(ks[0], (10, 1, 5, 5), 1 * 5 * 5),
        'conv1_b': u(ks[1], (10,), 1 * 5 * 5),
        'conv2_w': u(ks[2], (20, 10, 5, 5), 10 * 5 * 5),
        'conv2_b': u(ks[3], (20,), 10 * 5 * 5),
        # fc weights stored as (in_features, out_features) = torch weight.T
        'fc1_w': u(ks[4], (10 * 10 * 20, 256), 10 * 10 * 20),
        'fc1_b': u(ks[5], (256,), 10 * 10 * 20),
        'fc2_w': u(ks[6], (256, 10), 256),
        'fc2_b': u(ks[7], (10,), 256),
    }


def prepare_params(p):
    """One-time repack of torch-layout params into kernel layout."""
    f32, bf16 = jnp.float32, jnp.bfloat16

    # conv1: (10,1,5,5) -> w1 (32,128); row = kh*5+kw, col = cout.
    wc = p['conv1_w'].astype(f32)[:, 0].transpose(1, 2, 0)            # (5,5,10)
    w1 = wc.reshape(K * K, C1)
    w1 = jnp.pad(w1, ((0, TAP1 - K * K), (0, CP - C1))).astype(bf16)
    b1 = jnp.pad(p['conv1_b'].astype(f32), (0, CP - C1)).reshape(1, CP)

    # conv1 replayed over conv2's 25 taps: w1f (128,256);
    # row = dy*9+dx, col = (kh*5+kw)*10 + cout, value = conv1_w[cout,0,dy-kh,dx-kw].
    blocks = []
    for kh in range(K):
        for kw in range(K):
            blk = jnp.pad(wc, ((kh, RF - K - kh), (kw, RF - K - kw), (0, 0)))
            blocks.append(blk.reshape(RF * RF, C1))                    # (81,10)
    w1f = jnp.concatenate(blocks, axis=1)                              # (81,250)
    w1f = jnp.pad(w1f, ((0, TAP9 - RF * RF), (0, P2K - K * K * C1))).astype(bf16)
    b1f = jnp.tile(p['conv1_b'].astype(f32), K * K)                    # (250,)
    b1f = jnp.pad(b1f, (0, P2K - K * K * C1)).reshape(1, P2K)

    # conv2: (20,10,5,5) -> w2 (256,128); row = (kh*5+kw)*10 + cin, col = cout.
    w2 = p['conv2_w'].astype(f32).transpose(2, 3, 1, 0).reshape(K * K * C1, C2)
    w2 = jnp.pad(w2, ((0, P2K - K * K * C1), (0, CP - C2))).astype(bf16)
    b2 = jnp.pad(p['conv2_b'].astype(f32), (0, CP - C2)).reshape(1, CP)

    # fc1: torch flat order is c*100 + p; kernel flat order is p*20 + c.
    wf1 = p['fc1_w'].astype(f32).reshape(C2, POOL * POOL, F1).transpose(1, 0, 2)
    wf1 = wf1.reshape(POOL * POOL * C2, F1)
    wf1 = jnp.pad(wf1, ((0, FCK - POOL * POOL * C2), (0, 0))).astype(bf16)
    bf1 = p['fc1_b'].astype(f32).reshape(1, F1)

    # fc2: (256,10) -> (256,128); bias padded likewise.
    wf2 = jnp.pad(p['fc2_w'].astype(f32), ((0, 0), (0, CP - F2))).astype(bf16)
    bf2 = jnp.pad(p['fc2_b'].astype(f32), (0, CP - F2)).reshape(1, CP)

    return {'w1': w1, 'b1': b1, 'w1f': w1f, 'b1f': b1f, 'w2': w2, 'b2': b2,
            'wf1': wf1, 'bf1': bf1, 'wf2': wf2, 'bf2': bf2}


# --------------------------------- main -------------------------------------
if __name__ == "__main__":
    key = jax.random.PRNGKey(0)
    pkey, xkey = jax.random.split(key)
    params = init_params(pkey)
    kparams = prepare_params(params)   # one-time repack, outside the hot path

    # fc1 expects 10*10*20 features => 28x28 single-channel input (MNIST-like)
    x = jax.random.normal(xkey, (2, 1, 28, 28), dtype=jnp.float32)

    fwd = jax.jit(cnn_forward)
    t1, t2, t3, t4 = fwd(kparams, x)
    jax.block_until_ready((t1, t2, t3, t4))

    assert t1.shape == (2, 10, 24, 24)
    assert t2.shape == (2, 20, 10, 10)
    assert t3.shape == (2, 256)
    assert t4.shape == (2, 10)
    assert bool(jnp.all(t1 >= 0)) and bool(jnp.all(t2 >= 0)) and bool(jnp.all(t3 >= 0))
    assert bool(jnp.all(jnp.isfinite(t4)))

    print("KERNEL_OK")
</pallas_src>

<mosaic_0001>
module attributes {stable_mosaic.version = 11 : i64} {
  func.func @_conv_pool_kernel(%arg0: memref<1152x32xbf16, #tpu.memory_space<vmem>>, %arg1: memref<800x128xbf16, #tpu.memory_space<vmem>>, %arg2: memref<32x128xbf16, #tpu.memory_space<vmem>>, %arg3: memref<1x128xf32, #tpu.memory_space<vmem>>, %arg4: memref<128x256xbf16, #tpu.memory_space<vmem>>, %arg5: memref<1x256xf32, #tpu.memory_space<vmem>>, %arg6: memref<256x128xbf16, #tpu.memory_space<vmem>>, %arg7: memref<1x128xf32, #tpu.memory_space<vmem>>, %arg8: memref<1152x128xf32, #tpu.memory_space<vmem>>, %arg9: memref<200x128xf32, #tpu.memory_space<vmem>>) attributes {dimension_semantics = [], scalar_prefetch = 0 : i64, scratch_operands = 0 : i64, tpu.core_type = #tpu.core_type<tc>} {
    %c0 = arith.constant 0 : index
    %c0_0 = arith.constant 0 : index
    %0 = vector.load %arg0[%c0, %c0_0] : memref<1152x32xbf16, #tpu.memory_space<vmem>>, vector<1152x32xbf16>
    %c0_1 = arith.constant 0 : index
    %c0_2 = arith.constant 0 : index
    %1 = vector.load %arg2[%c0_1, %c0_2] : memref<32x128xbf16, #tpu.memory_space<vmem>>, vector<32x128xbf16>
    %cst = arith.constant dense<0.000000e+00> : vector<1152x128xf32>
    %2 = tpu.matmul %0, %1, %cst {dimension_numbers = #tpu.dot_dimension_numbers<[1], [0], [0], [1], [0, 0, 1, 1], [], []>} : vector<1152x32xbf16>, vector<32x128xbf16>, vector<1152x128xf32> -> vector<1152x128xf32>
    %c0_3 = arith.constant 0 : index
    %c0_4 = arith.constant 0 : index
    %3 = vector.load %arg3[%c0_3, %c0_4] : memref<1x128xf32, #tpu.memory_space<vmem>>, vector<1x128xf32>
    %4 = vector.broadcast %3 : vector<1x128xf32> to vector<1152x128xf32>
    %5 = arith.addf %2, %4 : vector<1152x128xf32>
    %cst_5 = arith.constant 0.000000e+00 : f32
    %6 = vector.broadcast %cst_5 : f32 to vector<1152x128xf32>
    %7 = arith.maximumf %5, %6 : vector<1152x128xf32>
    %c0_6 = arith.constant 0 : index
    %c0_7 = arith.constant 0 : index
    %8 = vector.load %arg8[%c0_6, %c0_7] : memref<1152x128xf32, #tpu.memory_space<vmem>>, vector<1152x128xf32>
    tpu.vector_store %arg8[%c0_6, %c0_7], %7 {strides = array<i32>} : memref<1152x128xf32, #tpu.memory_space<vmem>>, vector<1152x128xf32>,
    %c0_8 = arith.constant 0 : index
    %c0_9 = arith.constant 0 : index
    %9 = vector.load %arg1[%c0_8, %c0_9] : memref<800x128xbf16, #tpu.memory_space<vmem>>, vector<800x128xbf16>
    %c0_10 = arith.constant 0 : index
    %c0_11 = arith.constant 0 : index
    %10 = vector.load %arg4[%c0_10, %c0_11] : memref<128x256xbf16, #tpu.memory_space<vmem>>, vector<128x256xbf16>
    %cst_12 = arith.constant dense<0.000000e+00> : vector<800x256xf32>
    %11 = tpu.matmul %9, %10, %cst_12 {dimension_numbers = #tpu.dot_dimension_numbers<[1], [0], [0], [1], [0, 0, 1, 1], [], []>} : vector<800x128xbf16>, vector<128x256xbf16>, vector<800x256xf32> -> vector<800x256xf32>
    %c0_13 = arith.constant 0 : index
    %c0_14 = arith.constant 0 : index
    %12 = vector.load %arg5[%c0_13, %c0_14] : memref<1x256xf32, #tpu.memory_space<vmem>>, vector<1x256xf32>
    %13 = vector.broadcast %12 : vector<1x256xf32> to vector<800x256xf32>
    %14 = arith.addf %11, %13 : vector<800x256xf32>
    %cst_15 = arith.constant 0.000000e+00 : f32
    %15 = vector.broadcast %cst_15 : f32 to vector<800x256xf32>
    %16 = arith.maximumf %14, %15 : vector<800x256xf32>
    %17 = arith.truncf %16 : vector<800x256xf32> to vector<800x256xbf16>
    %c0_16 = arith.constant 0 : index
    %c0_17 = arith.constant 0 : index
    %18 = vector.load %arg6[%c0_16, %c0_17] : memref<256x128xbf16, #tpu.memory_space<vmem>>, vector<256x128xbf16>
    %cst_18 = arith.constant dense<0.000000e+00> : vector<800x128xf32>
    %19 = tpu.matmul %17, %18, %cst_18 {dimension_numbers = #tpu.dot_dimension_numbers<[1], [0], [0], [1], [0, 0, 1, 1], [], []>} : vector<800x256xbf16>, vector<256x128xbf16>, vector<800x128xf32> -> vector<800x128xf32>
    %c0_19 = arith.constant 0 : index
    %c0_20 = arith.constant 0 : index
    %20 = vector.load %arg7[%c0_19, %c0_20] : memref<1x128xf32, #tpu.memory_space<vmem>>, vector<1x128xf32>
    %21 = vector.broadcast %20 : vector<1x128xf32> to vector<800x128xf32>
    %22 = arith.addf %19, %21 : vector<800x128xf32>
    %23 = vector.extract_strided_slice %22 {offsets = [0, 0], sizes = [200, 128], strides = [1, 1]} : vector<800x128xf32> to vector<200x128xf32>
    %24 = vector.extract_strided_slice %22 {offsets = [200, 0], sizes = [200, 128], strides = [1, 1]} : vector<800x128xf32> to vector<200x128xf32>
    %25 = arith.maximumf %23, %24 : vector<200x128xf32>
    %26 = vector.extract_strided_slice %22 {offsets = [400, 0], sizes = [200, 128], strides = [1, 1]} : vector<800x128xf32> to vector<200x128xf32>
    %27 = vector.extract_strided_slice %22 {offsets = [600, 0], sizes = [200, 128], strides = [1, 1]} : vector<800x128xf32> to vector<200x128xf32>
    %28 = arith.maximumf %26, %27 : vector<200x128xf32>
    %29 = arith.maximumf %25, %28 : vector<200x128xf32>
    %cst_21 = arith.constant 0.000000e+00 : f32
    %30 = vector.broadcast %cst_21 : f32 to vector<200x128xf32>
    %31 = arith.maximumf %29, %30 : vector<200x128xf32>
    %c0_22 = arith.constant 0 : index
    %c0_23 = arith.constant 0 : index
    %32 = vector.load %arg9[%c0_22, %c0_23] : memref<200x128xf32, #tpu.memory_space<vmem>>, vector<200x128xf32>
    tpu.vector_store %arg9[%c0_22, %c0_23], %31 {strides = array<i32>} : memref<200x128xf32, #tpu.memory_space<vmem>>, vector<200x128xf32>,
    return
  }
}

module attributes {stable_mosaic.version = 11 : i64} {
  func.func @_fc_kernel(%arg0: memref<2x2048xbf16, #tpu.memory_space<vmem>>, %arg1: memref<2048x256xbf16, #tpu.memory_space<vmem>>, %arg2: memref<1x256xf32, #tpu.memory_space<vmem>>, %arg3: memref<256x128xbf16, #tpu.memory_space<vmem>>, %arg4: memref<1x128xf32, #tpu.memory_space<vmem>>, %arg5: memref<2x256xf32, #tpu.memory_space<vmem>>, %arg6: memref<2x128xf32, #tpu.memory_space<vmem>>) attributes {dimension_semantics = [], scalar_prefetch = 0 : i64, scratch_operands = 0 : i64, tpu.core_type = #tpu.core_type<tc>} {
    %c0 = arith.constant 0 : index
    %c0_0 = arith.constant 0 : index
    %0 = vector.load %arg0[%c0, %c0_0] : memref<2x2048xbf16, #tpu.memory_space<vmem>>, vector<2x2048xbf16>
    %c0_1 = arith.constant 0 : index
    %c0_2 = arith.constant 0 : index
    %1 = vector.load %arg1[%c0_1, %c0_2] : memref<2048x256xbf16, #tpu.memory_space<vmem>>, vector<2048x256xbf16>
    %cst = arith.constant dense<0.000000e+00> : vector<2x256xf32>
    %2 = tpu.matmul %0, %1, %cst {dimension_numbers = #tpu.dot_dimension_numbers<[1], [0], [0], [1], [0, 0, 1, 1], [], []>} : vector<2x2048xbf16>, vector<2048x256xbf16>, vector<2x256xf32> -> vector<2x256xf32>
    %c0_3 = arith.constant 0 : index
    %c0_4 = arith.constant 0 : index
    %3 = vector.load %arg2[%c0_3, %c0_4] : memref<1x256xf32, #tpu.memory_space<vmem>>, vector<1x256xf32>
    %4 = vector.broadcast %3 : vector<1x256xf32> to vector<2x256xf32>
    %5 = arith.addf %2, %4 : vector<2x256xf32>
    %cst_5 = arith.constant 0.000000e+00 : f32
    %6 = vector.broadcast %cst_5 : f32 to vector<2x256xf32>
    %7 = arith.maximumf %5, %6 : vector<2x256xf32>
    %c0_6 = arith.constant 0 : index
    %c0_7 = arith.constant 0 : index
    %8 = vector.load %arg5[%c0_6, %c0_7] : memref<2x256xf32, #tpu.memory_space<vmem>>, vector<2x256xf32>
    tpu.vector_store %arg5[%c0_6, %c0_7], %7 {strides = array<i32>} : memref<2x256xf32, #tpu.memory_space<vmem>>, vector<2x256xf32>,
    %9 = arith.truncf %7 : vector<2x256xf32> to vector<2x256xbf16>
    %c0_8 = arith.constant 0 : index
    %c0_9 = arith.constant 0 : index
    %10 = vector.load %arg3[%c0_8, %c0_9] : memref<256x128xbf16, #tpu.memory_space<vmem>>, vector<256x128xbf16>
    %cst_10 = arith.constant dense<0.000000e+00> : vector<2x128xf32>
    %11 = tpu.matmul %9, %10, %cst_10 {dimension_numbers = #tpu.dot_dimension_numbers<[1], [0], [0], [1], [0, 0, 1, 1], [], []>} : vector<2x256xbf16>, vector<256x128xbf16>, vector<2x128xf32> -> vector<2x128xf32>
    %c0_11 = arith.constant 0 : index
    %c0_12 = arith.constant 0 : index
    %12 = vector.load %arg4[%c0_11, %c0_12] : memref<1x128xf32, #tpu.memory_space<vmem>>, vector<1x128xf32>
    %13 = vector.broadcast %12 : vector<1x128xf32> to vector<2x128xf32>
    %14 = arith.addf %11, %13 : vector<2x128xf32>
    %c0_13 = arith.constant 0 : index
    %c0_14 = arith.constant 0 : index
    %15 = vector.load %arg6[%c0_13, %c0_14] : memref<2x128xf32, #tpu.memory_space<vmem>>, vector<2x128xf32>
    tpu.vector_store %arg6[%c0_13, %c0_14], %14 {strides = array<i32>} : memref<2x128xf32, #tpu.memory_space<vmem>>, vector<2x128xf32>,
    return
  }
}

</mosaic_0001>

<llo_original>
// kernel: cnn_forward.3
$region0: #{cnn_forward.3}
  #allocation0 [shape = 'u32[]', space=smem, size = 0x4, offset = 0x4, fixed_abs, tag = 'smem constant byte address 0x4 - core index']
  #allocation1 [shape = 'u32[144,128]{1,0:T(1,128)}', space=vmem, size = 0x12000, scoped, tag = 'internal scratch']
  %s0 = inlined_call_operand.vmem [shape: bf16[2,2048], index: 0, kind: input, shape index: {}]
  %s1 = inlined_call_operand.vmem [shape: bf16[2048,256], index: 1, kind: input, shape index: {}]
  %s2 = inlined_call_operand.vmem [shape: f32[1,256], index: 2, kind: input, shape index: {}]
  %s3 = inlined_call_operand.vmem [shape: bf16[256,128], index: 3, kind: input, shape index: {}]
  %s4 = inlined_call_operand.vmem [shape: f32[1,128], index: 4, kind: input, shape index: {}]
  %s5 = inlined_call_operand.hbm [shape: f32[2,256], index: 5, kind: output, shape index: {0}]
  %s6 = inlined_call_operand.hbm [shape: f32[2,128], index: 6, kind: output, shape index: {1}]
  %7 = xla_tuple %s5, %s6
  %s8 = sld [smem:[#allocation0]]
  $region38: #{cnn_forward.3} parent=0
    _
  %s10 = ssub.s32 1, %s8
  %s11 = scalar_select 0, %s10, %s8
  $region1: #{cnn_forward.3} parent=0
    #allocation2 [shape = 'u8[2048]{0}', space=vmem, size = 0x800, scoped, tag = 'output window, operand 0, single buffered']
    #allocation3 [shape = 's32[1]{0}', space=sflag, size = 0x4, scoped, tag = 'scoped memory for cnn_forward.3']
    #allocation4 [shape = 'u8[1024]{0}', space=vmem, size = 0x400, scoped, tag = 'output window, operand 1, single buffered']
    #allocation5 [shape = 's32[1]{0}', space=sflag, size = 0x4, scoped, tag = 'scoped memory for cnn_forward.3']
    %12 = vsyncpa [#allocation3], 0
    %13 = vsyncpa [#allocation5], 0
    // Predicated region
    $region2: #{cnn_forward.3} parent=1 // pred_check
      _
    $region3: #{cnn_forward.3} parent=1 // pred_check_branch
      %15 = sbr.rel (0) target = $region5
    $region4: #{cnn_forward.3} parent=1 // pred_region
      _
    $region5: #{cnn_forward.3} parent=1 // pred_fallthru
      _
    // Predicated region
    $region6: #{cnn_forward.3} parent=1 // pred_check
      _
    $region7: #{cnn_forward.3} parent=1 // pred_check_branch
      %17 = sbr.rel (0) target = $region9
    $region8: #{cnn_forward.3} parent=1 // pred_region
      _
    $region9: #{cnn_forward.3} parent=1 // pred_fallthru
      _
    // Predicated region
    $region10: #{cnn_forward.3} parent=1 // pred_check
      _
    $region11: #{cnn_forward.3} parent=1 // pred_check_branch
      %19 = sbr.rel (0) target = $region13
    $region12: #{cnn_forward.3} parent=1 // pred_region
      _
    $region13: #{cnn_forward.3} parent=1 // pred_fallthru
      _
    // Predicated region
    $region14: #{cnn_forward.3} parent=1 // pred_check
      _
    $region15: #{cnn_forward.3} parent=1 // pred_check_branch
      %21 = sbr.rel (0) target = $region17
    $region16: #{cnn_forward.3} parent=1 // pred_region
      _
    $region17: #{cnn_forward.3} parent=1 // pred_fallthru
      _
    // Predicated region
    $region18: #{cnn_forward.3} parent=1 // pred_check
      _
    $region19: #{cnn_forward.3} parent=1 // pred_check_branch
      %23 = sbr.rel (0) target = $region21
    $region20: #{cnn_forward.3} parent=1 // pred_region
      _
    $region21: #{cnn_forward.3} parent=1 // pred_fallthru
      _
    %v25 = vld [vmem:[%s0] sm:$0xff]
    %v26 = vld [vmem:[%s0 + $0x8] sm:$0xff]
    %v27 = vld [vmem:[%s1] sm:$0xff]
    %v28 = vld [vmem:[%s1 + $0x8] sm:$0xff]
    %v29 = vld [vmem:[%s1 + $0x10] sm:$0xff]
    %v30 = vld [vmem:[%s1 + $0x18] sm:$0xff]
    %v31 = vld [vmem:[%s1 + $0x20] sm:$0xff]
    %v32 = vld [vmem:[%s1 + $0x28] sm:$0xff]
    %v33 = vld [vmem:[%s1 + $0x30] sm:$0xff]
    %v34 = vld [vmem:[%s1 + $0x38] sm:$0xff]
    %v35 = vld [vmem:[%s1 + $0x40] sm:$0xff]
    %v36 = vld [vmem:[%s1 + $0x48] sm:$0xff]
    %v37 = vld [vmem:[%s1 + $0x50] sm:$0xff]
    %v38 = vld [vmem:[%s1 + $0x58] sm:$0xff]
    %v39 = vld [vmem:[%s1 + $0x60] sm:$0xff]
    %v40 = vld [vmem:[%s1 + $0x68] sm:$0xff]
    %v41 = vld [vmem:[%s1 + $0x70] sm:$0xff]
    %v42 = vld [vmem:[%s1 + $0x78] sm:$0xff]
    %v43 = vld [vmem:[%s1 + $0x80] sm:$0xff]
    %v44 = vld [vmem:[%s1 + $0x88] sm:$0xff]
    %v45 = vld [vmem:[%s1 + $0x90] sm:$0xff]
    %v46 = vld [vmem:[%s1 + $0x98] sm:$0xff]
    %v47 = vld [vmem:[%s1 + $0xa0] sm:$0xff]
    %v48 = vld [vmem:[%s1 + $0xa8] sm:$0xff]
    %v49 = vld [vmem:[%s1 + $0xb0] sm:$0xff]
    %v50 = vld [vmem:[%s1 + $0xb8] sm:$0xff]
    %v51 = vld [vmem:[%s1 + $0xc0] sm:$0xff]
    %v52 = vld [vmem:[%s1 + $0xc8] sm:$0xff]
    %v53 = vld [vmem:[%s1 + $0xd0] sm:$0xff]
    %v54 = vld [vmem:[%s1 + $0xd8] sm:$0xff]
    %v55 = vld [vmem:[%s1 + $0xe0] sm:$0xff]
    %v56 = vld [vmem:[%s1 + $0xe8] sm:$0xff]
    %v57 = vld [vmem:[%s1 + $0xf0] sm:$0xff]
    %v58 = vld [vmem:[%s1 + $0xf8] sm:$0xff]
    %v59 = vld [vmem:[%s1 + $0x100] sm:$0xff]
    %v60 = vld [vmem:[%s1 + $0x108] sm:$0xff]
    %v61 = vld [vmem:[%s1 + $0x110] sm:$0xff]
    %v62 = vld [vmem:[%s1 + $0x118] sm:$0xff]
    %v63 = vld [vmem:[%s1 + $0x120] sm:$0xff]
    %v64 = vld [vmem:[%s1 + $0x128] sm:$0xff]
    %v65 = vld [vmem:[%s1 + $0x130] sm:$0xff]
    %v66 = vld [vmem:[%s1 + $0x138] sm:$0xff]
    %v67 = vld [vmem:[%s1 + $0x140] sm:$0xff]
    %v68 = vld [vmem:[%s1 + $0x148] sm:$0xff]
    %v69 = vld [vmem:[%s1 + $0x150] sm:$0xff]
    %v70 = vld [vmem:[%s1 + $0x158] sm:$0xff]
    %v71 = vld [vmem:[%s1 + $0x160] sm:$0xff]
    %v72 = vld [vmem:[%s1 + $0x168] sm:$0xff]
    %v73 = vld [vmem:[%s1 + $0x170] sm:$0xff]
    %v74 = vld [vmem:[%s1 + $0x178] sm:$0xff]
    %v75 = vld [vmem:[%s1 + $0x180] sm:$0xff]
    %v76 = vld [vmem:[%s1 + $0x188] sm:$0xff]
    %v77 = vld [vmem:[%s1 + $0x190] sm:$0xff]
    %v78 = vld [vmem:[%s1 + $0x198] sm:$0xff]
    %v79 = vld [vmem:[%s1 + $0x1a0] sm:$0xff]
    %v80 = vld [vmem:[%s1 + $0x1a8] sm:$0xff]
    %v81 = vld [vmem:[%s1 + $0x1b0] sm:$0xff]
    %v82 = vld [vmem:[%s1 + $0x1b8] sm:$0xff]
    %v83 = vld [vmem:[%s1 + $0x1c0] sm:$0xff]
    %v84 = vld [vmem:[%s1 + $0x1c8] sm:$0xff]
    %v85 = vld [vmem:[%s1 + $0x1d0] sm:$0xff]
    %v86 = vld [vmem:[%s1 + $0x1d8] sm:$0xff]
    %v87 = vld [vmem:[%s1 + $0x1e0] sm:$0xff]
    %v88 = vld [vmem:[%s1 + $0x1e8] sm:$0xff]
    %v89 = vld [vmem:[%s1 + $0x1f0] sm:$0xff]
    %v90 = vld [vmem:[%s1 + $0x1f8] sm:$0xff]
    %v91 = vld [vmem:[%s1 + $0x200] sm:$0xff]
    %v92 = vld [vmem:[%s1 + $0x208] sm:$0xff]
    %v93 = vld [vmem:[%s1 + $0x210] sm:$0xff]
    %v94 = vld [vmem:[%s1 + $0x218] sm:$0xff]
    %v95 = vld [vmem:[%s1 + $0x220] sm:$0xff]
    %v96 = vld [vmem:[%s1 + $0x228] sm:$0xff]
    %v97 = vld [vmem:[%s1 + $0x230] sm:$0xff]
    %v98 = vld [vmem:[%s1 + $0x238] sm:$0xff]
    %v99 = vld [vmem:[%s1 + $0x240] sm:$0xff]
    %v100 = vld [vmem:[%s1 + $0x248] sm:$0xff]
    %v101 = vld [vmem:[%s1 + $0x250] sm:$0xff]
    %v102 = vld [vmem:[%s1 + $0x258] sm:$0xff]
    %v103 = vld [vmem:[%s1 + $0x260] sm:$0xff]
    %v104 = vld [vmem:[%s1 + $0x268] sm:$0xff]
    %v105 = vld [vmem:[%s1 + $0x270] sm:$0xff]
    %v106 = vld [vmem:[%s1 + $0x278] sm:$0xff]
    %v107 = vld [vmem:[%s1 + $0x280] sm:$0xff]
    %v108 = vld [vmem:[%s1 + $0x288] sm:$0xff]
    %v109 = vld [vmem:[%s1 + $0x290] sm:$0xff]
    %v110 = vld [vmem:[%s1 + $0x298] sm:$0xff]
    %v111 = vld [vmem:[%s1 + $0x2a0] sm:$0xff]
    %v112 = vld [vmem:[%s1 + $0x2a8] sm:$0xff]
    %v113 = vld [vmem:[%s1 + $0x2b0] sm:$0xff]
    %v114 = vld [vmem:[%s1 + $0x2b8] sm:$0xff]
    %v115 = vld [vmem:[%s1 + $0x2c0] sm:$0xff]
    %v116 = vld [vmem:[%s1 + $0x2c8] sm:$0xff]
    %v117 = vld [vmem:[%s1 + $0x2d0] sm:$0xff]
    %v118 = vld [vmem:[%s1 + $0x2d8] sm:$0xff]
    %v119 = vld [vmem:[%s1 + $0x2e0] sm:$0xff]
    %v120 = vld [vmem:[%s1 + $0x2e8] sm:$0xff]
    %v121 = vld [vmem:[%s1 + $0x2f0] sm:$0xff]
    %v122 = vld [vmem:[%s1 + $0x2f8] sm:$0xff]
    %v123 = vld [vmem:[%s1 + $0x300] sm:$0xff]
    %v124 = vld [vmem:[%s1 + $0x308] sm:$0xff]
    %v125 = vld [vmem:[%s1 + $0x310] sm:$0xff]
    %v126 = vld [vmem:[%s1 + $0x318] sm:$0xff]
    %v127 = vld [vmem:[%s1 + $0x320] sm:$0xff]
    %v128 = vld [vmem:[%s1 + $0x328] sm:$0xff]
    %v129 = vld [vmem:[%s1 + $0x330] sm:$0xff]
    %v130 = vld [vmem:[%s1 + $0x338] sm:$0xff]
    %v131 = vld [vmem:[%s1 + $0x340] sm:$0xff]
    %v132 = vld [vmem:[%s1 + $0x348] sm:$0xff]
    %v133 = vld [vmem:[%s1 + $0x350] sm:$0xff]
    %v134 = vld [vmem:[%s1 + $0x358] sm:$0xff]
    %v135 = vld [vmem:[%s1 + $0x360] sm:$0xff]
    %v136 = vld [vmem:[%s1 + $0x368] sm:$0xff]
    %v137 = vld [vmem:[%s1 + $0x370] sm:$0xff]
    %v138 = vld [vmem:[%s1 + $0x378] sm:$0xff]
    %v139 = vld [vmem:[%s1 + $0x380] sm:$0xff]
    %v140 = vld [vmem:[%s1 + $0x388] sm:$0xff]
    %v141 = vld [vmem:[%s1 + $0x390] sm:$0xff]
    %v142 = vld [vmem:[%s1 + $0x398] sm:$0xff]
    %v143 = vld [vmem:[%s1 + $0x3a0] sm:$0xff]
    %v144 = vld [vmem:[%s1 + $0x3a8] sm:$0xff]
    %v145 = vld [vmem:[%s1 + $0x3b0] sm:$0xff]
    %v146 = vld [vmem:[%s1 + $0x3b8] sm:$0xff]
    %v147 = vld [vmem:[%s1 + $0x3c0] sm:$0xff]
    %v148 = vld [vmem:[%s1 + $0x3c8] sm:$0xff]
    %v149 = vld [vmem:[%s1 + $0x3d0] sm:$0xff]
    %v150 = vld [vmem:[%s1 + $0x3d8] sm:$0xff]
    %v151 = vld [vmem:[%s1 + $0x3e0] sm:$0xff]
    %v152 = vld [vmem:[%s1 + $0x3e8] sm:$0xff]
    %v153 = vld [vmem:[%s1 + $0x3f0] sm:$0xff]
    %v154 = vld [vmem:[%s1 + $0x3f8] sm:$0xff]
    %v155 = vld [vmem:[%s1 + $0x400] sm:$0xff]
    %v156 = vld [vmem:[%s1 + $0x408] sm:$0xff]
    %v157 = vld [vmem:[%s1 + $0x410] sm:$0xff]
    %v158 = vld [vmem:[%s1 + $0x418] sm:$0xff]
    %v159 = vld [vmem:[%s1 + $0x420] sm:$0xff]
    %v160 = vld [vmem:[%s1 + $0x428] sm:$0xff]
    %v161 = vld [vmem:[%s1 + $0x430] sm:$0xff]
    %v162 = vld [vmem:[%s1 + $0x438] sm:$0xff]
    %v163 = vld [vmem:[%s1 + $0x440] sm:$0xff]
    %v164 = vld [vmem:[%s1 + $0x448] sm:$0xff]
    %v165 = vld [vmem:[%s1 + $0x450] sm:$0xff]
    %v166 = vld [vmem:[%s1 + $0x458] sm:$0xff]
    %v167 = vld [vmem:[%s1 + $0x460] sm:$0xff]
    %v168 = vld [vmem:[%s1 + $0x468] sm:$0xff]
    %v169 = vld [vmem:[%s1 + $0x470] sm:$0xff]
    %v170 = vld [vmem:[%s1 + $0x478] sm:$0xff]
    %v171 = vld [vmem:[%s1 + $0x480] sm:$0xff]
    %v172 = vld [vmem:[%s1 + $0x488] sm:$0xff]
    %v173 = vld [vmem:[%s1 + $0x490] sm:$0xff]
    %v174 = vld [vmem:[%s1 + $0x498] sm:$0xff]
    %v175 = vld [vmem:[%s1 + $0x4a0] sm:$0xff]
    %v176 = vld [vmem:[%s1 + $0x4a8] sm:$0xff]
    %v177 = vld [vmem:[%s1 + $0x4b0] sm:$0xff]
    %v178 = vld [vmem:[%s1 + $0x4b8] sm:$0xff]
    %v179 = vld [vmem:[%s1 + $0x4c0] sm:$0xff]
    %v180 = vld [vmem:[%s1 + $0x4c8] sm:$0xff]
    %v181 = vld [vmem:[%s1 + $0x4d0] sm:$0xff]
    %v182 = vld [vmem:[%s1 + $0x4d8] sm:$0xff]
    %v183 = vld [vmem:[%s1 + $0x4e0] sm:$0xff]
    %v184 = vld [vmem:[%s1 + $0x4e8] sm:$0xff]
    %v185 = vld [vmem:[%s1 + $0x4f0] sm:$0xff]
    %v186 = vld [vmem:[%s1 + $0x4f8] sm:$0xff]
    %v187 = vld [vmem:[%s1 + $0x500] sm:$0xff]
    %v188 = vld [vmem:[%s1 + $0x508] sm:$0xff]
    %v189 = vld [vmem:[%s1 + $0x510] sm:$0xff]
    %v190 = vld [vmem:[%s1 + $0x518] sm:$0xff]
    %v191 = vld [vmem:[%s1 + $0x520] sm:$0xff]
    %v192 = vld [vmem:[%s1 + $0x528] sm:$0xff]
    %v193 = vld [vmem:[%s1 + $0x530] sm:$0xff]
    %v194 = vld [vmem:[%s1 + $0x538] sm:$0xff]
    %v195 = vld [vmem:[%s1 + $0x540] sm:$0xff]
    %v196 = vld [vmem:[%s1 + $0x548] sm:$0xff]
    %v197 = vld [vmem:[%s1 + $0x550] sm:$0xff]
    %v198 = vld [vmem:[%s1 + $0x558] sm:$0xff]
    %v199 = vld [vmem:[%s1 + $0x560] sm:$0xff]
    %v200 = vld [vmem:[%s1 + $0x568] sm:$0xff]
    %v201 = vld [vmem:[%s1 + $0x570] sm:$0xff]
    %v202 = vld [vmem:[%s1 + $0x578] sm:$0xff]
    %v203 = vld [vmem:[%s1 + $0x580] sm:$0xff]
    %v204 = vld [vmem:[%s1 + $0x588] sm:$0xff]
    %v205 = vld [vmem:[%s1 + $0x590] sm:$0xff]
    %v206 = vld [vmem:[%s1 + $0x598] sm:$0xff]
    %v207 = vld [vmem:[%s1 + $0x5a0] sm:$0xff]
    %v208 = vld [vmem:[%s1 + $0x5a8] sm:$0xff]
    %v209 = vld [vmem:[%s1 + $0x5b0] sm:$0xff]
    %v210 = vld [vmem:[%s1 + $0x5b8] sm:$0xff]
    %v211 = vld [vmem:[%s1 + $0x5c0] sm:$0xff]
    %v212 = vld [vmem:[%s1 + $0x5c8] sm:$0xff]
    %v213 = vld [vmem:[%s1 + $0x5d0] sm:$0xff]
    %v214 = vld [vmem:[%s1 + $0x5d8] sm:$0xff]
    %v215 = vld [vmem:[%s1 + $0x5e0] sm:$0xff]
    %v216 = vld [vmem:[%s1 + $0x5e8] sm:$0xff]
    %v217 = vld [vmem:[%s1 + $0x5f0] sm:$0xff]
    %v218 = vld [vmem:[%s1 + $0x5f8] sm:$0xff]
    %v219 = vld [vmem:[%s1 + $0x600] sm:$0xff]
    %v220 = vld [vmem:[%s1 + $0x608] sm:$0xff]
    %v221 = vld [vmem:[%s1 + $0x610] sm:$0xff]
    %v222 = vld [vmem:[%s1 + $0x618] sm:$0xff]
    %v223 = vld [vmem:[%s1 + $0x620] sm:$0xff]
    %v224 = vld [vmem:[%s1 + $0x628] sm:$0xff]
    %v225 = vld [vmem:[%s1 + $0x630] sm:$0xff]
    %v226 = vld [vmem:[%s1 + $0x638] sm:$0xff]
    %v227 = vld [vmem:[%s1 + $0x640] sm:$0xff]
    %v228 = vld [vmem:[%s1 + $0x648] sm:$0xff]
    %v229 = vld [vmem:[%s1 + $0x650] sm:$0xff]
    %v230 = vld [vmem:[%s1 + $0x658] sm:$0xff]
    %v231 = vld [vmem:[%s1 + $0x660] sm:$0xff]
    %v232 = vld [vmem:[%s1 + $0x668] sm:$0xff]
    %v233 = vld [vmem:[%s1 + $0x670] sm:$0xff]
    %v234 = vld [vmem:[%s1 + $0x678] sm:$0xff]
    %v235 = vld [vmem:[%s1 + $0x680] sm:$0xff]
    %v236 = vld [vmem:[%s1 + $0x688] sm:$0xff]
    %v237 = vld [vmem:[%s1 + $0x690] sm:$0xff]
    %v238 = vld [vmem:[%s1 + $0x698] sm:$0xff]
    %v239 = vld [vmem:[%s1 + $0x6a0] sm:$0xff]
    %v240 = vld [vmem:[%s1 + $0x6a8] sm:$0xff]
    %v241 = vld [vmem:[%s1 + $0x6b0] sm:$0xff]
    %v242 = vld [vmem:[%s1 + $0x6b8] sm:$0xff]
    %v243 = vld [vmem:[%s1 + $0x6c0] sm:$0xff]
    %v244 = vld [vmem:[%s1 + $0x6c8] sm:$0xff]
    %v245 = vld [vmem:[%s1 + $0x6d0] sm:$0xff]
    %v246 = vld [vmem:[%s1 + $0x6d8] sm:$0xff]
    %v247 = vld [vmem:[%s1 + $0x6e0] sm:$0xff]
    %v248 = vld [vmem:[%s1 + $0x6e8] sm:$0xff]
    %v249 = vld [vmem:[%s1 + $0x6f0] sm:$0xff]
    %v250 = vld [vmem:[%s1 + $0x6f8] sm:$0xff]
    %v251 = vld [vmem:[%s1 + $0x700] sm:$0xff]
    %v252 = vld [vmem:[%s1 + $0x708] sm:$0xff]
    %v253 = vld [vmem:[%s1 + $0x710] sm:$0xff]
    %v254 = vld [vmem:[%s1 + $0x718] sm:$0xff]
    %v255 = vld [vmem:[%s1 + $0x720] sm:$0xff]
    %v256 = vld [vmem:[%s1 + $0x728] sm:$0xff]
    %v257 = vld [vmem:[%s1 + $0x730] sm:$0xff]
    %v258 = vld [vmem:[%s1 + $0x738] sm:$0xff]
    %v259 = vld [vmem:[%s1 + $0x740] sm:$0xff]
    %v260 = vld [vmem:[%s1 + $0x748] sm:$0xff]
    %v261 = vld [vmem:[%s1 + $0x750] sm:$0xff]
    %v262 = vld [vmem:[%s1 + $0x758] sm:$0xff]
    %v263 = vld [vmem:[%s1 + $0x760] sm:$0xff]
    %v264 = vld [vmem:[%s1 + $0x768] sm:$0xff]
    %v265 = vld [vmem:[%s1 + $0x770] sm:$0xff]
    %v266 = vld [vmem:[%s1 + $0x778] sm:$0xff]
    %v267 = vld [vmem:[%s1 + $0x780] sm:$0xff]
    %v268 = vld [vmem:[%s1 + $0x788] sm:$0xff]
    %v269 = vld [vmem:[%s1 + $0x790] sm:$0xff]
    %v270 = vld [vmem:[%s1 + $0x798] sm:$0xff]
    %v271 = vld [vmem:[%s1 + $0x7a0] sm:$0xff]
    %v272 = vld [vmem:[%s1 + $0x7a8] sm:$0xff]
    %v273 = vld [vmem:[%s1 + $0x7b0] sm:$0xff]
    %v274 = vld [vmem:[%s1 + $0x7b8] sm:$0xff]
    %v275 = vld [vmem:[%s1 + $0x7c0] sm:$0xff]
    %v276 = vld [vmem:[%s1 + $0x7c8] sm:$0xff]
    %v277 = vld [vmem:[%s1 + $0x7d0] sm:$0xff]
    %v278 = vld [vmem:[%s1 + $0x7d8] sm:$0xff]
    %v279 = vld [vmem:[%s1 + $0x7e0] sm:$0xff]
    %v280 = vld [vmem:[%s1 + $0x7e8] sm:$0xff]
    %v281 = vld [vmem:[%s1 + $0x7f0] sm:$0xff]
    %v282 = vld [vmem:[%s1 + $0x7f8] sm:$0xff]
    %v283 = vld [vmem:[%s2] sm:$0x3]
    %v285 = vlaneseq
    %v286 = vshrl.u32 %v285, 7
    %v287 = vsub.s32 0, %v286
    %v288 = vrot.slane %v283, %v287
    %v289 = vlaneseq
    %v290 = vshrl.u32 %v289, 7
    %v291 = vsub.s32 1, %v290
    %v292 = vrot.slane %v283, %v291
    %v297 = vcombine.high %v25, %v25
    %v299 = vunpack.c.l.s4 1966171168
    %v300 = vunpack.c.0.s8 %v299
    %v301 = vlaneseq
    %v302 = vshrl.u32 %v301, 7
    %v303 = vsub.s32 %v300, %v302
    %v304 = vrot.slane %v25, %v303
    %v306 = vunpack.c.l.s4 1966171168
    %v307 = vunpack.c.0.s8 %v306
    %v308 = vlaneseq
    %v309 = vshrl.u32 %v308, 7
    %v310 = vsub.s32 %v307, %v309
    %v311 = vrot.slane %v297, %v310
    %v312 = vcombine.high %v304, %v304
    %v313 = vcombine.high %v311, %v311
    %v315 = vunpack.c.l.s4 1966171168
    %v316 = vunpack.c.0.s8 %v315
    %v317 = vlaneseq
    %v318 = vshrl.u32 %v317, 7
    %v319 = vsub.s32 %v316, %v318
    %v320 = vrot.slane %v304, %v319
    %v322 = vunpack.c.l.s4 1966171168
    %v323 = vunpack.c.0.s8 %v322
    %v324 = vlaneseq
    %v325 = vshrl.u32 %v324, 7
    %v326 = vsub.s32 %v323, %v325
    %v327 = vrot.slane %v311, %v326
    %v329 = vunpack.c.l.s4 1966171168
    %v330 = vunpack.c.0.s8 %v329
    %v331 = vlaneseq
    %v332 = vshrl.u32 %v331, 7
    %v333 = vsub.s32 %v330, %v332
    %v334 = vrot.slane %v312, %v333
    %v336 = vunpack.c.l.s4 1966171168
    %v337 = vunpack.c.0.s8 %v336
    %v338 = vlaneseq
    %v339 = vshrl.u32 %v338, 7
    %v340 = vsub.s32 %v337, %v339
    %v341 = vrot.slane %v313, %v340
    %v342 = vcombine.high %v320, %v320
    %v343 = vcombine.high %v327, %v327
    %v344 = vcombine.high %v334, %v334
    %v345 = vcombine.high %v341, %v341
    %v346 = vcombine.high %v26, %v26
    %v348 = vunpack.c.l.s4 1966171168
    %v349 = vunpack.c.0.s8 %v348
    %v350 = vlaneseq
    %v351 = vshrl.u32 %v350, 7
    %v352 = vsub.s32 %v349, %v351
    %v353 = vrot.slane %v26, %v352
    %v355 = vunpack.c.l.s4 1966171168
    %v356 = vunpack.c.0.s8 %v355
    %v357 = vlaneseq
    %v358 = vshrl.u32 %v357, 7
    %v359 = vsub.s32 %v356, %v358
    %v360 = vrot.slane %v346, %v359
    %v361 = vcombine.high %v353, %v353
    %v362 = vcombine.high %v360, %v360
    %v364 = vunpack.c.l.s4 1966171168
    %v365 = vunpack.c.0.s8 %v364
    %v366 = vlaneseq
    %v367 = vshrl.u32 %v366, 7
    %v368 = vsub.s32 %v365, %v367
    %v369 = vrot.slane %v353, %v368
    %v371 = vunpack.c.l.s4 1966171168
    %v372 = vunpack.c.0.s8 %v371
    %v373 = vlaneseq
    %v374 = vshrl.u32 %v373, 7
    %v375 = vsub.s32 %v372, %v374
    %v376 = vrot.slane %v360, %v375
    %v378 = vunpack.c.l.s4 1966171168
    %v379 = vunpack.c.0.s8 %v378
    %v380 = vlaneseq
    %v381 = vshrl.u32 %v380, 7
    %v382 = vsub.s32 %v379, %v381
    %v383 = vrot.slane %v361, %v382
    %v385 = vunpack.c.l.s4 1966171168
    %v386 = vunpack.c.0.s8 %v385
    %v387 = vlaneseq
    %v388 = vshrl.u32 %v387, 7
    %v389 = vsub.s32 %v386, %v388
    %v390 = vrot.slane %v362, %v389
    %v391 = vcombine.high %v369, %v369
    %v392 = vcombine.high %v376, %v376
    %v393 = vcombine.high %v383, %v383
    %v394 = vcombine.high %v390, %v390
    %v667 = vunpack.c.l.b16 %v27
    %v668 = vunpack.c.h.b16 %v27
    %v669 = vunpack.c.l.b16 %v28
    %v670 = vunpack.c.h.b16 %v28
    %v671 = vunpack.c.l.b16 %v29
    %v672 = vunpack.c.h.b16 %v29
    %v673 = vunpack.c.l.b16 %v30
    %v674 = vunpack.c.h.b16 %v30
    %v675 = vunpack.c.l.b16 %v31
    %v676 = vunpack.c.h.b16 %v31
    %v677 = vunpack.c.l.b16 %v32
    %v678 = vunpack.c.h.b16 %v32
    %v679 = vunpack.c.l.b16 %v33
    %v680 = vunpack.c.h.b16 %v33
    %v681 = vunpack.c.l.b16 %v34
    %v682 = vunpack.c.h.b16 %v34
    %v683 = vunpack.c.l.b16 %v35
    %v684 = vunpack.c.h.b16 %v35
    %v685 = vunpack.c.l.b16 %v36
    %v686 = vunpack.c.h.b16 %v36
    %v687 = vunpack.c.l.b16 %v37
    %v688 = vunpack.c.h.b16 %v37
    %v689 = vunpack.c.l.b16 %v38
    %v690 = vunpack.c.h.b16 %v38
    %v691 = vunpack.c.l.b16 %v39
    %v692 = vunpack.c.h.b16 %v39
    %v693 = vunpack.c.l.b16 %v40
    %v694 = vunpack.c.h.b16 %v40
    %v695 = vunpack.c.l.b16 %v41
    %v696 = vunpack.c.h.b16 %v41
    %v697 = vunpack.c.l.b16 %v42
    %v698 = vunpack.c.h.b16 %v42
    %v699 = vunpack.c.l.b16 %v43
    %v700 = vunpack.c.h.b16 %v43
    %v701 = vunpack.c.l.b16 %v44
    %v702 = vunpack.c.h.b16 %v44
    %v703 = vunpack.c.l.b16 %v45
    %v704 = vunpack.c.h.b16 %v45
    %v705 = vunpack.c.l.b16 %v46
    %v706 = vunpack.c.h.b16 %v46
    %v707 = vunpack.c.l.b16 %v47
    %v708 = vunpack.c.h.b16 %v47
    %v709 = vunpack.c.l.b16 %v48
    %v710 = vunpack.c.h.b16 %v48
    %v711 = vunpack.c.l.b16 %v49
    %v712 = vunpack.c.h.b16 %v49
    %v713 = vunpack.c.l.b16 %v50
    %v714 = vunpack.c.h.b16 %v50
    %v715 = vunpack.c.l.b16 %v51
    %v716 = vunpack.c.h.b16 %v51
    %v717 = vunpack.c.l.b16 %v52
    %v718 = vunpack.c.h.b16 %v52
    %v719 = vunpack.c.l.b16 %v53
    %v720 = vunpack.c.h.b16 %v53
    %v721 = vunpack.c.l.b16 %v54
    %v722 = vunpack.c.h.b16 %v54
    %v723 = vunpack.c.l.b16 %v55
    %v724 = vunpack.c.h.b16 %v55
    %v725 = vunpack.c.l.b16 %v56
    %v726 = vunpack.c.h.b16 %v56
    %v727 = vunpack.c.l.b16 %v57
    %v728 = vunpack.c.h.b16 %v57
    %v729 = vunpack.c.l.b16 %v58
    %v730 = vunpack.c.h.b16 %v58
    %v731 = vunpack.c.l.b16 %v59
    %v732 = vunpack.c.h.b16 %v59
    %v733 = vunpack.c.l.b16 %v60
    %v734 = vunpack.c.h.b16 %v60
    %v735 = vunpack.c.l.b16 %v61
    %v736 = vunpack.c.h.b16 %v61
    %v737 = vunpack.c.l.b16 %v62
    %v738 = vunpack.c.h.b16 %v62
    %v739 = vunpack.c.l.b16 %v63
    %v740 = vunpack.c.h.b16 %v63
    %v741 = vunpack.c.l.b16 %v64
    %v742 = vunpack.c.h.b16 %v64
    %v743 = vunpack.c.l.b16 %v65
    %v744 = vunpack.c.h.b16 %v65
    %v745 = vunpack.c.l.b16 %v66
    %v746 = vunpack.c.h.b16 %v66
    %v747 = vunpack.c.l.b16 %v67
    %v748 = vunpack.c.h.b16 %v67
    %v749 = vunpack.c.l.b16 %v68
    %v750 = vunpack.c.h.b16 %v68
    %v751 = vunpack.c.l.b16 %v69
    %v752 = vunpack.c.h.b16 %v69
    %v753 = vunpack.c.l.b16 %v70
    %v754 = vunpack.c.h.b16 %v70
    %v755 = vunpack.c.l.b16 %v71
    %v756 = vunpack.c.h.b16 %v71
    %v757 = vunpack.c.l.b16 %v72
    %v758 = vunpack.c.h.b16 %v72
    %v759 = vunpack.c.l.b16 %v73
    %v760 = vunpack.c.h.b16 %v73
    %v761 = vunpack.c.l.b16 %v74
    %v762 = vunpack.c.h.b16 %v74
    %v763 = vunpack.c.l.b16 %v75
    %v764 = vunpack.c.h.b16 %v75
    %v765 = vunpack.c.l.b16 %v76
    %v766 = vunpack.c.h.b16 %v76
    %v767 = vunpack.c.l.b16 %v77
    %v768 = vunpack.c.h.b16 %v77
    %v769 = vunpack.c.l.b16 %v78
    %v770 = vunpack.c.h.b16 %v78
    %v771 = vunpack.c.l.b16 %v79
    %v772 = vunpack.c.h.b16 %v79
    %v773 = vunpack.c.l.b16 %v80
    %v774 = vunpack.c.h.b16 %v80
    %v775 = vunpack.c.l.b16 %v81
    %v776 = vunpack.c.h.b16 %v81
    %v777 = vunpack.c.l.b16 %v82
    %v778 = vunpack.c.h.b16 %v82
    %v779 = vunpack.c.l.b16 %v83
    %v780 = vunpack.c.h.b16 %v83
    %v781 = vunpack.c.l.b16 %v84
    %v782 = vunpack.c.h.b16 %v84
    %v783 = vunpack.c.l.b16 %v85
    %v784 = vunpack.c.h.b16 %v85
    %v785 = vunpack.c.l.b16 %v86
    %v786 = vunpack.c.h.b16 %v86
    %v787 = vunpack.c.l.b16 %v87
    %v788 = vunpack.c.h.b16 %v87
    %v789 = vunpack.c.l.b16 %v88
    %v790 = vunpack.c.h.b16 %v88
    %v791 = vunpack.c.l.b16 %v89
    %v792 = vunpack.c.h.b16 %v89
    %v793 = vunpack.c.l.b16 %v90
    %v794 = vunpack.c.h.b16 %v90
    %v795 = vunpack.c.l.b16 %v91
    %v796 = vunpack.c.h.b16 %v91
    %v797 = vunpack.c.l.b16 %v92
    %v798 = vunpack.c.h.b16 %v92
    %v799 = vunpack.c.l.b16 %v93
    %v800 = vunpack.c.h.b16 %v93
    %v801 = vunpack.c.l.b16 %v94
    %v802 = vunpack.c.h.b16 %v94
    %v803 = vunpack.c.l.b16 %v95
    %v804 = vunpack.c.h.b16 %v95
    %v805 = vunpack.c.l.b16 %v96
    %v806 = vunpack.c.h.b16 %v96
    %v807 = vunpack.c.l.b16 %v97
    %v808 = vunpack.c.h.b16 %v97
    %v809 = vunpack.c.l.b16 %v98
    %v810 = vunpack.c.h.b16 %v98
    %v811 = vunpack.c.l.b16 %v99
    %v812 = vunpack.c.h.b16 %v99
    %v813 = vunpack.c.l.b16 %v100
    %v814 = vunpack.c.h.b16 %v100
    %v815 = vunpack.c.l.b16 %v101
    %v816 = vunpack.c.h.b16 %v101
    %v817 = vunpack.c.l.b16 %v102
    %v818 = vunpack.c.h.b16 %v102
    %v819 = vunpack.c.l.b16 %v103
    %v820 = vunpack.c.h.b16 %v103
    %v821 = vunpack.c.l.b16 %v104
    %v822 = vunpack.c.h.b16 %v104
    %v823 = vunpack.c.l.b16 %v105
    %v824 = vunpack.c.h.b16 %v105
    %v825 = vunpack.c.l.b16 %v106
    %v826 = vunpack.c.h.b16 %v106
    %v827 = vunpack.c.l.b16 %v107
    %v828 = vunpack.c.h.b16 %v107
    %v829 = vunpack.c.l.b16 %v108
    %v830 = vunpack.c.h.b16 %v108
    %v831 = vunpack.c.l.b16 %v109
    %v832 = vunpack.c.h.b16 %v109
    %v833 = vunpack.c.l.b16 %v110
    %v834 = vunpack.c.h.b16 %v110
    %v835 = vunpack.c.l.b16 %v111
    %v836 = vunpack.c.h.b16 %v111
    %v837 = vunpack.c.l.b16 %v112
    %v838 = vunpack.c.h.b16 %v112
    %v839 = vunpack.c.l.b16 %v113
    %v840 = vunpack.c.h.b16 %v113
    %v841 = vunpack.c.l.b16 %v114
    %v842 = vunpack.c.h.b16 %v114
    %v843 = vunpack.c.l.b16 %v115
    %v844 = vunpack.c.h.b16 %v115
    %v845 = vunpack.c.l.b16 %v116
    %v846 = vunpack.c.h.b16 %v116
    %v847 = vunpack.c.l.b16 %v117
    %v848 = vunpack.c.h.b16 %v117
    %v849 = vunpack.c.l.b16 %v118
    %v850 = vunpack.c.h.b16 %v118
    %v851 = vunpack.c.l.b16 %v119
    %v852 = vunpack.c.h.b16 %v119
    %v853 = vunpack.c.l.b16 %v120
    %v854 = vunpack.c.h.b16 %v120
    %v855 = vunpack.c.l.b16 %v121
    %v856 = vunpack.c.h.b16 %v121
    %v857 = vunpack.c.l.b16 %v122
    %v858 = vunpack.c.h.b16 %v122
    %v859 = vunpack.c.l.b16 %v123
    %v860 = vunpack.c.h.b16 %v123
    %v861 = vunpack.c.l.b16 %v124
    %v862 = vunpack.c.h.b16 %v124
    %v863 = vunpack.c.l.b16 %v125
    %v864 = vunpack.c.h.b16 %v125
    %v865 = vunpack.c.l.b16 %v126
    %v866 = vunpack.c.h.b16 %v126
    %v867 = vunpack.c.l.b16 %v127
    %v868 = vunpack.c.h.b16 %v127
    %v869 = vunpack.c.l.b16 %v128
    %v870 = vunpack.c.h.b16 %v128
    %v871 = vunpack.c.l.b16 %v129
    %v872 = vunpack.c.h.b16 %v129
    %v873 = vunpack.c.l.b16 %v130
    %v874 = vunpack.c.h.b16 %v130
    %v875 = vunpack.c.l.b16 %v131
    %v876 = vunpack.c.h.b16 %v131
    %v877 = vunpack.c.l.b16 %v132
    %v878 = vunpack.c.h.b16 %v132
    %v879 = vunpack.c.l.b16 %v133
    %v880 = vunpack.c.h.b16 %v133
    %v881 = vunpack.c.l.b16 %v134
    %v882 = vunpack.c.h.b16 %v134
    %v883 = vunpack.c.l.b16 %v135
    %v884 = vunpack.c.h.b16 %v135
    %v885 = vunpack.c.l.b16 %v136
    %v886 = vunpack.c.h.b16 %v136
    %v887 = vunpack.c.l.b16 %v137
    %v888 = vunpack.c.h.b16 %v137
    %v889 = vunpack.c.l.b16 %v138
    %v890 = vunpack.c.h.b16 %v138
    %v891 = vunpack.c.l.b16 %v139
    %v892 = vunpack.c.h.b16 %v139
    %v893 = vunpack.c.l.b16 %v140
    %v894 = vunpack.c.h.b16 %v140
    %v895 = vunpack.c.l.b16 %v141
    %v896 = vunpack.c.h.b16 %v141
    %v897 = vunpack.c.l.b16 %v142
    %v898 = vunpack.c.h.b16 %v142
    %v899 = vunpack.c.l.b16 %v143
    %v900 = vunpack.c.h.b16 %v143
    %v901 = vunpack.c.l.b16 %v144
    %v902 = vunpack.c.h.b16 %v144
    %v903 = vunpack.c.l.b16 %v145
    %v904 = vunpack.c.h.b16 %v145
    %v905 = vunpack.c.l.b16 %v146
    %v906 = vunpack.c.h.b16 %v146
    %v907 = vunpack.c.l.b16 %v147
    %v908 = vunpack.c.h.b16 %v147
    %v909 = vunpack.c.l.b16 %v148
    %v910 = vunpack.c.h.b16 %v148
    %v911 = vunpack.c.l.b16 %v149
    %v912 = vunpack.c.h.b16 %v149
    %v913 = vunpack.c.l.b16 %v150
    %v914 = vunpack.c.h.b16 %v150
    %v915 = vunpack.c.l.b16 %v151
    %v916 = vunpack.c.h.b16 %v151
    %v917 = vunpack.c.l.b16 %v152
    %v918 = vunpack.c.h.b16 %v152
    %v919 = vunpack.c.l.b16 %v153
    %v920 = vunpack.c.h.b16 %v153
    %v921 = vunpack.c.l.b16 %v154
    %v922 = vunpack.c.h.b16 %v154
    %v923 = vunpack.c.l.b16 %v155
    %v924 = vunpack.c.h.b16 %v155
    %v925 = vunpack.c.l.b16 %v156
    %v926 = vunpack.c.h.b16 %v156
    %v927 = vunpack.c.l.b16 %v157
    %v928 = vunpack.c.h.b16 %v157
    %v929 = vunpack.c.l.b16 %v158
    %v930 = vunpack.c.h.b16 %v158
    %v931 = vunpack.c.l.b16 %v159
    %v932 = vunpack.c.h.b16 %v159
    %v933 = vunpack.c.l.b16 %v160
    %v934 = vunpack.c.h.b16 %v160
    %v935 = vunpack.c.l.b16 %v161
    %v936 = vunpack.c.h.b16 %v161
    %v937 = vunpack.c.l.b16 %v162
    %v938 = vunpack.c.h.b16 %v162
    %v939 = vunpack.c.l.b16 %v163
    %v940 = vunpack.c.h.b16 %v163
    %v941 = vunpack.c.l.b16 %v164
    %v942 = vunpack.c.h.b16 %v164
    %v943 = vunpack.c.l.b16 %v165
    %v944 = vunpack.c.h.b16 %v165
    %v945 = vunpack.c.l.b16 %v166
    %v946 = vunpack.c.h.b16 %v166
    %v947 = vunpack.c.l.b16 %v167
    %v948 = vunpack.c.h.b16 %v167
    %v949 = vunpack.c.l.b16 %v168
    %v950 = vunpack.c.h.b16 %v168
    %v951 = vunpack.c.l.b16 %v169
    %v952 = vunpack.c.h.b16 %v169
    %v953 = vunpack.c.l.b16 %v170
    %v954 = vunpack.c.h.b16 %v170
    %v955 = vunpack.c.l.b16 %v171
    %v956 = vunpack.c.h.b16 %v171
    %v957 = vunpack.c.l.b16 %v172
    %v958 = vunpack.c.h.b16 %v172
    %v959 = vunpack.c.l.b16 %v173
    %v960 = vunpack.c.h.b16 %v173
    %v961 = vunpack.c.l.b16 %v174
    %v962 = vunpack.c.h.b16 %v174
    %v963 = vunpack.c.l.b16 %v175
    %v964 = vunpack.c.h.b16 %v175
    %v965 = vunpack.c.l.b16 %v176
    %v966 = vunpack.c.h.b16 %v176
    %v967 = vunpack.c.l.b16 %v177
    %v968 = vunpack.c.h.b16 %v177
    %v969 = vunpack.c.l.b16 %v178
    %v970 = vunpack.c.h.b16 %v178
    %v971 = vunpack.c.l.b16 %v179
    %v972 = vunpack.c.h.b16 %v179
    %v973 = vunpack.c.l.b16 %v180
    %v974 = vunpack.c.h.b16 %v180
    %v975 = vunpack.c.l.b16 %v181
    %v976 = vunpack.c.h.b16 %v181
    %v977 = vunpack.c.l.b16 %v182
    %v978 = vunpack.c.h.b16 %v182
    %v979 = vunpack.c.l.b16 %v183
    %v980 = vunpack.c.h.b16 %v183
    %v981 = vunpack.c.l.b16 %v184
    %v982 = vunpack.c.h.b16 %v184
    %v983 = vunpack.c.l.b16 %v185
    %v984 = vunpack.c.h.b16 %v185
    %v985 = vunpack.c.l.b16 %v186
    %v986 = vunpack.c.h.b16 %v186
    %v987 = vunpack.c.l.b16 %v187
    %v988 = vunpack.c.h.b16 %v187
    %v989 = vunpack.c.l.b16 %v188
    %v990 = vunpack.c.h.b16 %v188
    %v991 = vunpack.c.l.b16 %v189
    %v992 = vunpack.c.h.b16 %v189
    %v993 = vunpack.c.l.b16 %v190
    %v994 = vunpack.c.h.b16 %v190
    %v995 = vunpack.c.l.b16 %v191
    %v996 = vunpack.c.h.b16 %v191
    %v997 = vunpack.c.l.b16 %v192
    %v998 = vunpack.c.h.b16 %v192
    %v999 = vunpack.c.l.b16 %v193
    %v1000 = vunpack.c.h.b16 %v193
    %v1001 = vunpack.c.l.b16 %v194
    %v1002 = vunpack.c.h.b16 %v194
    %v1003 = vunpack.c.l.b16 %v195
    %v1004 = vunpack.c.h.b16 %v195
    %v1005 = vunpack.c.l.b16 %v196
    %v1006 = vunpack.c.h.b16 %v196
    %v1007 = vunpack.c.l.b16 %v197
    %v1008 = vunpack.c.h.b16 %v197
    %v1009 = vunpack.c.l.b16 %v198
    %v1010 = vunpack.c.h.b16 %v198
    %v1011 = vunpack.c.l.b16 %v199
    %v1012 = vunpack.c.h.b16 %v199
    %v1013 = vunpack.c.l.b16 %v200
    %v1014 = vunpack.c.h.b16 %v200
    %v1015 = vunpack.c.l.b16 %v201
    %v1016 = vunpack.c.h.b16 %v201
    %v1017 = vunpack.c.l.b16 %v202
    %v1018 = vunpack.c.h.b16 %v202
    %v1019 = vunpack.c.l.b16 %v203
    %v1020 = vunpack.c.h.b16 %v203
    %v1021 = vunpack.c.l.b16 %v204
    %v1022 = vunpack.c.h.b16 %v204
    %v1023 = vunpack.c.l.b16 %v205
    %v1024 = vunpack.c.h.b16 %v205
    %v1025 = vunpack.c.l.b16 %v206
    %v1026 = vunpack.c.h.b16 %v206
    %v1027 = vunpack.c.l.b16 %v207
    %v1028 = vunpack.c.h.b16 %v207
    %v1029 = vunpack.c.l.b16 %v208
    %v1030 = vunpack.c.h.b16 %v208
    %v1031 = vunpack.c.l.b16 %v209
    %v1032 = vunpack.c.h.b16 %v209
    %v1033 = vunpack.c.l.b16 %v210
    %v1034 = vunpack.c.h.b16 %v210
    %v1035 = vunpack.c.l.b16 %v211
    %v1036 = vunpack.c.h.b16 %v211
    %v1037 = vunpack.c.l.b16 %v212
    %v1038 = vunpack.c.h.b16 %v212
    %v1039 = vunpack.c.l.b16 %v213
    %v1040 = vunpack.c.h.b16 %v213
    %v1041 = vunpack.c.l.b16 %v214
    %v1042 = vunpack.c.h.b16 %v214
    %v1043 = vunpack.c.l.b16 %v215
    %v1044 = vunpack.c.h.b16 %v215
    %v1045 = vunpack.c.l.b16 %v216
    %v1046 = vunpack.c.h.b16 %v216
    %v1047 = vunpack.c.l.b16 %v217
    %v1048 = vunpack.c.h.b16 %v217
    %v1049 = vunpack.c.l.b16 %v218
    %v1050 = vunpack.c.h.b16 %v218
    %v1051 = vunpack.c.l.b16 %v219
    %v1052 = vunpack.c.h.b16 %v219
    %v1053 = vunpack.c.l.b16 %v220
    %v1054 = vunpack.c.h.b16 %v220
    %v1055 = vunpack.c.l.b16 %v221
    %v1056 = vunpack.c.h.b16 %v221
    %v1057 = vunpack.c.l.b16 %v222
    %v1058 = vunpack.c.h.b16 %v222
    %v1059 = vunpack.c.l.b16 %v223
    %v1060 = vunpack.c.h.b16 %v223
    %v1061 = vunpack.c.l.b16 %v224
    %v1062 = vunpack.c.h.b16 %v224
    %v1063 = vunpack.c.l.b16 %v225
    %v1064 = vunpack.c.h.b16 %v225
    %v1065 = vunpack.c.l.b16 %v226
    %v1066 = vunpack.c.h.b16 %v226
    %v1067 = vunpack.c.l.b16 %v227
    %v1068 = vunpack.c.h.b16 %v227
    %v1069 = vunpack.c.l.b16 %v228
    %v1070 = vunpack.c.h.b16 %v228
    %v1071 = vunpack.c.l.b16 %v229
    %v1072 = vunpack.c.h.b16 %v229
    %v1073 = vunpack.c.l.b16 %v230
    %v1074 = vunpack.c.h.b16 %v230
    %v1075 = vunpack.c.l.b16 %v231
    %v1076 = vunpack.c.h.b16 %v231
    %v1077 = vunpack.c.l.b16 %v232
    %v1078 = vunpack.c.h.b16 %v232
    %v1079 = vunpack.c.l.b16 %v233
    %v1080 = vunpack.c.h.b16 %v233
    %v1081 = vunpack.c.l.b16 %v234
    %v1082 = vunpack.c.h.b16 %v234
    %v1083 = vunpack.c.l.b16 %v235
    %v1084 = vunpack.c.h.b16 %v235
    %v1085 = vunpack.c.l.b16 %v236
    %v1086 = vunpack.c.h.b16 %v236
    %v1087 = vunpack.c.l.b16 %v237
    %v1088 = vunpack.c.h.b16 %v237
    %v1089 = vunpack.c.l.b16 %v238
    %v1090 = vunpack.c.h.b16 %v238
    %v1091 = vunpack.c.l.b16 %v239
    %v1092 = vunpack.c.h.b16 %v239
    %v1093 = vunpack.c.l.b16 %v240
    %v1094 = vunpack.c.h.b16 %v240
    %v1095 = vunpack.c.l.b16 %v241
    %v1096 = vunpack.c.h.b16 %v241
    %v1097 = vunpack.c.l.b16 %v242
    %v1098 = vunpack.c.h.b16 %v242
    %v1099 = vunpack.c.l.b16 %v243
    %v1100 = vunpack.c.h.b16 %v243
    %v1101 = vunpack.c.l.b16 %v244
    %v1102 = vunpack.c.h.b16 %v244
    %v1103 = vunpack.c.l.b16 %v245
    %v1104 = vunpack.c.h.b16 %v245
    %v1105 = vunpack.c.l.b16 %v246
    %v1106 = vunpack.c.h.b16 %v246
    %v1107 = vunpack.c.l.b16 %v247
    %v1108 = vunpack.c.h.b16 %v247
    %v1109 = vunpack.c.l.b16 %v248
    %v1110 = vunpack.c.h.b16 %v248
    %v1111 = vunpack.c.l.b16 %v249
    %v1112 = vunpack.c.h.b16 %v249
    %v1113 = vunpack.c.l.b16 %v250
    %v1114 = vunpack.c.h.b16 %v250
    %v1115 = vunpack.c.l.b16 %v251
    %v1116 = vunpack.c.h.b16 %v251
    %v1117 = vunpack.c.l.b16 %v252
    %v1118 = vunpack.c.h.b16 %v252
    %v1119 = vunpack.c.l.b16 %v253
    %v1120 = vunpack.c.h.b16 %v253
    %v1121 = vunpack.c.l.b16 %v254
    %v1122 = vunpack.c.h.b16 %v254
    %v1123 = vunpack.c.l.b16 %v255
    %v1124 = vunpack.c.h.b16 %v255
    %v1125 = vunpack.c.l.b16 %v256
    %v1126 = vunpack.c.h.b16 %v256
    %v1127 = vunpack.c.l.b16 %v257
    %v1128 = vunpack.c.h.b16 %v257
    %v1129 = vunpack.c.l.b16 %v258
    %v1130 = vunpack.c.h.b16 %v258
    %v1131 = vunpack.c.l.b16 %v259
    %v1132 = vunpack.c.h.b16 %v259
    %v1133 = vunpack.c.l.b16 %v260
    %v1134 = vunpack.c.h.b16 %v260
    %v1135 = vunpack.c.l.b16 %v261
    %v1136 = vunpack.c.h.b16 %v261
    %v1137 = vunpack.c.l.b16 %v262
    %v1138 = vunpack.c.h.b16 %v262
    %v1139 = vunpack.c.l.b16 %v263
    %v1140 = vunpack.c.h.b16 %v263
    %v1141 = vunpack.c.l.b16 %v264
    %v1142 = vunpack.c.h.b16 %v264
    %v1143 = vunpack.c.l.b16 %v265
    %v1144 = vunpack.c.h.b16 %v265
    %v1145 = vunpack.c.l.b16 %v266
    %v1146 = vunpack.c.h.b16 %v266
    %v1147 = vunpack.c.l.b16 %v267
    %v1148 = vunpack.c.h.b16 %v267
    %v1149 = vunpack.c.l.b16 %v268
    %v1150 = vunpack.c.h.b16 %v268
    %v1151 = vunpack.c.l.b16 %v269
    %v1152 = vunpack.c.h.b16 %v269
    %v1153 = vunpack.c.l.b16 %v270
    %v1154 = vunpack.c.h.b16 %v270
    %v1155 = vunpack.c.l.b16 %v271
    %v1156 = vunpack.c.h.b16 %v271
    %v1157 = vunpack.c.l.b16 %v272
    %v1158 = vunpack.c.h.b16 %v272
    %v1159 = vunpack.c.l.b16 %v273
    %v1160 = vunpack.c.h.b16 %v273
    %v1161 = vunpack.c.l.b16 %v274
    %v1162 = vunpack.c.h.b16 %v274
    %v1163 = vunpack.c.l.b16 %v275
    %v1164 = vunpack.c.h.b16 %v275
    %v1165 = vunpack.c.l.b16 %v276
    %v1166 = vunpack.c.h.b16 %v276
    %v1167 = vunpack.c.l.b16 %v277
    %v1168 = vunpack.c.h.b16 %v277
    %v1169 = vunpack.c.l.b16 %v278
    %v1170 = vunpack.c.h.b16 %v278
    %v1171 = vunpack.c.l.b16 %v279
    %v1172 = vunpack.c.h.b16 %v279
    %v1173 = vunpack.c.l.b16 %v280
    %v1174 = vunpack.c.h.b16 %v280
    %v1175 = vunpack.c.l.b16 %v281
    %v1176 = vunpack.c.h.b16 %v281
    %v1177 = vunpack.c.l.b16 %v282
    %v1178 = vunpack.c.h.b16 %v282
    %v1179 = vpack.c.b16 %v669, %v667
    %v1180 = vpack.c.b16 %v670, %v668
    %v1181 = vpack.c.b16 %v673, %v671
    %v1182 = vpack.c.b16 %v674, %v672
    %v1183 = vpack.c.b16 %v677, %v675
    %v1184 = vpack.c.b16 %v678, %v676
    %v1185 = vpack.c.b16 %v681, %v679
    %v1186 = vpack.c.b16 %v682, %v680
    %v1187 = vpack.c.b16 %v685, %v683
    %v1188 = vpack.c.b16 %v686, %v684
    %v1189 = vpack.c.b16 %v689, %v687
    %v1190 = vpack.c.b16 %v690, %v688
    %v1191 = vpack.c.b16 %v693, %v691
    %v1192 = vpack.c.b16 %v694, %v692
    %v1193 = vpack.c.b16 %v697, %v695
    %v1194 = vpack.c.b16 %v698, %v696
    %v1195 = vpack.c.b16 %v701, %v699
    %v1196 = vpack.c.b16 %v702, %v700
    %v1197 = vpack.c.b16 %v705, %v703
    %v1198 = vpack.c.b16 %v706, %v704
    %v1199 = vpack.c.b16 %v709, %v707
    %v1200 = vpack.c.b16 %v710, %v708
    %v1201 = vpack.c.b16 %v713, %v711
    %v1202 = vpack.c.b16 %v714, %v712
    %v1203 = vpack.c.b16 %v717, %v715
    %v1204 = vpack.c.b16 %v718, %v716
    %v1205 = vpack.c.b16 %v721, %v719
    %v1206 = vpack.c.b16 %v722, %v720
    %v1207 = vpack.c.b16 %v725, %v723
    %v1208 = vpack.c.b16 %v726, %v724
    %v1209 = vpack.c.b16 %v729, %v727
    %v1210 = vpack.c.b16 %v730, %v728
    %v1211 = vpack.c.b16 %v733, %v731
    %v1212 = vpack.c.b16 %v734, %v732
    %v1213 = vpack.c.b16 %v737, %v735
    %v1214 = vpack.c.b16 %v738, %v736
    %v1215 = vpack.c.b16 %v741, %v739
    %v1216 = vpack.c.b16 %v742, %v740
    %v1217 = vpack.c.b16 %v745, %v743
    %v1218 = vpack.c.b16 %v746, %v744
    %v1219 = vpack.c.b16 %v749, %v747
    %v1220 = vpack.c.b16 %v750, %v748
    %v1221 = vpack.c.b16 %v753, %v751
    %v1222 = vpack.c.b16 %v754, %v752
    %v1223 = vpack.c.b16 %v757, %v755
    %v1224 = vpack.c.b16 %v758, %v756
    %v1225 = vpack.c.b16 %v761, %v759
    %v1226 = vpack.c.b16 %v762, %v760
    %v1227 = vpack.c.b16 %v765, %v763
    %v1228 = vpack.c.b16 %v766, %v764
    %v1229 = vpack.c.b16 %v769, %v767
    %v1230 = vpack.c.b16 %v770, %v768
    %v1231 = vpack.c.b16 %v773, %v771
    %v1232 = vpack.c.b16 %v774, %v772
    %v1233 = vpack.c.b16 %v777, %v775
    %v1234 = vpack.c.b16 %v778, %v776
    %v1235 = vpack.c.b16 %v781, %v779
    %v1236 = vpack.c.b16 %v782, %v780
    %v1237 = vpack.c.b16 %v785, %v783
    %v1238 = vpack.c.b16 %v786, %v784
    %v1239 = vpack.c.b16 %v789, %v787
    %v1240 = vpack.c.b16 %v790, %v788
    %v1241 = vpack.c.b16 %v793, %v791
    %v1242 = vpack.c.b16 %v794, %v792
    %v1243 = vpack.c.b16 %v797, %v795
    %v1244 = vpack.c.b16 %v798, %v796
    %v1245 = vpack.c.b16 %v801, %v799
    %v1246 = vpack.c.b16 %v802, %v800
    %v1247 = vpack.c.b16 %v805, %v803
    %v1248 = vpack.c.b16 %v806, %v804
    %v1249 = vpack.c.b16 %v809, %v807
    %v1250 = vpack.c.b16 %v810, %v808
    %v1251 = vpack.c.b16 %v813, %v811
    %v1252 = vpack.c.b16 %v814, %v812
    %v1253 = vpack.c.b16 %v817, %v815
    %v1254 = vpack.c.b16 %v818, %v816
    %v1255 = vpack.c.b16 %v821, %v819
    %v1256 = vpack.c.b16 %v822, %v820
    %v1257 = vpack.c.b16 %v825, %v823
    %v1258 = vpack.c.b16 %v826, %v824
    %v1259 = vpack.c.b16 %v829, %v827
    %v1260 = vpack.c.b16 %v830, %v828
    %v1261 = vpack.c.b16 %v833, %v831
    %v1262 = vpack.c.b16 %v834, %v832
    %v1263 = vpack.c.b16 %v837, %v835
    %v1264 = vpack.c.b16 %v838, %v836
    %v1265 = vpack.c.b16 %v841, %v839
    %v1266 = vpack.c.b16 %v842, %v840
    %v1267 = vpack.c.b16 %v845, %v843
    %v1268 = vpack.c.b16 %v846, %v844
    %v1269 = vpack.c.b16 %v849, %v847
    %v1270 = vpack.c.b16 %v850, %v848
    %v1271 = vpack.c.b16 %v853, %v851
    %v1272 = vpack.c.b16 %v854, %v852
    %v1273 = vpack.c.b16 %v857, %v855
    %v1274 = vpack.c.b16 %v858, %v856
    %v1275 = vpack.c.b16 %v861, %v859
    %v1276 = vpack.c.b16 %v862, %v860
    %v1277 = vpack.c.b16 %v865, %v863
    %v1278 = vpack.c.b16 %v866, %v864
    %v1279 = vpack.c.b16 %v869, %v867
    %v1280 = vpack.c.b16 %v870, %v868
    %v1281 = vpack.c.b16 %v873, %v871
    %v1282 = vpack.c.b16 %v874, %v872
    %v1283 = vpack.c.b16 %v877, %v875
    %v1284 = vpack.c.b16 %v878, %v876
    %v1285 = vpack.c.b16 %v881, %v879
    %v1286 = vpack.c.b16 %v882, %v880
    %v1287 = vpack.c.b16 %v885, %v883
    %v1288 = vpack.c.b16 %v886, %v884
    %v1289 = vpack.c.b16 %v889, %v887
    %v1290 = vpack.c.b16 %v890, %v888
    %v1291 = vpack.c.b16 %v893, %v891
    %v1292 = vpack.c.b16 %v894, %v892
    %v1293 = vpack.c.b16 %v897, %v895
    %v1294 = vpack.c.b16 %v898, %v896
    %v1295 = vpack.c.b16 %v901, %v899
    %v1296 = vpack.c.b16 %v902, %v900
    %v1297 = vpack.c.b16 %v905, %v903
    %v1298 = vpack.c.b16 %v906, %v904
    %v1299 = vpack.c.b16 %v909, %v907
    %v1300 = vpack.c.b16 %v910, %v908
    %v1301 = vpack.c.b16 %v913, %v911
    %v1302 = vpack.c.b16 %v914, %v912
    %v1303 = vpack.c.b16 %v917, %v915
    %v1304 = vpack.c.b16 %v918, %v916
    %v1305 = vpack.c.b16 %v921, %v919
    %v1306 = vpack.c.b16 %v922, %v920
    %v1307 = vpack.c.b16 %v925, %v923
    %v1308 = vpack.c.b16 %v926, %v924
    %v1309 = vpack.c.b16 %v929, %v927
    %v1310 = vpack.c.b16 %v930, %v928
    %v1311 = vpack.c.b16 %v933, %v931
    %v1312 = vpack.c.b16 %v934, %v932
    %v1313 = vpack.c.b16 %v937, %v935
    %v1314 = vpack.c.b16 %v938, %v936
    %v1315 = vpack.c.b16 %v941, %v939
    %v1316 = vpack.c.b16 %v942, %v940
    %v1317 = vpack.c.b16 %v945, %v943
    %v1318 = vpack.c.b16 %v946, %v944
    %v1319 = vpack.c.b16 %v949, %v947
    %v1320 = vpack.c.b16 %v950, %v948
    %v1321 = vpack.c.b16 %v953, %v951
    %v1322 = vpack.c.b16 %v954, %v952
    %v1323 = vpack.c.b16 %v957, %v955
    %v1324 = vpack.c.b16 %v958, %v956
    %v1325 = vpack.c.b16 %v961, %v959
    %v1326 = vpack.c.b16 %v962, %v960
    %v1327 = vpack.c.b16 %v965, %v963
    %v1328 = vpack.c.b16 %v966, %v964
    %v1329 = vpack.c.b16 %v969, %v967
    %v1330 = vpack.c.b16 %v970, %v968
    %v1331 = vpack.c.b16 %v973, %v971
    %v1332 = vpack.c.b16 %v974, %v972
    %v1333 = vpack.c.b16 %v977, %v975
    %v1334 = vpack.c.b16 %v978, %v976
    %v1335 = vpack.c.b16 %v981, %v979
    %v1336 = vpack.c.b16 %v982, %v980
    %v1337 = vpack.c.b16 %v985, %v983
    %v1338 = vpack.c.b16 %v986, %v984
    %v1339 = vpack.c.b16 %v989, %v987
    %v1340 = vpack.c.b16 %v990, %v988
    %v1341 = vpack.c.b16 %v993, %v991
    %v1342 = vpack.c.b16 %v994, %v992
    %v1343 = vpack.c.b16 %v997, %v995
    %v1344 = vpack.c.b16 %v998, %v996
    %v1345 = vpack.c.b16 %v1001, %v999
    %v1346 = vpack.c.b16 %v1002, %v1000
    %v1347 = vpack.c.b16 %v1005, %v1003
    %v1348 = vpack.c.b16 %v1006, %v1004
    %v1349 = vpack.c.b16 %v1009, %v1007
    %v1350 = vpack.c.b16 %v1010, %v1008
    %v1351 = vpack.c.b16 %v1013, %v1011
    %v1352 = vpack.c.b16 %v1014, %v1012
    %v1353 = vpack.c.b16 %v1017, %v1015
    %v1354 = vpack.c.b16 %v1018, %v1016
    %v1355 = vpack.c.b16 %v1021, %v1019
    %v1356 = vpack.c.b16 %v1022, %v1020
    %v1357 = vpack.c.b16 %v1025, %v1023
    %v1358 = vpack.c.b16 %v1026, %v1024
    %v1359 = vpack.c.b16 %v1029, %v1027
    %v1360 = vpack.c.b16 %v1030, %v1028
    %v1361 = vpack.c.b16 %v1033, %v1031
    %v1362 = vpack.c.b16 %v1034, %v1032
    %v1363 = vpack.c.b16 %v1037, %v1035
    %v1364 = vpack.c.b16 %v1038, %v1036
    %v1365 = vpack.c.b16 %v1041, %v1039
    %v1366 = vpack.c.b16 %v1042, %v1040
    %v1367 = vpack.c.b16 %v1045, %v1043
    %v1368 = vpack.c.b16 %v1046, %v1044
    %v1369 = vpack.c.b16 %v1049, %v1047
    %v1370 = vpack.c.b16 %v1050, %v1048
    %v1371 = vpack.c.b16 %v1053, %v1051
    %v1372 = vpack.c.b16 %v1054, %v1052
    %v1373 = vpack.c.b16 %v1057, %v1055
    %v1374 = vpack.c.b16 %v1058, %v1056
    %v1375 = vpack.c.b16 %v1061, %v1059
    %v1376 = vpack.c.b16 %v1062, %v1060
    %v1377 = vpack.c.b16 %v1065, %v1063
    %v1378 = vpack.c.b16 %v1066, %v1064
    %v1379 = vpack.c.b16 %v1069, %v1067
    %v1380 = vpack.c.b16 %v1070, %v1068
    %v1381 = vpack.c.b16 %v1073, %v1071
    %v1382 = vpack.c.b16 %v1074, %v1072
    %v1383 = vpack.c.b16 %v1077, %v1075
    %v1384 = vpack.c.b16 %v1078, %v1076
    %v1385 = vpack.c.b16 %v1081, %v1079
    %v1386 = vpack.c.b16 %v1082, %v1080
    %v1387 = vpack.c.b16 %v1085, %v1083
    %v1388 = vpack.c.b16 %v1086, %v1084
    %v1389 = vpack.c.b16 %v1089, %v1087
    %v1390 = vpack.c.b16 %v1090, %v1088
    %v1391 = vpack.c.b16 %v1093, %v1091
    %v1392 = vpack.c.b16 %v1094, %v1092
    %v1393 = vpack.c.b16 %v1097, %v1095
    %v1394 = vpack.c.b16 %v1098, %v1096
    %v1395 = vpack.c.b16 %v1101, %v1099
    %v1396 = vpack.c.b16 %v1102, %v1100
    %v1397 = vpack.c.b16 %v1105, %v1103
    %v1398 = vpack.c.b16 %v1106, %v1104
    %v1399 = vpack.c.b16 %v1109, %v1107
    %v1400 = vpack.c.b16 %v1110, %v1108
    %v1401 = vpack.c.b16 %v1113, %v1111
    %v1402 = vpack.c.b16 %v1114, %v1112
    %v1403 = vpack.c.b16 %v1117, %v1115
    %v1404 = vpack.c.b16 %v1118, %v1116
    %v1405 = vpack.c.b16 %v1121, %v1119
    %v1406 = vpack.c.b16 %v1122, %v1120
    %v1407 = vpack.c.b16 %v1125, %v1123
    %v1408 = vpack.c.b16 %v1126, %v1124
    %v1409 = vpack.c.b16 %v1129, %v1127
    %v1410 = vpack.c.b16 %v1130, %v1128
    %v1411 = vpack.c.b16 %v1133, %v1131
    %v1412 = vpack.c.b16 %v1134, %v1132
    %v1413 = vpack.c.b16 %v1137, %v1135
    %v1414 = vpack.c.b16 %v1138, %v1136
    %v1415 = vpack.c.b16 %v1141, %v1139
    %v1416 = vpack.c.b16 %v1142, %v1140
    %v1417 = vpack.c.b16 %v1145, %v1143
    %v1418 = vpack.c.b16 %v1146, %v1144
    %v1419 = vpack.c.b16 %v1149, %v1147
    %v1420 = vpack.c.b16 %v1150, %v1148
    %v1421 = vpack.c.b16 %v1153, %v1151
    %v1422 = vpack.c.b16 %v1154, %v1152
    %v1423 = vpack.c.b16 %v1157, %v1155
    %v1424 = vpack.c.b16 %v1158, %v1156
    %v1425 = vpack.c.b16 %v1161, %v1159
    %v1426 = vpack.c.b16 %v1162, %v1160
    %v1427 = vpack.c.b16 %v1165, %v1163
    %v1428 = vpack.c.b16 %v1166, %v1164
    %v1429 = vpack.c.b16 %v1169, %v1167
    %v1430 = vpack.c.b16 %v1170, %v1168
    %v1431 = vpack.c.b16 %v1173, %v1171
    %v1432 = vpack.c.b16 %v1174, %v1172
    %v1433 = vpack.c.b16 %v1177, %v1175
    %v1434 = vpack.c.b16 %v1178, %v1176
    %1691 = vmatprep.subr.bf16.mxu0 %v1180
    %1692 = vmatpush1.bf16.msra.mxu0 %v1179
    %1693 = vmatprep.subr.bf16.mxu0 %v1182
    %1694 = vmatpush1.bf16.msra.mxu0 %v1181
    %1695 = vmatprep.subr.bf16.mxu0 %v1184
    %1696 = vmatpush1.bf16.msra.mxu0 %v1183
    %1697 = vmatprep.subr.bf16.mxu0 %v1186
    %1698 = vmatpush1.bf16.msra.mxu0 %v1185
    %1699 = vmatprep.subr.bf16.mxu0 %v1188
    %1700 = vmatpush1.bf16.msra.mxu0 %v1187
    %1701 = vmatprep.subr.bf16.mxu0 %v1190
    %1702 = vmatpush1.bf16.msra.mxu0 %v1189
    %1703 = vmatprep.subr.bf16.mxu0 %v1192
    %1704 = vmatpush1.bf16.msra.mxu0 %v1191
    %1705 = vmatprep.subr.bf16.mxu0 %v1194
    %1706 = vmatpush1.bf16.msra.mxu0 %v1193
    %1707 = vmatprep.subr.bf16.mxu0 %v1196
    %1708 = vmatpush1.bf16.msra.mxu0 %v1195
    %1709 = vmatprep.subr.bf16.mxu0 %v1198
    %1710 = vmatpush1.bf16.msra.mxu0 %v1197
    %1711 = vmatprep.subr.bf16.mxu0 %v1200
    %1712 = vmatpush1.bf16.msra.mxu0 %v1199
    %1713 = vmatprep.subr.bf16.mxu0 %v1202
    %1714 = vmatpush1.bf16.msra.mxu0 %v1201
    %1715 = vmatprep.subr.bf16.mxu0 %v1204
    %1716 = vmatpush1.bf16.msra.mxu0 %v1203
    %1717 = vmatprep.subr.bf16.mxu0 %v1206
    %1718 = vmatpush1.bf16.msra.mxu0 %v1205
    %1719 = vmatprep.subr.bf16.mxu0 %v1208
    %1720 = vmatpush1.bf16.msra.mxu0 %v1207
    %1721 = vmatprep.subr.bf16.mxu0 %v1210
    %1722 = vmatpush1.bf16.msra.mxu0 %v1209
    %1723 = vmatprep.mubr.bf16.mxu0 %v334
    %1724 = vmatmul.mubr.bf16.gmra.mrb[0].mxu0 %v320
    %v1725 = vpop.f32.mrb[0].mxu0
    %v1726 = vadd.f32 %v288, %v1725
    %v1727 = vpop.f32.mrb[0].mxu0
    %v1728 = vadd.f32 %v292, %v1727
    %v1729 = vpop.f32.mrb[0].mxu0
    %v1730 = vpop.f32.mrb[0].mxu0
    %1731 = vdwg.mxu0
    %1732 = vmatprep.subr.bf16.mxu0 %v1212
    %1733 = vmatpush1.bf16.msra.mxu0 %v1211
    %1734 = vmatprep.subr.bf16.mxu0 %v1214
    %1735 = vmatpush1.bf16.msra.mxu0 %v1213
    %1736 = vmatprep.subr.bf16.mxu0 %v1216
    %1737 = vmatpush1.bf16.msra.mxu0 %v1215
    %1738 = vmatprep.subr.bf16.mxu0 %v1218
    %1739 = vmatpush1.bf16.msra.mxu0 %v1217
    %1740 = vmatprep.subr.bf16.mxu0 %v1220
    %1741 = vmatpush1.bf16.msra.mxu0 %v1219
    %1742 = vmatprep.subr.bf16.mxu0 %v1222
    %1743 = vmatpush1.bf16.msra.mxu0 %v1221
    %1744 = vmatprep.subr.bf16.mxu0 %v1224
    %1745 = vmatpush1.bf16.msra.mxu0 %v1223
    %1746 = vmatprep.subr.bf16.mxu0 %v1226
    %1747 = vmatpush1.bf16.msra.mxu0 %v1225
    %1748 = vmatprep.subr.bf16.mxu0 %v1228
    %1749 = vmatpush1.bf16.msra.mxu0 %v1227
    %1750 = vmatprep.subr.bf16.mxu0 %v1230
    %1751 = vmatpush1.bf16.msra.mxu0 %v1229
    %1752 = vmatprep.subr.bf16.mxu0 %v1232
    %1753 = vmatpush1.bf16.msra.mxu0 %v1231
    %1754 = vmatprep.subr.bf16.mxu0 %v1234
    %1755 = vmatpush1.bf16.msra.mxu0 %v1233
    %1756 = vmatprep.subr.bf16.mxu0 %v1236
    %1757 = vmatpush1.bf16.msra.mxu0 %v1235
    %1758 = vmatprep.subr.bf16.mxu0 %v1238
    %1759 = vmatpush1.bf16.msra.mxu0 %v1237
    %1760 = vmatprep.subr.bf16.mxu0 %v1240
    %1761 = vmatpush1.bf16.msra.mxu0 %v1239
    %1762 = vmatprep.subr.bf16.mxu0 %v1242
    %1763 = vmatpush1.bf16.msra.mxu0 %v1241
    %1764 = vmatprep.mubr.bf16.mxu0 %v344
    %1765 = vmatmul.mubr.bf16.gmra.mrb[0].mxu0 %v342
    %v1766 = vpop.f32.mrb[0].mxu0
    %v1767 = vadd.f32 %v1726, %v1766
    %v1768 = vpop.f32.mrb[0].mxu0
    %v1769 = vadd.f32 %v1728, %v1768
    %v1770 = vpop.f32.mrb[0].mxu0
    %v1771 = vpop.f32.mrb[0].mxu0
    %1772 = vdwg.mxu0
    %1773 = vmatprep.subr.bf16.mxu0 %v1244
    %1774 = vmatpush1.bf16.msra.mxu0 %v1243
    %1775 = vmatprep.subr.bf16.mxu0 %v1246
    %1776 = vmatpush1.bf16.msra.mxu0 %v1245
    %1777 = vmatprep.subr.bf16.mxu0 %v1248
    %1778 = vmatpush1.bf16.msra.mxu0 %v1247
    %1779 = vmatprep.subr.bf16.mxu0 %v1250
    %1780 = vmatpush1.bf16.msra.mxu0 %v1249
    %1781 = vmatprep.subr.bf16.mxu0 %v1252
    %1782 = vmatpush1.bf16.msra.mxu0 %v1251
    %1783 = vmatprep.subr.bf16.mxu0 %v1254
    %1784 = vmatpush1.bf16.msra.mxu0 %v1253
    %1785 = vmatprep.subr.bf16.mxu0 %v1256
    %1786 = vmatpush1.bf16.msra.mxu0 %v1255
    %1787 = vmatprep.subr.bf16.mxu0 %v1258
    %1788 = vmatpush1.bf16.msra.mxu0 %v1257
    %1789 = vmatprep.subr.bf16.mxu0 %v1260
    %1790 = vmatpush1.bf16.msra.mxu0 %v1259
    %1791 = vmatprep.subr.bf16.mxu0 %v1262
    %1792 = vmatpush1.bf16.msra.mxu0 %v1261
    %1793 = vmatprep.subr.bf16.mxu0 %v1264
    %1794 = vmatpush1.bf16.msra.mxu0 %v1263
    %1795 = vmatprep.subr.bf16.mxu0 %v1266
    %1796 = vmatpush1.bf16.msra.mxu0 %v1265
    %1797 = vmatprep.subr.bf16.mxu0 %v1268
    %1798 = vmatpush1.bf16.msra.mxu0 %v1267
    %1799 = vmatprep.subr.bf16.mxu0 %v1270
    %1800 = vmatpush1.bf16.msra.mxu0 %v1269
    %1801 = vmatprep.subr.bf16.mxu0 %v1272
    %1802 = vmatpush1.bf16.msra.mxu0 %v1271
    %1803 = vmatprep.subr.bf16.mxu0 %v1274
    %1804 = vmatpush1.bf16.msra.mxu0 %v1273
    %1805 = vmatprep.mubr.bf16.mxu0 %v341
    %1806 = vmatmul.mubr.bf16.gmra.mrb[0].mxu0 %v327
    %v1807 = vpop.f32.mrb[0].mxu0
    %v1808 = vadd.f32 %v1767, %v1807
    %v1809 = vpop.f32.mrb[0].mxu0
    %v1810 = vadd.f32 %v1769, %v1809
    %v1811 = vpop.f32.mrb[0].mxu0
    %v1812 = vpop.f32.mrb[0].mxu0
    %1813 = vdwg.mxu0
    %1814 = vmatprep.subr.bf16.mxu0 %v1276
    %1815 = vmatpush1.bf16.msra.mxu0 %v1275
    %1816 = vmatprep.subr.bf16.mxu0 %v1278
    %1817 = vmatpush1.bf16.msra.mxu0 %v1277
    %1818 = vmatprep.subr.bf16.mxu0 %v1280
    %1819 = vmatpush1.bf16.msra.mxu0 %v1279
    %1820 = vmatprep.subr.bf16.mxu0 %v1282
    %1821 = vmatpush1.bf16.msra.mxu0 %v1281
    %1822 = vmatprep.subr.bf16.mxu0 %v1284
    %1823 = vmatpush1.bf16.msra.mxu0 %v1283
    %1824 = vmatprep.subr.bf16.mxu0 %v1286
    %1825 = vmatpush1.bf16.msra.mxu0 %v1285
    %1826 = vmatprep.subr.bf16.mxu0 %v1288
    %1827 = vmatpush1.bf16.msra.mxu0 %v1287
    %1828 = vmatprep.subr.bf16.mxu0 %v1290
    %1829 = vmatpush1.bf16.msra.mxu0 %v1289
    %1830 = vmatprep.subr.bf16.mxu0 %v1292
    %1831 = vmatpush1.bf16.msra.mxu0 %v1291
    %1832 = vmatprep.subr.bf16.mxu0 %v1294
    %1833 = vmatpush1.bf16.msra.mxu0 %v1293
    %1834 = vmatprep.subr.bf16.mxu0 %v1296
    %1835 = vmatpush1.bf16.msra.mxu0 %v1295
    %1836 = vmatprep.subr.bf16.mxu0 %v1298
    %1837 = vmatpush1.bf16.msra.mxu0 %v1297
    %1838 = vmatprep.subr.bf16.mxu0 %v1300
    %1839 = vmatpush1.bf16.msra.mxu0 %v1299
    %1840 = vmatprep.subr.bf16.mxu0 %v1302
    %1841 = vmatpush1.bf16.msra.mxu0 %v1301
    %1842 = vmatprep.subr.bf16.mxu0 %v1304
    %1843 = vmatpush1.bf16.msra.mxu0 %v1303
    %1844 = vmatprep.subr.bf16.mxu0 %v1306
    %1845 = vmatpush1.bf16.msra.mxu0 %v1305
    %1846 = vmatprep.mubr.bf16.mxu0 %v345
    %1847 = vmatmul.mubr.bf16.gmra.mrb[0].mxu0 %v343
    %v1848 = vpop.f32.mrb[0].mxu0
    %v1849 = vadd.f32 %v1808, %v1848
    %v1850 = vpop.f32.mrb[0].mxu0
    %v1851 = vadd.f32 %v1810, %v1850
    %v1852 = vpop.f32.mrb[0].mxu0
    %v1853 = vpop.f32.mrb[0].mxu0
    %1854 = vdwg.mxu0
    %1855 = vmatprep.subr.bf16.mxu0 %v1308
    %1856 = vmatpush1.bf16.msra.mxu0 %v1307
    %1857 = vmatprep.subr.bf16.mxu0 %v1310
    %1858 = vmatpush1.bf16.msra.mxu0 %v1309
    %1859 = vmatprep.subr.bf16.mxu0 %v1312
    %1860 = vmatpush1.bf16.msra.mxu0 %v1311
    %1861 = vmatprep.subr.bf16.mxu0 %v1314
    %1862 = vmatpush1.bf16.msra.mxu0 %v1313
    %1863 = vmatprep.subr.bf16.mxu0 %v1316
    %1864 = vmatpush1.bf16.msra.mxu0 %v1315
    %1865 = vmatprep.subr.bf16.mxu0 %v1318
    %1866 = vmatpush1.bf16.msra.mxu0 %v1317
    %1867 = vmatprep.subr.bf16.mxu0 %v1320
    %1868 = vmatpush1.bf16.msra.mxu0 %v1319
    %1869 = vmatprep.subr.bf16.mxu0 %v1322
    %1870 = vmatpush1.bf16.msra.mxu0 %v1321
    %1871 = vmatprep.subr.bf16.mxu0 %v1324
    %1872 = vmatpush1.bf16.msra.mxu0 %v1323
    %1873 = vmatprep.subr.bf16.mxu0 %v1326
    %1874 = vmatpush1.bf16.msra.mxu0 %v1325
    %1875 = vmatprep.subr.bf16.mxu0 %v1328
    %1876 = vmatpush1.bf16.msra.mxu0 %v1327
    %1877 = vmatprep.subr.bf16.mxu0 %v1330
    %1878 = vmatpush1.bf16.msra.mxu0 %v1329
    %1879 = vmatprep.subr.bf16.mxu0 %v1332
    %1880 = vmatpush1.bf16.msra.mxu0 %v1331
    %1881 = vmatprep.subr.bf16.mxu0 %v1334
    %1882 = vmatpush1.bf16.msra.mxu0 %v1333
    %1883 = vmatprep.subr.bf16.mxu0 %v1336
    %1884 = vmatpush1.bf16.msra.mxu0 %v1335
    %1885 = vmatprep.subr.bf16.mxu0 %v1338
    %1886 = vmatpush1.bf16.msra.mxu0 %v1337
    %1887 = vmatprep.mubr.bf16.mxu0 %v383
    %1888 = vmatmul.mubr.bf16.gmra.mrb[0].mxu0 %v369
    %v1889 = vpop.f32.mrb[0].mxu0
    %v1890 = vadd.f32 %v1849, %v1889
    %v1891 = vpop.f32.mrb[0].mxu0
    %v1892 = vadd.f32 %v1851, %v1891
    %v1893 = vpop.f32.mrb[0].mxu0
    %v1894 = vpop.f32.mrb[0].mxu0
    %1895 = vdwg.mxu0
    %1896 = vmatprep.subr.bf16.mxu0 %v1340
    %1897 = vmatpush1.bf16.msra.mxu0 %v1339
    %1898 = vmatprep.subr.bf16.mxu0 %v1342
    %1899 = vmatpush1.bf16.msra.mxu0 %v1341
    %1900 = vmatprep.subr.bf16.mxu0 %v1344
    %1901 = vmatpush1.bf16.msra.mxu0 %v1343
    %1902 = vmatprep.subr.bf16.mxu0 %v1346
    %1903 = vmatpush1.bf16.msra.mxu0 %v1345
    %1904 = vmatprep.subr.bf16.mxu0 %v1348
    %1905 = vmatpush1.bf16.msra.mxu0 %v1347
    %1906 = vmatprep.subr.bf16.mxu0 %v1350
    %1907 = vmatpush1.bf16.msra.mxu0 %v1349
    %1908 = vmatprep.subr.bf16.mxu0 %v1352
    %1909 = vmatpush1.bf16.msra.mxu0 %v1351
    %1910 = vmatprep.subr.bf16.mxu0 %v1354
    %1911 = vmatpush1.bf16.msra.mxu0 %v1353
    %1912 = vmatprep.subr.bf16.mxu0 %v1356
    %1913 = vmatpush1.bf16.msra.mxu0 %v1355
    %1914 = vmatprep.subr.bf16.mxu0 %v1358
    %1915 = vmatpush1.bf16.msra.mxu0 %v1357
    %1916 = vmatprep.subr.bf16.mxu0 %v1360
    %1917 = vmatpush1.bf16.msra.mxu0 %v1359
    %1918 = vmatprep.subr.bf16.mxu0 %v1362
    %1919 = vmatpush1.bf16.msra.mxu0 %v1361
    %1920 = vmatprep.subr.bf16.mxu0 %v1364
    %1921 = vmatpush1.bf16.msra.mxu0 %v1363
    %1922 = vmatprep.subr.bf16.mxu0 %v1366
    %1923 = vmatpush1.bf16.msra.mxu0 %v1365
    %1924 = vmatprep.subr.bf16.mxu0 %v1368
    %1925 = vmatpush1.bf16.msra.mxu0 %v1367
    %1926 = vmatprep.subr.bf16.mxu0 %v1370
    %1927 = vmatpush1.bf16.msra.mxu0 %v1369
    %1928 = vmatprep.mubr.bf16.mxu0 %v393
    %1929 = vmatmul.mubr.bf16.gmra.mrb[0].mxu0 %v391
    %v1930 = vpop.f32.mrb[0].mxu0
    %v1931 = vadd.f32 %v1890, %v1930
    %v1932 = vpop.f32.mrb[0].mxu0
    %v1933 = vadd.f32 %v1892, %v1932
    %v1934 = vpop.f32.mrb[0].mxu0
    %v1935 = vpop.f32.mrb[0].mxu0
    %1936 = vdwg.mxu0
    %1937 = vmatprep.subr.bf16.mxu0 %v1372
    %1938 = vmatpush1.bf16.msra.mxu0 %v1371
    %1939 = vmatprep.subr.bf16.mxu0 %v1374
    %1940 = vmatpush1.bf16.msra.mxu0 %v1373
    %1941 = vmatprep.subr.bf16.mxu0 %v1376
    %1942 = vmatpush1.bf16.msra.mxu0 %v1375
    %1943 = vmatprep.subr.bf16.mxu0 %v1378
    %1944 = vmatpush1.bf16.msra.mxu0 %v1377
    %1945 = vmatprep.subr.bf16.mxu0 %v1380
    %1946 = vmatpush1.bf16.msra.mxu0 %v1379
    %1947 = vmatprep.subr.bf16.mxu0 %v1382
    %1948 = vmatpush1.bf16.msra.mxu0 %v1381
    %1949 = vmatprep.subr.bf16.mxu0 %v1384
    %1950 = vmatpush1.bf16.msra.mxu0 %v1383
    %1951 = vmatprep.subr.bf16.mxu0 %v1386
    %1952 = vmatpush1.bf16.msra.mxu0 %v1385
    %1953 = vmatprep.subr.bf16.mxu0 %v1388
    %1954 = vmatpush1.bf16.msra.mxu0 %v1387
    %1955 = vmatprep.subr.bf16.mxu0 %v1390
    %1956 = vmatpush1.bf16.msra.mxu0 %v1389
    %1957 = vmatprep.subr.bf16.mxu0 %v1392
    %1958 = vmatpush1.bf16.msra.mxu0 %v1391
    %1959 = vmatprep.subr.bf16.mxu0 %v1394
    %1960 = vmatpush1.bf16.msra.mxu0 %v1393
    %1961 = vmatprep.subr.bf16.mxu0 %v1396
    %1962 = vmatpush1.bf16.msra.mxu0 %v1395
    %1963 = vmatprep.subr.bf16.mxu0 %v1398
    %1964 = vmatpush1.bf16.msra.mxu0 %v1397
    %1965 = vmatprep.subr.bf16.mxu0 %v1400
    %1966 = vmatpush1.bf16.msra.mxu0 %v1399
    %1967 = vmatprep.subr.bf16.mxu0 %v1402
    %1968 = vmatpush1.bf16.msra.mxu0 %v1401
    %1969 = vmatprep.mubr.bf16.mxu0 %v390
    %1970 = vmatmul.mubr.bf16.gmra.mrb[0].mxu0 %v376
    %v1971 = vpop.f32.mrb[0].mxu0
    %v1972 = vadd.f32 %v1931, %v1971
    %v1973 = vpop.f32.mrb[0].mxu0
    %v1974 = vadd.f32 %v1933, %v1973
    %v1975 = vpop.f32.mrb[0].mxu0
    %v1976 = vpop.f32.mrb[0].mxu0
    %1977 = vdwg.mxu0
    %1978 = vmatprep.subr.bf16.mxu0 %v1404
    %1979 = vmatpush1.bf16.msra.mxu0 %v1403
    %1980 = vmatprep.subr.bf16.mxu0 %v1406
    %1981 = vmatpush1.bf16.msra.mxu0 %v1405
    %1982 = vmatprep.subr.bf16.mxu0 %v1408
    %1983 = vmatpush1.bf16.msra.mxu0 %v1407
    %1984 = vmatprep.subr.bf16.mxu0 %v1410
    %1985 = vmatpush1.bf16.msra.mxu0 %v1409
    %1986 = vmatprep.subr.bf16.mxu0 %v1412
    %1987 = vmatpush1.bf16.msra.mxu0 %v1411
    %1988 = vmatprep.subr.bf16.mxu0 %v1414
    %1989 = vmatpush1.bf16.msra.mxu0 %v1413
    %1990 = vmatprep.subr.bf16.mxu0 %v1416
    %1991 = vmatpush1.bf16.msra.mxu0 %v1415
    %1992 = vmatprep.subr.bf16.mxu0 %v1418
    %1993 = vmatpush1.bf16.msra.mxu0 %v1417
    %1994 = vmatprep.subr.bf16.mxu0 %v1420
    %1995 = vmatpush1.bf16.msra.mxu0 %v1419
    %1996 = vmatprep.subr.bf16.mxu0 %v1422
    %1997 = vmatpush1.bf16.msra.mxu0 %v1421
    %1998 = vmatprep.subr.bf16.mxu0 %v1424
    %1999 = vmatpush1.bf16.msra.mxu0 %v1423
    %2000 = vmatprep.subr.bf16.mxu0 %v1426
    %2001 = vmatpush1.bf16.msra.mxu0 %v1425
    %2002 = vmatprep.subr.bf16.mxu0 %v1428
    %2003 = vmatpush1.bf16.msra.mxu0 %v1427
    %2004 = vmatprep.subr.bf16.mxu0 %v1430
    %2005 = vmatpush1.bf16.msra.mxu0 %v1429
    %2006 = vmatprep.subr.bf16.mxu0 %v1432
    %2007 = vmatpush1.bf16.msra.mxu0 %v1431
    %2008 = vmatprep.subr.bf16.mxu0 %v1434
    %2009 = vmatpush1.bf16.msra.mxu0 %v1433
    %2010 = vmatprep.mubr.bf16.mxu0 %v394
    %2011 = vmatmul.mubr.bf16.gmra.mrb[0].mxu0 %v392
    %v2012 = vpop.f32.mrb[0].mxu0
    %v2013 = vadd.f32 %v1972, %v2012
    %v2014 = vpop.f32.mrb[0].mxu0
    %v2015 = vadd.f32 %v1974, %v2014
    %v2016 = vpop.f32.mrb[0].mxu0
    %v2017 = vpop.f32.mrb[0].mxu0
    %2018 = vdwg.mxu0
    %v2019 = vmax.f32 %v2013, 0.0
    %v2020 = vmax.f32 %v2015, 0.0
    %v2023 = vcombine.low %v2019, %v2020
    %v2025 = vunpack.c.l.s4 1983009808
    %v2026 = vunpack.c.0.s8 %v2025
    %v2027 = vlaneseq
    %v2028 = vshrl.u32 %v2027, 7
    %v2029 = vsub.s32 %v2026, %v2028
    %v2030 = vrot.slane %v2023, %v2029
    %2032 = vst [vmem:[#allocation2] sm:$0xf] %v2030
    %v2033 = vpack.c.bf16 %v2019, %v2019
    %v2034 = vpack.c.bf16 %v2020, %v2020
    %v2035 = vld [vmem:[%s3] sm:$0xf]
    %v2036 = vld [vmem:[%s3 + $0x4] sm:$0xf]
    %v2037 = vld [vmem:[%s3 + $0x8] sm:$0xf]
    %v2038 = vld [vmem:[%s3 + $0xc] sm:$0xf]
    %v2039 = vld [vmem:[%s3 + $0x10] sm:$0xf]
    %v2040 = vld [vmem:[%s3 + $0x14] sm:$0xf]
    %v2041 = vld [vmem:[%s3 + $0x18] sm:$0xf]
    %v2042 = vld [vmem:[%s3 + $0x1c] sm:$0xf]
    %v2043 = vld [vmem:[%s3 + $0x20] sm:$0xf]
    %v2044 = vld [vmem:[%s3 + $0x24] sm:$0xf]
    %v2045 = vld [vmem:[%s3 + $0x28] sm:$0xf]
    %v2046 = vld [vmem:[%s3 + $0x2c] sm:$0xf]
    %v2047 = vld [vmem:[%s3 + $0x30] sm:$0xf]
    %v2048 = vld [vmem:[%s3 + $0x34] sm:$0xf]
    %v2049 = vld [vmem:[%s3 + $0x38] sm:$0xf]
    %v2050 = vld [vmem:[%s3 + $0x3c] sm:$0xf]
    %v2051 = vld [vmem:[%s3 + $0x40] sm:$0xf]
    %v2052 = vld [vmem:[%s3 + $0x44] sm:$0xf]
    %v2053 = vld [vmem:[%s3 + $0x48] sm:$0xf]
    %v2054 = vld [vmem:[%s3 + $0x4c] sm:$0xf]
    %v2055 = vld [vmem:[%s3 + $0x50] sm:$0xf]
    %v2056 = vld [vmem:[%s3 + $0x54] sm:$0xf]
    %v2057 = vld [vmem:[%s3 + $0x58] sm:$0xf]
    %v2058 = vld [vmem:[%s3 + $0x5c] sm:$0xf]
    %v2059 = vld [vmem:[%s3 + $0x60] sm:$0xf]
    %v2060 = vld [vmem:[%s3 + $0x64] sm:$0xf]
    %v2061 = vld [vmem:[%s3 + $0x68] sm:$0xf]
    %v2062 = vld [vmem:[%s3 + $0x6c] sm:$0xf]
    %v2063 = vld [vmem:[%s3 + $0x70] sm:$0xf]
    %v2064 = vld [vmem:[%s3 + $0x74] sm:$0xf]
    %v2065 = vld [vmem:[%s3 + $0x78] sm:$0xf]
    %v2066 = vld [vmem:[%s3 + $0x7c] sm:$0xf]
    %v2067 = vld [vmem:[%s4] sm:$0x1]
    %v2069 = vlaneseq
    %v2070 = vshrl.u32 %v2069, 7
    %v2071 = vsub.s32 0, %v2070
    %v2072 = vrot.slane %v2067, %v2071
    %v2106 = vunpack.c.l.b16 %v2035
    %v2107 = vunpack.c.l.b16 %v2036
    %v2108 = vunpack.c.l.b16 %v2037
    %v2109 = vunpack.c.l.b16 %v2038
    %v2110 = vunpack.c.l.b16 %v2039
    %v2111 = vunpack.c.l.b16 %v2040
    %v2112 = vunpack.c.l.b16 %v2041
    %v2113 = vunpack.c.l.b16 %v2042
    %v2114 = vunpack.c.l.b16 %v2043
    %v2115 = vunpack.c.l.b16 %v2044
    %v2116 = vunpack.c.l.b16 %v2045
    %v2117 = vunpack.c.l.b16 %v2046
    %v2118 = vunpack.c.l.b16 %v2047
    %v2119 = vunpack.c.l.b16 %v2048
    %v2120 = vunpack.c.l.b16 %v2049
    %v2121 = vunpack.c.l.b16 %v2050
    %v2122 = vunpack.c.l.b16 %v2051
    %v2123 = vunpack.c.l.b16 %v2052
    %v2124 = vunpack.c.l.b16 %v2053
    %v2125 = vunpack.c.l.b16 %v2054
    %v2126 = vunpack.c.l.b16 %v2055
    %v2127 = vunpack.c.l.b16 %v2056
    %v2128 = vunpack.c.l.b16 %v2057
    %v2129 = vunpack.c.l.b16 %v2058
    %v2130 = vunpack.c.l.b16 %v2059
    %v2131 = vunpack.c.l.b16 %v2060
    %v2132 = vunpack.c.l.b16 %v2061
    %v2133 = vunpack.c.l.b16 %v2062
    %v2134 = vunpack.c.l.b16 %v2063
    %v2135 = vunpack.c.l.b16 %v2064
    %v2136 = vunpack.c.l.b16 %v2065
    %v2137 = vunpack.c.l.b16 %v2066
    %v2138 = vpack.c.b16 %v2107, %v2106
    %v2139 = vpack.c.b16 %v2109, %v2108
    %v2140 = vpack.c.b16 %v2111, %v2110
    %v2141 = vpack.c.b16 %v2113, %v2112
    %v2142 = vpack.c.b16 %v2115, %v2114
    %v2143 = vpack.c.b16 %v2117, %v2116
    %v2144 = vpack.c.b16 %v2119, %v2118
    %v2145 = vpack.c.b16 %v2121, %v2120
    %v2146 = vpack.c.b16 %v2123, %v2122
    %v2147 = vpack.c.b16 %v2125, %v2124
    %v2148 = vpack.c.b16 %v2127, %v2126
    %v2149 = vpack.c.b16 %v2129, %v2128
    %v2150 = vpack.c.b16 %v2131, %v2130
    %v2151 = vpack.c.b16 %v2133, %v2132
    %v2152 = vpack.c.b16 %v2135, %v2134
    %v2153 = vpack.c.b16 %v2137, %v2136
    %2170 = vmatprep.subr.bf16.mxu0 0
    %2171 = vmatpush1.bf16.msra.mxu0 %v2138
    %2172 = vmatprep.subr.bf16.mxu0 0
    %2173 = vmatpush1.bf16.msra.mxu0 %v2139
    %2174 = vmatprep.subr.bf16.mxu0 0
    %2175 = vmatpush1.bf16.msra.mxu0 %v2140
    %2176 = vmatprep.subr.bf16.mxu0 0
    %2177 = vmatpush1.bf16.msra.mxu0 %v2141
    %2178 = vmatprep.subr.bf16.mxu0 0
    %2179 = vmatpush1.bf16.msra.mxu0 %v2142
    %2180 = vmatprep.subr.bf16.mxu0 0
    %2181 = vmatpush1.bf16.msra.mxu0 %v2143
    %2182 = vmatprep.subr.bf16.mxu0 0
    %2183 = vmatpush1.bf16.msra.mxu0 %v2144
    %2184 = vmatprep.subr.bf16.mxu0 0
    %2185 = vmatpush1.bf16.msra.mxu0 %v2145
    %2186 = vmatprep.subr.bf16.mxu0 0
    %2187 = vmatpush1.bf16.msra.mxu0 %v2146
    %2188 = vmatprep.subr.bf16.mxu0 0
    %2189 = vmatpush1.bf16.msra.mxu0 %v2147
    %2190 = vmatprep.subr.bf16.mxu0 0
    %2191 = vmatpush1.bf16.msra.mxu0 %v2148
    %2192 = vmatprep.subr.bf16.mxu0 0
    %2193 = vmatpush1.bf16.msra.mxu0 %v2149
    %2194 = vmatprep.subr.bf16.mxu0 0
    %2195 = vmatpush1.bf16.msra.mxu0 %v2150
    %2196 = vmatprep.subr.bf16.mxu0 0
    %2197 = vmatpush1.bf16.msra.mxu0 %v2151
    %2198 = vmatprep.subr.bf16.mxu0 0
    %2199 = vmatpush1.bf16.msra.mxu0 %v2152
    %2200 = vmatprep.subr.bf16.mxu0 0
    %2201 = vmatpush1.bf16.msra.mxu0 %v2153
    %2202 = vmatprep.mubr.bf16.mxu0 %v2034
    %2203 = vmatmul.mubr.bf16.gmra.mrb[0].mxu0 %v2033
    %v2204 = vpop.f32.mrb[0].mxu0
    %v2205 = vadd.f32 %v2072, %v2204
    %v2206 = vpop.f32.mrb[0].mxu0
    %v2207 = vpop.f32.mrb[0].mxu0
    %v2208 = vpop.f32.mrb[0].mxu0
    %2209 = vdwg.mxu0
    %2210 = vst [vmem:[#allocation4] sm:$0x3] %v2205
    // Predicated region
    $region22: #{cnn_forward.3} parent=1 // pred_check
      _
    $region23: #{cnn_forward.3} parent=1 // pred_check_branch
      %2212 = sbr.rel (0) target = $region25
    $region24: #{cnn_forward.3} parent=1 // pred_region
      %s2214 = ssub.s32 64, 64
      %2215 = vsyncadd [#allocation3], %s2214
      %s2217 = sshll.u32 [#allocation2], 4
      %s2218 = int_to_ptr.vmem [resolvable:$true] %s2217
      %2220 = dma.vmem_to_hbm [thread:$0]  %s2218, 64, %s5, [#allocation3]
    $region25: #{cnn_forward.3} parent=1 // pred_fallthru
      _
    // Predicated region
    $region26: #{cnn_forward.3} parent=1 // pred_check
      _
    $region27: #{cnn_forward.3} parent=1 // pred_check_branch
      %2222 = sbr.rel (0) target = $region29
    $region28: #{cnn_forward.3} parent=1 // pred_region
      %s2224 = ssub.s32 32, 32
      %2225 = vsyncadd [#allocation5], %s2224
      %s2227 = sshll.u32 [#allocation4], 4
      %s2228 = int_to_ptr.vmem [resolvable:$true] %s2227
      %2230 = dma.vmem_to_hbm [thread:$0]  %s2228, 32, %s6, [#allocation5]
    $region29: #{cnn_forward.3} parent=1 // pred_fallthru
      _
    // Predicated region
    $region30: #{cnn_forward.3} parent=1 // pred_check
      _
    $region31: #{cnn_forward.3} parent=1 // pred_check_branch
      %2232 = sbr.rel (0) target = $region33
    $region32: #{cnn_forward.3} parent=1 // pred_region
      %2233 = dma.done [#allocation3], 64
    $region33: #{cnn_forward.3} parent=1 // pred_fallthru
      _
    // Predicated region
    $region34: #{cnn_forward.3} parent=1 // pred_check
      _
    $region35: #{cnn_forward.3} parent=1 // pred_check_branch
      %2235 = sbr.rel (0) target = $region37
    $region36: #{cnn_forward.3} parent=1 // pred_region
      %2236 = dma.done [#allocation5], 32
    $region37: #{cnn_forward.3} parent=1 // pred_fallthru
      _
    %2237 = vsyncpa [#allocation3], 1
    %2238 = vsyncpa [#allocation5], 1

// kernel: cnn_forward.2
$region0: #{cnn_forward.2}
  #allocation0 [shape = 'u32[]', space=smem, size = 0x4, offset = 0x4, fixed_abs, tag = 'smem constant byte address 0x4 - core index']
  #allocation1 [shape = 'u32[144,128]{1,0:T(1,128)}', space=vmem, size = 0x12000, scoped, tag = 'internal scratch']
  %s0 = inlined_call_operand.vmem [shape: bf16[1152,32], index: 0, kind: input, shape index: {}]
  %s1 = inlined_call_operand.vmem [shape: bf16[800,128], index: 1, kind: input, shape index: {}]
  %s2 = inlined_call_operand.vmem [shape: bf16[32,128], index: 2, kind: input, shape index: {}]
  %s3 = inlined_call_operand.vmem [shape: f32[1,128], index: 3, kind: input, shape index: {}]
  %s4 = inlined_call_operand.vmem [shape: bf16[128,256], index: 4, kind: input, shape index: {}]
  %s5 = inlined_call_operand.vmem [shape: f32[1,256], index: 5, kind: input, shape index: {}]
  %s6 = inlined_call_operand.vmem [shape: bf16[256,128], index: 6, kind: input, shape index: {}]
  %s7 = inlined_call_operand.vmem [shape: f32[1,128], index: 7, kind: input, shape index: {}]
  %s8 = inlined_call_operand.vmem [shape: f32[1152,128], index: 8, kind: output, shape index: {0}]
  %s9 = inlined_call_operand.vmem [shape: f32[200,128], index: 9, kind: output, shape index: {1}]
  %10 = xla_tuple %s8, %s9
  %s11 = sld [smem:[#allocation0]]
  $region50: #{cnn_forward.2} parent=0
    _
  %s13 = ssub.s32 1, %s11
  %s14 = scalar_select 0, %s13, %s11
  // Predicated region
  $region2: #{cnn_forward.2} parent=0 // pred_check
    _
  $region3: #{cnn_forward.2} parent=0 // pred_check_branch
    %16 = sbr.rel (0) target = $region5
  $region4: #{cnn_forward.2} parent=0 // pred_region
    _
  $region5: #{cnn_forward.2} parent=0 // pred_fallthru
    _
  // Predicated region
  $region6: #{cnn_forward.2} parent=0 // pred_check
    _
  $region7: #{cnn_forward.2} parent=0 // pred_check_branch
    %18 = sbr.rel (0) target = $region9
  $region8: #{cnn_forward.2} parent=0 // pred_region
    _
  $region9: #{cnn_forward.2} parent=0 // pred_fallthru
    _
  // Predicated region
  $region10: #{cnn_forward.2} parent=0 // pred_check
    _
  $region11: #{cnn_forward.2} parent=0 // pred_check_branch
    %20 = sbr.rel (0) target = $region13
  $region12: #{cnn_forward.2} parent=0 // pred_region
    _
  $region13: #{cnn_forward.2} parent=0 // pred_fallthru
    _
  // Predicated region
  $region14: #{cnn_forward.2} parent=0 // pred_check
    _
  $region15: #{cnn_forward.2} parent=0 // pred_check_branch
    %22 = sbr.rel (0) target = $region17
  $region16: #{cnn_forward.2} parent=0 // pred_region
    _
  $region17: #{cnn_forward.2} parent=0 // pred_fallthru
    _
  // Predicated region
  $region18: #{cnn_forward.2} parent=0 // pred_check
    _
  $region19: #{cnn_forward.2} parent=0 // pred_check_branch
    %24 = sbr.rel (0) target = $region21
  $region20: #{cnn_forward.2} parent=0 // pred_region
    _
  $region21: #{cnn_forward.2} parent=0 // pred_fallthru
    _
  // Predicated region
  $region22: #{cnn_forward.2} parent=0 // pred_check
    _
  $region23: #{cnn_forward.2} parent=0 // pred_check_branch
    %26 = sbr.rel (0) target = $region25
  $region24: #{cnn_forward.2} parent=0 // pred_region
    _
  $region25: #{cnn_forward.2} parent=0 // pred_fallthru
    _
  // Predicated region
  $region26: #{cnn_forward.2} parent=0 // pred_check
    _
  $region27: #{cnn_forward.2} parent=0 // pred_check_branch
    %28 = sbr.rel (0) target = $region29
  $region28: #{cnn_forward.2} parent=0 // pred_region
    _
  $region29: #{cnn_forward.2} parent=0 // pred_fallthru
    _
  // Predicated region
  $region30: #{cnn_forward.2} parent=0 // pred_check
    _
  $region31: #{cnn_forward.2} parent=0 // pred_check_branch
    %30 = sbr.rel (0) target = $region33
  $region32: #{cnn_forward.2} parent=0 // pred_region
    _
  $region33: #{cnn_forward.2} parent=0 // pred_fallthru
    _
  %v32 = vld [vmem:[%s0] sm:$0xf]
  %v33 = vld [vmem:[%s0 + $0x4] sm:$0xf]
  %v34 = vld [vmem:[%s0 + $0x8] sm:$0xf]
  %v35 = vld [vmem:[%s0 + $0xc] sm:$0xf]
  %v36 = vld [vmem:[%s0 + $0x10] sm:$0xf]
  %v37 = vld [vmem:[%s0 + $0x14] sm:$0xf]
  %v38 = vld [vmem:[%s0 + $0x18] sm:$0xf]
  %v39 = vld [vmem:[%s0 + $0x1c] sm:$0xf]
  %v40 = vld [vmem:[%s0 + $0x20] sm:$0xf]
  %v41 = vld [vmem:[%s0 + $0x24] sm:$0xf]
  %v42 = vld [vmem:[%s0 + $0x28] sm:$0xf]
  %v43 = vld [vmem:[%s0 + $0x2c] sm:$0xf]
  %v44 = vld [vmem:[%s0 + $0x30] sm:$0xf]
  %v45 = vld [vmem:[%s0 + $0x34] sm:$0xf]
  %v46 = vld [vmem:[%s0 + $0x38] sm:$0xf]
  %v47 = vld [vmem:[%s0 + $0x3c] sm:$0xf]
  %v48 = vld [vmem:[%s0 + $0x40] sm:$0xf]
  %v49 = vld [vmem:[%s0 + $0x44] sm:$0xf]
  %v50 = vld [vmem:[%s0 + $0x48] sm:$0xf]
  %v51 = vld [vmem:[%s0 + $0x4c] sm:$0xf]
  %v52 = vld [vmem:[%s0 + $0x50] sm:$0xf]
  %v53 = vld [vmem:[%s0 + $0x54] sm:$0xf]
  %v54 = vld [vmem:[%s0 + $0x58] sm:$0xf]
  %v55 = vld [vmem:[%s0 + $0x5c] sm:$0xf]
  %v56 = vld [vmem:[%s0 + $0x60] sm:$0xf]
  %v57 = vld [vmem:[%s0 + $0x64] sm:$0xf]
  %v58 = vld [vmem:[%s0 + $0x68] sm:$0xf]
  %v59 = vld [vmem:[%s0 + $0x6c] sm:$0xf]
  %v60 = vld [vmem:[%s0 + $0x70] sm:$0xf]
  %v61 = vld [vmem:[%s0 + $0x74] sm:$0xf]
  %v62 = vld [vmem:[%s0 + $0x78] sm:$0xf]
  %v63 = vld [vmem:[%s0 + $0x7c] sm:$0xf]
  %v64 = vld [vmem:[%s0 + $0x80] sm:$0xf]
  %v65 = vld [vmem:[%s0 + $0x84] sm:$0xf]
  %v66 = vld [vmem:[%s0 + $0x88] sm:$0xf]
  %v67 = vld [vmem:[%s0 + $0x8c] sm:$0xf]
  %v68 = vld [vmem:[%s0 + $0x90] sm:$0xf]
  %v69 = vld [vmem:[%s0 + $0x94] sm:$0xf]
  %v70 = vld [vmem:[%s0 + $0x98] sm:$0xf]
  %v71 = vld [vmem:[%s0 + $0x9c] sm:$0xf]
  %v72 = vld [vmem:[%s0 + $0xa0] sm:$0xf]
  %v73 = vld [vmem:[%s0 + $0xa4] sm:$0xf]
  %v74 = vld [vmem:[%s0 + $0xa8] sm:$0xf]
  %v75 = vld [vmem:[%s0 + $0xac] sm:$0xf]
  %v76 = vld [vmem:[%s0 + $0xb0] sm:$0xf]
  %v77 = vld [vmem:[%s0 + $0xb4] sm:$0xf]
  %v78 = vld [vmem:[%s0 + $0xb8] sm:$0xf]
  %v79 = vld [vmem:[%s0 + $0xbc] sm:$0xf]
  %v80 = vld [vmem:[%s0 + $0xc0] sm:$0xf]
  %v81 = vld [vmem:[%s0 + $0xc4] sm:$0xf]
  %v82 = vld [vmem:[%s0 + $0xc8] sm:$0xf]
  %v83 = vld [vmem:[%s0 + $0xcc] sm:$0xf]
  %v84 = vld [vmem:[%s0 + $0xd0] sm:$0xf]
  %v85 = vld [vmem:[%s0 + $0xd4] sm:$0xf]
  %v86 = vld [vmem:[%s0 + $0xd8] sm:$0xf]
  %v87 = vld [vmem:[%s0 + $0xdc] sm:$0xf]
  %v88 = vld [vmem:[%s0 + $0xe0] sm:$0xf]
  %v89 = vld [vmem:[%s0 + $0xe4] sm:$0xf]
  %v90 = vld [vmem:[%s0 + $0xe8] sm:$0xf]
  %v91 = vld [vmem:[%s0 + $0xec] sm:$0xf]
  %v92 = vld [vmem:[%s0 + $0xf0] sm:$0xf]
  %v93 = vld [vmem:[%s0 + $0xf4] sm:$0xf]
  %v94 = vld [vmem:[%s0 + $0xf8] sm:$0xf]
  %v95 = vld [vmem:[%s0 + $0xfc] sm:$0xf]
  %v96 = vld [vmem:[%s0 + $0x100] sm:$0xf]
  %v97 = vld [vmem:[%s0 + $0x104] sm:$0xf]
  %v98 = vld [vmem:[%s0 + $0x108] sm:$0xf]
  %v99 = vld [vmem:[%s0 + $0x10c] sm:$0xf]
  %v100 = vld [vmem:[%s0 + $0x110] sm:$0xf]
  %v101 = vld [vmem:[%s0 + $0x114] sm:$0xf]
  %v102 = vld [vmem:[%s0 + $0x118] sm:$0xf]
  %v103 = vld [vmem:[%s0 + $0x11c] sm:$0xf]
  %v104 = vld [vmem:[%s0 + $0x120] sm:$0xf]
  %v105 = vld [vmem:[%s0 + $0x124] sm:$0xf]
  %v106 = vld [vmem:[%s0 + $0x128] sm:$0xf]
  %v107 = vld [vmem:[%s0 + $0x12c] sm:$0xf]
  %v108 = vld [vmem:[%s0 + $0x130] sm:$0xf]
  %v109 = vld [vmem:[%s0 + $0x134] sm:$0xf]
  %v110 = vld [vmem:[%s0 + $0x138] sm:$0xf]
  %v111 = vld [vmem:[%s0 + $0x13c] sm:$0xf]
  %v112 = vld [vmem:[%s0 + $0x140] sm:$0xf]
  %v113 = vld [vmem:[%s0 + $0x144] sm:$0xf]
  %v114 = vld [vmem:[%s0 + $0x148] sm:$0xf]
  %v115 = vld [vmem:[%s0 + $0x14c] sm:$0xf]
  %v116 = vld [vmem:[%s0 + $0x150] sm:$0xf]
  %v117 = vld [vmem:[%s0 + $0x154] sm:$0xf]
  %v118 = vld [vmem:[%s0 + $0x158] sm:$0xf]
  %v119 = vld [vmem:[%s0 + $0x15c] sm:$0xf]
  %v120 = vld [vmem:[%s0 + $0x160] sm:$0xf]
  %v121 = vld [vmem:[%s0 + $0x164] sm:$0xf]
  %v122 = vld [vmem:[%s0 + $0x168] sm:$0xf]
  %v123 = vld [vmem:[%s0 + $0x16c] sm:$0xf]
  %v124 = vld [vmem:[%s0 + $0x170] sm:$0xf]
  %v125 = vld [vmem:[%s0 + $0x174] sm:$0xf]
  %v126 = vld [vmem:[%s0 + $0x178] sm:$0xf]
  %v127 = vld [vmem:[%s0 + $0x17c] sm:$0xf]
  %v128 = vld [vmem:[%s0 + $0x180] sm:$0xf]
  %v129 = vld [vmem:[%s0 + $0x184] sm:$0xf]
  %v130 = vld [vmem:[%s0 + $0x188] sm:$0xf]
  %v131 = vld [vmem:[%s0 + $0x18c] sm:$0xf]
  %v132 = vld [vmem:[%s0 + $0x190] sm:$0xf]
  %v133 = vld [vmem:[%s0 + $0x194] sm:$0xf]
  %v134 = vld [vmem:[%s0 + $0x198] sm:$0xf]
  %v135 = vld [vmem:[%s0 + $0x19c] sm:$0xf]
  %v136 = vld [vmem:[%s0 + $0x1a0] sm:$0xf]
  %v137 = vld [vmem:[%s0 + $0x1a4] sm:$0xf]
  %v138 = vld [vmem:[%s0 + $0x1a8] sm:$0xf]
  %v139 = vld [vmem:[%s0 + $0x1ac] sm:$0xf]
  %v140 = vld [vmem:[%s0 + $0x1b0] sm:$0xf]
  %v141 = vld [vmem:[%s0 + $0x1b4] sm:$0xf]
  %v142 = vld [vmem:[%s0 + $0x1b8] sm:$0xf]
  %v143 = vld [vmem:[%s0 + $0x1bc] sm:$0xf]
  %v144 = vld [vmem:[%s0 + $0x1c0] sm:$0xf]
  %v145 = vld [vmem:[%s0 + $0x1c4] sm:$0xf]
  %v146 = vld [vmem:[%s0 + $0x1c8] sm:$0xf]
  %v147 = vld [vmem:[%s0 + $0x1cc] sm:$0xf]
  %v148 = vld [vmem:[%s0 + $0x1d0] sm:$0xf]
  %v149 = vld [vmem:[%s0 + $0x1d4] sm:$0xf]
  %v150 = vld [vmem:[%s0 + $0x1d8] sm:$0xf]
  %v151 = vld [vmem:[%s0 + $0x1dc] sm:$0xf]
  %v152 = vld [vmem:[%s0 + $0x1e0] sm:$0xf]
  %v153 = vld [vmem:[%s0 + $0x1e4] sm:$0xf]
  %v154 = vld [vmem:[%s0 + $0x1e8] sm:$0xf]
  %v155 = vld [vmem:[%s0 + $0x1ec] sm:$0xf]
  %v156 = vld [vmem:[%s0 + $0x1f0] sm:$0xf]
  %v157 = vld [vmem:[%s0 + $0x1f4] sm:$0xf]
  %v158 = vld [vmem:[%s0 + $0x1f8] sm:$0xf]
  %v159 = vld [vmem:[%s0 + $0x1fc] sm:$0xf]
  %v160 = vld [vmem:[%s0 + $0x200] sm:$0xf]
  %v161 = vld [vmem:[%s0 + $0x204] sm:$0xf]
  %v162 = vld [vmem:[%s0 + $0x208] sm:$0xf]
  %v163 = vld [vmem:[%s0 + $0x20c] sm:$0xf]
  %v164 = vld [vmem:[%s0 + $0x210] sm:$0xf]
  %v165 = vld [vmem:[%s0 + $0x214] sm:$0xf]
  %v166 = vld [vmem:[%s0 + $0x218] sm:$0xf]
  %v167 = vld [vmem:[%s0 + $0x21c] sm:$0xf]
  %v168 = vld [vmem:[%s0 + $0x220] sm:$0xf]
  %v169 = vld [vmem:[%s0 + $0x224] sm:$0xf]
  %v170 = vld [vmem:[%s0 + $0x228] sm:$0xf]
  %v171 = vld [vmem:[%s0 + $0x22c] sm:$0xf]
  %v172 = vld [vmem:[%s0 + $0x230] sm:$0xf]
  %v173 = vld [vmem:[%s0 + $0x234] sm:$0xf]
  %v174 = vld [vmem:[%s0 + $0x238] sm:$0xf]
  %v175 = vld [vmem:[%s0 + $0x23c] sm:$0xf]
  %v176 = vld [vmem:[%s2] sm:$0xf]
  %v177 = vld [vmem:[%s2 + $0x4] sm:$0xf]
  %v178 = vld [vmem:[%s2 + $0x8] sm:$0xf]
  %v179 = vld [vmem:[%s2 + $0xc] sm:$0xf]
  %v180 = vld [vmem:[%s3] sm:$0x1]
  %v182 = vlaneseq
  %v183 = vshrl.u32 %v182, 7
  %v184 = vsub.s32 0, %v183
  %v185 = vrot.slane %v180, %v184
  %v331 = vunpack.c.l.b16 %v32
  %v332 = vunpack.c.l.b16 %v33
  %v333 = vunpack.c.l.b16 %v34
  %v334 = vunpack.c.l.b16 %v35
  %v335 = vunpack.c.l.b16 %v36
  %v336 = vunpack.c.l.b16 %v37
  %v337 = vunpack.c.l.b16 %v38
  %v338 = vunpack.c.l.b16 %v39
  %v339 = vunpack.c.l.b16 %v40
  %v340 = vunpack.c.l.b16 %v41
  %v341 = vunpack.c.l.b16 %v42
  %v342 = vunpack.c.l.b16 %v43
  %v343 = vunpack.c.l.b16 %v44
  %v344 = vunpack.c.l.b16 %v45
  %v345 = vunpack.c.l.b16 %v46
  %v346 = vunpack.c.l.b16 %v47
  %v347 = vunpack.c.l.b16 %v48
  %v348 = vunpack.c.l.b16 %v49
  %v349 = vunpack.c.l.b16 %v50
  %v350 = vunpack.c.l.b16 %v51
  %v351 = vunpack.c.l.b16 %v52
  %v352 = vunpack.c.l.b16 %v53
  %v353 = vunpack.c.l.b16 %v54
  %v354 = vunpack.c.l.b16 %v55
  %v355 = vunpack.c.l.b16 %v56
  %v356 = vunpack.c.l.b16 %v57
  %v357 = vunpack.c.l.b16 %v58
  %v358 = vunpack.c.l.b16 %v59
  %v359 = vunpack.c.l.b16 %v60
  %v360 = vunpack.c.l.b16 %v61
  %v361 = vunpack.c.l.b16 %v62
  %v362 = vunpack.c.l.b16 %v63
  %v363 = vunpack.c.l.b16 %v64
  %v364 = vunpack.c.l.b16 %v65
  %v365 = vunpack.c.l.b16 %v66
  %v366 = vunpack.c.l.b16 %v67
  %v367 = vunpack.c.l.b16 %v68
  %v368 = vunpack.c.l.b16 %v69
  %v369 = vunpack.c.l.b16 %v70
  %v370 = vunpack.c.l.b16 %v71
  %v371 = vunpack.c.l.b16 %v72
  %v372 = vunpack.c.l.b16 %v73
  %v373 = vunpack.c.l.b16 %v74
  %v374 = vunpack.c.l.b16 %v75
  %v375 = vunpack.c.l.b16 %v76
  %v376 = vunpack.c.l.b16 %v77
  %v377 = vunpack.c.l.b16 %v78
  %v378 = vunpack.c.l.b16 %v79
  %v379 = vunpack.c.l.b16 %v80
  %v380 = vunpack.c.l.b16 %v81
  %v381 = vunpack.c.l.b16 %v82
  %v382 = vunpack.c.l.b16 %v83
  %v383 = vunpack.c.l.b16 %v84
  %v384 = vunpack.c.l.b16 %v85
  %v385 = vunpack.c.l.b16 %v86
  %v386 = vunpack.c.l.b16 %v87
  %v387 = vunpack.c.l.b16 %v88
  %v388 = vunpack.c.l.b16 %v89
  %v389 = vunpack.c.l.b16 %v90
  %v390 = vunpack.c.l.b16 %v91
  %v391 = vunpack.c.l.b16 %v92
  %v392 = vunpack.c.l.b16 %v93
  %v393 = vunpack.c.l.b16 %v94
  %v394 = vunpack.c.l.b16 %v95
  %v395 = vunpack.c.l.b16 %v96
  %v396 = vunpack.c.l.b16 %v97
  %v397 = vunpack.c.l.b16 %v98
  %v398 = vunpack.c.l.b16 %v99
  %v399 = vunpack.c.l.b16 %v100
  %v400 = vunpack.c.l.b16 %v101
  %v401 = vunpack.c.l.b16 %v102
  %v402 = vunpack.c.l.b16 %v103
  %v403 = vunpack.c.l.b16 %v104
  %v404 = vunpack.c.l.b16 %v105
  %v405 = vunpack.c.l.b16 %v106
  %v406 = vunpack.c.l.b16 %v107
  %v407 = vunpack.c.l.b16 %v108
  %v408 = vunpack.c.l.b16 %v109
  %v409 = vunpack.c.l.b16 %v110
  %v410 = vunpack.c.l.b16 %v111
  %v411 = vunpack.c.l.b16 %v112
  %v412 = vunpack.c.l.b16 %v113
  %v413 = vunpack.c.l.b16 %v114
  %v414 = vunpack.c.l.b16 %v115
  %v415 = vunpack.c.l.b16 %v116
  %v416 = vunpack.c.l.b16 %v117
  %v417 = vunpack.c.l.b16 %v118
  %v418 = vunpack.c.l.b16 %v119
  %v419 = vunpack.c.l.b16 %v120
  %v420 = vunpack.c.l.b16 %v121
  %v421 = vunpack.c.l.b16 %v122
  %v422 = vunpack.c.l.b16 %v123
  %v423 = vunpack.c.l.b16 %v124
  %v424 = vunpack.c.l.b16 %v125
  %v425 = vunpack.c.l.b16 %v126
  %v426 = vunpack.c.l.b16 %v127
  %v427 = vunpack.c.l.b16 %v128
  %v428 = vunpack.c.l.b16 %v129
  %v429 = vunpack.c.l.b16 %v130
  %v430 = vunpack.c.l.b16 %v131
  %v431 = vunpack.c.l.b16 %v132
  %v432 = vunpack.c.l.b16 %v133
  %v433 = vunpack.c.l.b16 %v134
  %v434 = vunpack.c.l.b16 %v135
  %v435 = vunpack.c.l.b16 %v136
  %v436 = vunpack.c.l.b16 %v137
  %v437 = vunpack.c.l.b16 %v138
  %v438 = vunpack.c.l.b16 %v139
  %v439 = vunpack.c.l.b16 %v140
  %v440 = vunpack.c.l.b16 %v141
  %v441 = vunpack.c.l.b16 %v142
  %v442 = vunpack.c.l.b16 %v143
  %v443 = vunpack.c.l.b16 %v144
  %v444 = vunpack.c.l.b16 %v145
  %v445 = vunpack.c.l.b16 %v146
  %v446 = vunpack.c.l.b16 %v147
  %v447 = vunpack.c.l.b16 %v148
  %v448 = vunpack.c.l.b16 %v149
  %v449 = vunpack.c.l.b16 %v150
  %v450 = vunpack.c.l.b16 %v151
  %v451 = vunpack.c.l.b16 %v152
  %v452 = vunpack.c.l.b16 %v153
  %v453 = vunpack.c.l.b16 %v154
  %v454 = vunpack.c.l.b16 %v155
  %v455 = vunpack.c.l.b16 %v156
  %v456 = vunpack.c.l.b16 %v157
  %v457 = vunpack.c.l.b16 %v158
  %v458 = vunpack.c.l.b16 %v159
  %v459 = vunpack.c.l.b16 %v160
  %v460 = vunpack.c.l.b16 %v161
  %v461 = vunpack.c.l.b16 %v162
  %v462 = vunpack.c.l.b16 %v163
  %v463 = vunpack.c.l.b16 %v164
  %v464 = vunpack.c.l.b16 %v165
  %v465 = vunpack.c.l.b16 %v166
  %v466 = vunpack.c.l.b16 %v167
  %v467 = vunpack.c.l.b16 %v168
  %v468 = vunpack.c.l.b16 %v169
  %v469 = vunpack.c.l.b16 %v170
  %v470 = vunpack.c.l.b16 %v171
  %v471 = vunpack.c.l.b16 %v172
  %v472 = vunpack.c.l.b16 %v173
  %v473 = vunpack.c.l.b16 %v174
  %v474 = vunpack.c.l.b16 %v175
  %v475 = vpack.c.b16 %v332, %v331
  %v476 = vpack.c.b16 %v334, %v333
  %v477 = vpack.c.b16 %v336, %v335
  %v478 = vpack.c.b16 %v338, %v337
  %v479 = vpack.c.b16 %v340, %v339
  %v480 = vpack.c.b16 %v342, %v341
  %v481 = vpack.c.b16 %v344, %v343
  %v482 = vpack.c.b16 %v346, %v345
  %v483 = vpack.c.b16 %v348, %v347
  %v484 = vpack.c.b16 %v350, %v349
  %v485 = vpack.c.b16 %v352, %v351
  %v486 = vpack.c.b16 %v354, %v353
  %v487 = vpack.c.b16 %v356, %v355
  %v488 = vpack.c.b16 %v358, %v357
  %v489 = vpack.c.b16 %v360, %v359
  %v490 = vpack.c.b16 %v362, %v361
  %v491 = vpack.c.b16 %v364, %v363
  %v492 = vpack.c.b16 %v366, %v365
  %v493 = vpack.c.b16 %v368, %v367
  %v494 = vpack.c.b16 %v370, %v369
  %v495 = vpack.c.b16 %v372, %v371
  %v496 = vpack.c.b16 %v374, %v373
  %v497 = vpack.c.b16 %v376, %v375
  %v498 = vpack.c.b16 %v378, %v377
  %v499 = vpack.c.b16 %v380, %v379
  %v500 = vpack.c.b16 %v382, %v381
  %v501 = vpack.c.b16 %v384, %v383
  %v502 = vpack.c.b16 %v386, %v385
  %v503 = vpack.c.b16 %v388, %v387
  %v504 = vpack.c.b16 %v390, %v389
  %v505 = vpack.c.b16 %v392, %v391
  %v506 = vpack.c.b16 %v394, %v393
  %v507 = vpack.c.b16 %v396, %v395
  %v508 = vpack.c.b16 %v398, %v397
  %v509 = vpack.c.b16 %v400, %v399
  %v510 = vpack.c.b16 %v402, %v401
  %v511 = vpack.c.b16 %v404, %v403
  %v512 = vpack.c.b16 %v406, %v405
  %v513 = vpack.c.b16 %v408, %v407
  %v514 = vpack.c.b16 %v410, %v409
  %v515 = vpack.c.b16 %v412, %v411
  %v516 = vpack.c.b16 %v414, %v413
  %v517 = vpack.c.b16 %v416, %v415
  %v518 = vpack.c.b16 %v418, %v417
  %v519 = vpack.c.b16 %v420, %v419
  %v520 = vpack.c.b16 %v422, %v421
  %v521 = vpack.c.b16 %v424, %v423
  %v522 = vpack.c.b16 %v426, %v425
  %v523 = vpack.c.b16 %v428, %v427
  %v524 = vpack.c.b16 %v430, %v429
  %v525 = vpack.c.b16 %v432, %v431
  %v526 = vpack.c.b16 %v434, %v433
  %v527 = vpack.c.b16 %v436, %v435
  %v528 = vpack.c.b16 %v438, %v437
  %v529 = vpack.c.b16 %v440, %v439
  %v530 = vpack.c.b16 %v442, %v441
  %v531 = vpack.c.b16 %v444, %v443
  %v532 = vpack.c.b16 %v446, %v445
  %v533 = vpack.c.b16 %v448, %v447
  %v534 = vpack.c.b16 %v450, %v449
  %v535 = vpack.c.b16 %v452, %v451
  %v536 = vpack.c.b16 %v454, %v453
  %v537 = vpack.c.b16 %v456, %v455
  %v538 = vpack.c.b16 %v458, %v457
  %v539 = vpack.c.b16 %v460, %v459
  %v540 = vpack.c.b16 %v462, %v461
  %v541 = vpack.c.b16 %v464, %v463
  %v542 = vpack.c.b16 %v466, %v465
  %v543 = vpack.c.b16 %v468, %v467
  %v544 = vpack.c.b16 %v470, %v469
  %v545 = vpack.c.b16 %v472, %v471
  %v546 = vpack.c.b16 %v474, %v473
  %v551 = vunpack.c.l.b16 %v176
  %v552 = vunpack.c.l.b16 %v177
  %v553 = vunpack.c.l.b16 %v178
  %v554 = vunpack.c.l.b16 %v179
  %v555 = vpack.c.b16 %v552, %v551
  %v556 = vpack.c.b16 %v554, %v553
  %vm559 = vcmask 261120
  %v561 = vsel %vm559, %v475, 0
  %v564 = vsel %vm559, %v476, 0
  %v567 = vsel %vm559, %v477, 0
  %v570 = vsel %vm559, %v478, 0
  %v573 = vsel %vm559, %v479, 0
  %v576 = vsel %vm559, %v480, 0
  %v579 = vsel %vm559, %v481, 0
  %v582 = vsel %vm559, %v482, 0
  %v585 = vsel %vm559, %v483, 0
  %v588 = vsel %vm559, %v484, 0
  %v591 = vsel %vm559, %v485, 0
  %v594 = vsel %vm559, %v486, 0
  %v597 = vsel %vm559, %v487, 0
  %v600 = vsel %vm559, %v488, 0
  %v603 = vsel %vm559, %v489, 0
  %v606 = vsel %vm559, %v490, 0
  %v609 = vsel %vm559, %v491, 0
  %v612 = vsel %vm559, %v492, 0
  %v615 = vsel %vm559, %v493, 0
  %v618 = vsel %vm559, %v494, 0
  %v621 = vsel %vm559, %v495, 0
  %v624 = vsel %vm559, %v496, 0
  %v627 = vsel %vm559, %v497, 0
  %v630 = vsel %vm559, %v498, 0
  %v633 = vsel %vm559, %v499, 0
  %v636 = vsel %vm559, %v500, 0
  %v639 = vsel %vm559, %v501, 0
  %v642 = vsel %vm559, %v502, 0
  %v645 = vsel %vm559, %v503, 0
  %v648 = vsel %vm559, %v504, 0
  %v651 = vsel %vm559, %v505, 0
  %v654 = vsel %vm559, %v506, 0
  %v657 = vsel %vm559, %v507, 0
  %v660 = vsel %vm559, %v508, 0
  %v663 = vsel %vm559, %v509, 0
  %v666 = vsel %vm559, %v510, 0
  %v669 = vsel %vm559, %v511, 0
  %v672 = vsel %vm559, %v512, 0
  %v675 = vsel %vm559, %v513, 0
  %v678 = vsel %vm559, %v514, 0
  %v681 = vsel %vm559, %v515, 0
  %v684 = vsel %vm559, %v516, 0
  %v687 = vsel %vm559, %v517, 0
  %v690 = vsel %vm559, %v518, 0
  %v693 = vsel %vm559, %v519, 0
  %v696 = vsel %vm559, %v520, 0
  %v699 = vsel %vm559, %v521, 0
  %v702 = vsel %vm559, %v522, 0
  %v705 = vsel %vm559, %v523, 0
  %v708 = vsel %vm559, %v524, 0
  %v711 = vsel %vm559, %v525, 0
  %v714 = vsel %vm559, %v526, 0
  %v717 = vsel %vm559, %v527, 0
  %v720 = vsel %vm559, %v528, 0
  %v723 = vsel %vm559, %v529, 0
  %v726 = vsel %vm559, %v530, 0
  %v729 = vsel %vm559, %v531, 0
  %v732 = vsel %vm559, %v532, 0
  %v735 = vsel %vm559, %v533, 0
  %v738 = vsel %vm559, %v534, 0
  %v741 = vsel %vm559, %v535, 0
  %v744 = vsel %vm559, %v536, 0
  %v747 = vsel %vm559, %v537, 0
  %v750 = vsel %vm559, %v538, 0
  %v753 = vsel %vm559, %v539, 0
  %v756 = vsel %vm559, %v540, 0
  %v759 = vsel %vm559, %v541, 0
  %v762 = vsel %vm559, %v542, 0
  %v765 = vsel %vm559, %v543, 0
  %v768 = vsel %vm559, %v544, 0
  %v771 = vsel %vm559, %v545, 0
  %v774 = vsel %vm559, %v546, 0
  %776 = vmatprep.subr.bf16.mxu0 0
  %777 = vmatpush1.bf16.msra.mxu0 %v555
  %778 = vmatprep.subr.bf16.mxu0 0
  %779 = vmatpush1.bf16.msra.mxu0 %v556
  %780 = vmatprep.subr.bf16.mxu0 0
  %781 = vmatpush1.bf16.msra.mxu0 0
  %782 = vmatprep.subr.bf16.mxu0 0
  %783 = vmatpush1.bf16.msra.mxu0 0
  %784 = vmatprep.subr.bf16.mxu0 0
  %785 = vmatpush1.bf16.msra.mxu0 0
  %786 = vmatprep.subr.bf16.mxu0 0
  %787 = vmatpush1.bf16.msra.mxu0 0
  %788 = vmatprep.subr.bf16.mxu0 0
  %789 = vmatpush1.bf16.msra.mxu0 0
  %790 = vmatprep.subr.bf16.mxu0 0
  %791 = vmatpush1.bf16.msra.mxu0 0
  %792 = vmatprep.subr.bf16.mxu0 0
  %793 = vmatpush1.bf16.msra.mxu0 0
  %794 = vmatprep.subr.bf16.mxu0 0
  %795 = vmatpush1.bf16.msra.mxu0 0
  %796 = vmatprep.subr.bf16.mxu0 0
  %797 = vmatpush1.bf16.msra.mxu0 0
  %798 = vmatprep.subr.bf16.mxu0 0
  %799 = vmatpush1.bf16.msra.mxu0 0
  %800 = vmatprep.subr.bf16.mxu0 0
  %801 = vmatpush1.bf16.msra.mxu0 0
  %802 = vmatprep.subr.bf16.mxu0 0
  %803 = vmatpush1.bf16.msra.mxu0 0
  %804 = vmatprep.subr.bf16.mxu0 0
  %805 = vmatpush1.bf16.msra.mxu0 0
  %806 = vmatprep.subr.bf16.mxu0 0
  %807 = vmatpush1.bf16.msra.mxu0 0
  %808 = vmatprep.mubr.bf16.mxu0 0
  %809 = vmatmul.mubr.bf16.gmra.mrb[0].mxu0 %v561
  %v810 = vpop.f32.mrb[0].mxu0
  %v811 = vadd.f32 %v185, %v810
  %v812 = vpop.f32.mrb[0].mxu0
  %v813 = vpop.f32.mrb[0].mxu0
  %v814 = vadd.f32 %v185, %v813
  %v815 = vpop.f32.mrb[0].mxu0
  %816 = vmatprep.mubr.bf16.mxu0 0
  %817 = vmatmul.mubr.bf16.gmra.mrb[0].mxu0 %v564
  %v818 = vpop.f32.mrb[0].mxu0
  %v819 = vadd.f32 %v185, %v818
  %v820 = vpop.f32.mrb[0].mxu0
  %v821 = vpop.f32.mrb[0].mxu0
  %v822 = vadd.f32 %v185, %v821
  %v823 = vpop.f32.mrb[0].mxu0
  %824 = vmatprep.mubr.bf16.mxu0 0
  %825 = vmatmul.mubr.bf16.gmra.mrb[0].mxu0 %v567
  %v826 = vpop.f32.mrb[0].mxu0
  %v827 = vadd.f32 %v185, %v826
  %v828 = vpop.f32.mrb[0].mxu0
  %v829 = vpop.f32.mrb[0].mxu0
  %v830 = vadd.f32 %v185, %v829
  %v831 = vpop.f32.mrb[0].mxu0
  %832 = vmatprep.mubr.bf16.mxu0 0
  %833 = vmatmul.mubr.bf16.gmra.mrb[0].mxu0 %v570
  %v834 = vpop.f32.mrb[0].mxu0
  %v835 = vadd.f32 %v185, %v834
  %v836 = vpop.f32.mrb[0].mxu0
  %v837 = vpop.f32.mrb[0].mxu0
  %v838 = vadd.f32 %v185, %v837
  %v839 = vpop.f32.mrb[0].mxu0
  %840 = vmatprep.mubr.bf16.mxu0 0
  %841 = vmatmul.mubr.bf16.gmra.mrb[0].mxu0 %v573
  %v842 = vpop.f32.mrb[0].mxu0
  %v843 = vadd.f32 %v185, %v842
  %v844 = vpop.f32.mrb[0].mxu0
  %v845 = vpop.f32.mrb[0].mxu0
  %v846 = vadd.f32 %v185, %v845
  %v847 = vpop.f32.mrb[0].mxu0
  %848 = vmatprep.mubr.bf16.mxu0 0
  %849 = vmatmul.mubr.bf16.gmra.mrb[0].mxu0 %v576
  %v850 = vpop.f32.mrb[0].mxu0
  %v851 = vadd.f32 %v185, %v850
  %v852 = vpop.f32.mrb[0].mxu0
  %v853 = vpop.f32.mrb[0].mxu0
  %v854 = vadd.f32 %v185, %v853
  %v855 = vpop.f32.mrb[0].mxu0
  %856 = vmatprep.mubr.bf16.mxu0 0
  %857 = vmatmul.mubr.bf16.gmra.mrb[0].mxu0 %v579
  %v858 = vpop.f32.mrb[0].mxu0
  %v859 = vadd.f32 %v185, %v858
  %v860 = vpop.f32.mrb[0].mxu0
  %v861 = vpop.f32.mrb[0].mxu0
  %v862 = vadd.f32 %v185, %v861
  %v863 = vpop.f32.mrb[0].mxu0
  %864 = vmatprep.mubr.bf16.mxu0 0
  %865 = vmatmul.mubr.bf16.gmra.mrb[0].mxu0 %v582
  %v866 = vpop.f32.mrb[0].mxu0
  %v867 = vadd.f32 %v185, %v866
  %v868 = vpop.f32.mrb[0].mxu0
  %v869 = vpop.f32.mrb[0].mxu0
  %v870 = vadd.f32 %v185, %v869
  %v871 = vpop.f32.mrb[0].mxu0
  %872 = vmatprep.mubr.bf16.mxu0 0
  %873 = vmatmul.mubr.bf16.gmra.mrb[0].mxu0 %v585
  %v874 = vpop.f32.mrb[0].mxu0
  %v875 = vadd.f32 %v185, %v874
  %v876 = vpop.f32.mrb[0].mxu0
  %v877 = vpop.f32.mrb[0].mxu0
  %v878 = vadd.f32 %v185, %v877
  %v879 = vpop.f32.mrb[0].mxu0
  %880 = vmatprep.mubr.bf16.mxu0 0
  %881 = vmatmul.mubr.bf16.gmra.mrb[0].mxu0 %v588
  %v882 = vpop.f32.mrb[0].mxu0
  %v883 = vadd.f32 %v185, %v882
  %v884 = vpop.f32.mrb[0].mxu0
  %v885 = vpop.f32.mrb[0].mxu0
  %v886 = vadd.f32 %v185, %v885
  %v887 = vpop.f32.mrb[0].mxu0
  %888 = vmatprep.mubr.bf16.mxu0 0
  %889 = vmatmul.mubr.bf16.gmra.mrb[0].mxu0 %v591
  %v890 = vpop.f32.mrb[0].mxu0
  %v891 = vadd.f32 %v185, %v890
  %v892 = vpop.f32.mrb[0].mxu0
  %v893 = vpop.f32.mrb[0].mxu0
  %v894 = vadd.f32 %v185, %v893
  %v895 = vpop.f32.mrb[0].mxu0
  %896 = vmatprep.mubr.bf16.mxu0 0
  %897 = vmatmul.mubr.bf16.gmra.mrb[0].mxu0 %v594
  %v898 = vpop.f32.mrb[0].mxu0
  %v899 = vadd.f32 %v185, %v898
  %v900 = vpop.f32.mrb[0].mxu0
  %v901 = vpop.f32.mrb[0].mxu0
  %v902 = vadd.f32 %v185, %v901
  %v903 = vpop.f32.mrb[0].mxu0
  %904 = vmatprep.mubr.bf16.mxu0 0
  %905 = vmatmul.mubr.bf16.gmra.mrb[0].mxu0 %v597
  %v906 = vpop.f32.mrb[0].mxu0
  %v907 = vadd.f32 %v185, %v906
  %v908 = vpop.f32.mrb[0].mxu0
  %v909 = vpop.f32.mrb[0].mxu0
  %v910 = vadd.f32 %v185, %v909
  %v911 = vpop.f32.mrb[0].mxu0
  %912 = vmatprep.mubr.bf16.mxu0 0
  %913 = vmatmul.mubr.bf16.gmra.mrb[0].mxu0 %v600
  %v914 = vpop.f32.mrb[0].mxu0
  %v915 = vadd.f32 %v185, %v914
  %v916 = vpop.f32.mrb[0].mxu0
  %v917 = vpop.f32.mrb[0].mxu0
  %v918 = vadd.f32 %v185, %v917
  %v919 = vpop.f32.mrb[0].mxu0
  %920 = vmatprep.mubr.bf16.mxu0 0
  %921 = vmatmul.mubr.bf16.gmra.mrb[0].mxu0 %v603
  %v922 = vpop.f32.mrb[0].mxu0
  %v923 = vadd.f32 %v185, %v922
  %v924 = vpop.f32.mrb[0].mxu0
  %v925 = vpop.f32.mrb[0].mxu0
  %v926 = vadd.f32 %v185, %v925
  %v927 = vpop.f32.mrb[0].mxu0
  %928 = vmatprep.mubr.bf16.mxu0 0
  %929 = vmatmul.mubr.bf16.gmra.mrb[0].mxu0 %v606
  %v930 = vpop.f32.mrb[0].mxu0
  %v931 = vadd.f32 %v185, %v930
  %v932 = vpop.f32.mrb[0].mxu0
  %v933 = vpop.f32.mrb[0].mxu0
  %v934 = vadd.f32 %v185, %v933
  %v935 = vpop.f32.mrb[0].mxu0
  %936 = vmatprep.mubr.bf16.mxu0 0
  %937 = vmatmul.mubr.bf16.gmra.mrb[0].mxu0 %v609
  %v938 = vpop.f32.mrb[0].mxu0
  %v939 = vadd.f32 %v185, %v938
  %v940 = vpop.f32.mrb[0].mxu0
  %v941 = vpop.f32.mrb[0].mxu0
  %v942 = vadd.f32 %v185, %v941
  %v943 = vpop.f32.mrb[0].mxu0
  %944 = vmatprep.mubr.bf16.mxu0 0
  %945 = vmatmul.mubr.bf16.gmra.mrb[0].mxu0 %v612
  %v946 = vpop.f32.mrb[0].mxu0
  %v947 = vadd.f32 %v185, %v946
  %v948 = vpop.f32.mrb[0].mxu0
  %v949 = vpop.f32.mrb[0].mxu0
  %v950 = vadd.f32 %v185, %v949
  %v951 = vpop.f32.mrb[0].mxu0
  %952 = vmatprep.mubr.bf16.mxu0 0
  %953 = vmatmul.mubr.bf16.gmra.mrb[0].mxu0 %v615
  %v954 = vpop.f32.mrb[0].mxu0
  %v955 = vadd.f32 %v185, %v954
  %v956 = vpop.f32.mrb[0].mxu0
  %v957 = vpop.f32.mrb[0].mxu0
  %v958 = vadd.f32 %v185, %v957
  %v959 = vpop.f32.mrb[0].mxu0
  %960 = vmatprep.mubr.bf16.mxu0 0
  %961 = vmatmul.mubr.bf16.gmra.mrb[0].mxu0 %v618
  %v962 = vpop.f32.mrb[0].mxu0
  %v963 = vadd.f32 %v185, %v962
  %v964 = vpop.f32.mrb[0].mxu0
  %v965 = vpop.f32.mrb[0].mxu0
  %v966 = vadd.f32 %v185, %v965
  %v967 = vpop.f32.mrb[0].mxu0
  %968 = vmatprep.mubr.bf16.mxu0 0
  %969 = vmatmul.mubr.bf16.gmra.mrb[0].mxu0 %v621
  %v970 = vpop.f32.mrb[0].mxu0
  %v971 = vadd.f32 %v185, %v970
  %v972 = vpop.f32.mrb[0].mxu0
  %v973 = vpop.f32.mrb[0].mxu0
  %v974 = vadd.f32 %v185, %v973
  %v975 = vpop.f32.mrb[0].mxu0
  %976 = vmatprep.mubr.bf16.mxu0 0
  %977 = vmatmul.mubr.bf16.gmra.mrb[0].mxu0 %v624
  %v978 = vpop.f32.mrb[0].mxu0
  %v979 = vadd.f32 %v185, %v978
  %v980 = vpop.f32.mrb[0].mxu0
  %v981 = vpop.f32.mrb[0].mxu0
  %v982 = vadd.f32 %v185, %v981
  %v983 = vpop.f32.mrb[0].mxu0
  %984 = vmatprep.mubr.bf16.mxu0 0
  %985 = vmatmul.mubr.bf16.gmra.mrb[0].mxu0 %v627
  %v986 = vpop.f32.mrb[0].mxu0
  %v987 = vadd.f32 %v185, %v986
  %v988 = vpop.f32.mrb[0].mxu0
  %v989 = vpop.f32.mrb[0].mxu0
  %v990 = vadd.f32 %v185, %v989
  %v991 = vpop.f32.mrb[0].mxu0
  %992 = vmatprep.mubr.bf16.mxu0 0
  %993 = vmatmul.mubr.bf16.gmra.mrb[0].mxu0 %v630
  %v994 = vpop.f32.mrb[0].mxu0
  %v995 = vadd.f32 %v185, %v994
  %v996 = vpop.f32.mrb[0].mxu0
  %v997 = vpop.f32.mrb[0].mxu0
  %v998 = vadd.f32 %v185, %v997
  %v999 = vpop.f32.mrb[0].mxu0
  %1000 = vmatprep.mubr.bf16.mxu0 0
  %1001 = vmatmul.mubr.bf16.gmra.mrb[0].mxu0 %v633
  %v1002 = vpop.f32.mrb[0].mxu0
  %v1003 = vadd.f32 %v185, %v1002
  %v1004 = vpop.f32.mrb[0].mxu0
  %v1005 = vpop.f32.mrb[0].mxu0
  %v1006 = vadd.f32 %v185, %v1005
  %v1007 = vpop.f32.mrb[0].mxu0
  %1008 = vmatprep.mubr.bf16.mxu0 0
  %1009 = vmatmul.mubr.bf16.gmra.mrb[0].mxu0 %v636
  %v1010 = vpop.f32.mrb[0].mxu0
  %v1011 = vadd.f32 %v185, %v1010
  %v1012 = vpop.f32.mrb[0].mxu0
  %v1013 = vpop.f32.mrb[0].mxu0
  %v1014 = vadd.f32 %v185, %v1013
  %v1015 = vpop.f32.mrb[0].mxu0
  %1016 = vmatprep.mubr.bf16.mxu0 0
  %1017 = vmatmul.mubr.bf16.gmra.mrb[0].mxu0 %v639
  %v1018 = vpop.f32.mrb[0].mxu0
  %v1019 = vadd.f32 %v185, %v1018
  %v1020 = vpop.f32.mrb[0].mxu0
  %v1021 = vpop.f32.mrb[0].mxu0
  %v1022 = vadd.f32 %v185, %v1021
  %v1023 = vpop.f32.mrb[0].mxu0
  %1024 = vmatprep.mubr.bf16.mxu0 0
  %1025 = vmatmul.mubr.bf16.gmra.mrb[0].mxu0 %v642
  %v1026 = vpop.f32.mrb[0].mxu0
  %v1027 = vadd.f32 %v185, %v1026
  %v1028 = vpop.f32.mrb[0].mxu0
  %v1029 = vpop.f32.mrb[0].mxu0
  %v1030 = vadd.f32 %v185, %v1029
  %v1031 = vpop.f32.mrb[0].mxu0
  %1032 = vmatprep.mubr.bf16.mxu0 0
  %1033 = vmatmul.mubr.bf16.gmra.mrb[0].mxu0 %v645
  %v1034 = vpop.f32.mrb[0].mxu0
  %v1035 = vadd.f32 %v185, %v1034
  %v1036 = vpop.f32.mrb[0].mxu0
  %v1037 = vpop.f32.mrb[0].mxu0
  %v1038 = vadd.f32 %v185, %v1037
  %v1039 = vpop.f32.mrb[0].mxu0
  %1040 = vmatprep.mubr.bf16.mxu0 0
  %1041 = vmatmul.mubr.bf16.gmra.mrb[0].mxu0 %v648
  %v1042 = vpop.f32.mrb[0].mxu0
  %v1043 = vadd.f32 %v185, %v1042
  %v1044 = vpop.f32.mrb[0].mxu0
  %v1045 = vpop.f32.mrb[0].mxu0
  %v1046 = vadd.f32 %v185, %v1045
  %v1047 = vpop.f32.mrb[0].mxu0
  %1048 = vmatprep.mubr.bf16.mxu0 0
  %1049 = vmatmul.mubr.bf16.gmra.mrb[0].mxu0 %v651
  %v1050 = vpop.f32.mrb[0].mxu0
  %v1051 = vadd.f32 %v185, %v1050
  %v1052 = vpop.f32.mrb[0].mxu0
  %v1053 = vpop.f32.mrb[0].mxu0
  %v1054 = vadd.f32 %v185, %v1053
  %v1055 = vpop.f32.mrb[0].mxu0
  %1056 = vmatprep.mubr.bf16.mxu0 0
  %1057 = vmatmul.mubr.bf16.gmra.mrb[0].mxu0 %v654
  %v1058 = vpop.f32.mrb[0].mxu0
  %v1059 = vadd.f32 %v185, %v1058
  %v1060 = vpop.f32.mrb[0].mxu0
  %v1061 = vpop.f32.mrb[0].mxu0
  %v1062 = vadd.f32 %v185, %v1061
  %v1063 = vpop.f32.mrb[0].mxu0
  %1064 = vmatprep.mubr.bf16.mxu0 0
  %1065 = vmatmul.mubr.bf16.gmra.mrb[0].mxu0 %v657
  %v1066 = vpop.f32.mrb[0].mxu0
  %v1067 = vadd.f32 %v185, %v1066
  %v1068 = vpop.f32.mrb[0].mxu0
  %v1069 = vpop.f32.mrb[0].mxu0
  %v1070 = vadd.f32 %v185, %v1069
  %v1071 = vpop.f32.mrb[0].mxu0
  %1072 = vmatprep.mubr.bf16.mxu0 0
  %1073 = vmatmul.mubr.bf16.gmra.mrb[0].mxu0 %v660
  %v1074 = vpop.f32.mrb[0].mxu0
  %v1075 = vadd.f32 %v185, %v1074
  %v1076 = vpop.f32.mrb[0].mxu0
  %v1077 = vpop.f32.mrb[0].mxu0
  %v1078 = vadd.f32 %v185, %v1077
  %v1079 = vpop.f32.mrb[0].mxu0
  %1080 = vmatprep.mubr.bf16.mxu0 0
  %1081 = vmatmul.mubr.bf16.gmra.mrb[0].mxu0 %v663
  %v1082 = vpop.f32.mrb[0].mxu0
  %v1083 = vadd.f32 %v185, %v1082
  %v1084 = vpop.f32.mrb[0].mxu0
  %v1085 = vpop.f32.mrb[0].mxu0
  %v1086 = vadd.f32 %v185, %v1085
  %v1087 = vpop.f32.mrb[0].mxu0
  %1088 = vmatprep.mubr.bf16.mxu0 0
  %1089 = vmatmul.mubr.bf16.gmra.mrb[0].mxu0 %v666
  %v1090 = vpop.f32.mrb[0].mxu0
  %v1091 = vadd.f32 %v185, %v1090
  %v1092 = vpop.f32.mrb[0].mxu0
  %v1093 = vpop.f32.mrb[0].mxu0
  %v1094 = vadd.f32 %v185, %v1093
  %v1095 = vpop.f32.mrb[0].mxu0
  %1096 = vmatprep.mubr.bf16.mxu0 0
  %1097 = vmatmul.mubr.bf16.gmra.mrb[0].mxu0 %v669
  %v1098 = vpop.f32.mrb[0].mxu0
  %v1099 = vadd.f32 %v185, %v1098
  %v1100 = vpop.f32.mrb[0].mxu0
  %v1101 = vpop.f32.mrb[0].mxu0
  %v1102 = vadd.f32 %v185, %v1101
  %v1103 = vpop.f32.mrb[0].mxu0
  %1104 = vmatprep.mubr.bf16.mxu0 0
  %1105 = vmatmul.mubr.bf16.gmra.mrb[0].mxu0 %v672
  %v1106 = vpop.f32.mrb[0].mxu0
  %v1107 = vadd.f32 %v185, %v1106
  %v1108 = vpop.f32.mrb[0].mxu0
  %v1109 = vpop.f32.mrb[0].mxu0
  %v1110 = vadd.f32 %v185, %v1109
  %v1111 = vpop.f32.mrb[0].mxu0
  %1112 = vmatprep.mubr.bf16.mxu0 0
  %1113 = vmatmul.mubr.bf16.gmra.mrb[0].mxu0 %v675
  %v1114 = vpop.f32.mrb[0].mxu0
  %v1115 = vadd.f32 %v185, %v1114
  %v1116 = vpop.f32.mrb[0].mxu0
  %v1117 = vpop.f32.mrb[0].mxu0
  %v1118 = vadd.f32 %v185, %v1117
  %v1119 = vpop.f32.mrb[0].mxu0
  %1120 = vmatprep.mubr.bf16.mxu0 0
  %1121 = vmatmul.mubr.bf16.gmra.mrb[0].mxu0 %v678
  %v1122 = vpop.f32.mrb[0].mxu0
  %v1123 = vadd.f32 %v185, %v1122
  %v1124 = vpop.f32.mrb[0].mxu0
  %v1125 = vpop.f32.mrb[0].mxu0
  %v1126 = vadd.f32 %v185, %v1125
  %v1127 = vpop.f32.mrb[0].mxu0
  %1128 = vmatprep.mubr.bf16.mxu0 0
  %1129 = vmatmul.mubr.bf16.gmra.mrb[0].mxu0 %v681
  %v1130 = vpop.f32.mrb[0].mxu0
  %v1131 = vadd.f32 %v185, %v1130
  %v1132 = vpop.f32.mrb[0].mxu0
  %v1133 = vpop.f32.mrb[0].mxu0
  %v1134 = vadd.f32 %v185, %v1133
  %v1135 = vpop.f32.mrb[0].mxu0
  %1136 = vmatprep.mubr.bf16.mxu0 0
  %1137 = vmatmul.mubr.bf16.gmra.mrb[0].mxu0 %v684
  %v1138 = vpop.f32.mrb[0].mxu0
  %v1139 = vadd.f32 %v185, %v1138
  %v1140 = vpop.f32.mrb[0].mxu0
  %v1141 = vpop.f32.mrb[0].mxu0
  %v1142 = vadd.f32 %v185, %v1141
  %v1143 = vpop.f32.mrb[0].mxu0
  %1144 = vmatprep.mubr.bf16.mxu0 0
  %1145 = vmatmul.mubr.bf16.gmra.mrb[0].mxu0 %v687
  %v1146 = vpop.f32.mrb[0].mxu0
  %v1147 = vadd.f32 %v185, %v1146
  %v1148 = vpop.f32.mrb[0].mxu0
  %v1149 = vpop.f32.mrb[0].mxu0
  %v1150 = vadd.f32 %v185, %v1149
  %v1151 = vpop.f32.mrb[0].mxu0
  %1152 = vmatprep.mubr.bf16.mxu0 0
  %1153 = vmatmul.mubr.bf16.gmra.mrb[0].mxu0 %v690
  %v1154 = vpop.f32.mrb[0].mxu0
  %v1155 = vadd.f32 %v185, %v1154
  %v1156 = vpop.f32.mrb[0].mxu0
  %v1157 = vpop.f32.mrb[0].mxu0
  %v1158 = vadd.f32 %v185, %v1157
  %v1159 = vpop.f32.mrb[0].mxu0
  %1160 = vmatprep.mubr.bf16.mxu0 0
  %1161 = vmatmul.mubr.bf16.gmra.mrb[0].mxu0 %v693
  %v1162 = vpop.f32.mrb[0].mxu0
  %v1163 = vadd.f32 %v185, %v1162
  %v1164 = vpop.f32.mrb[0].mxu0
  %v1165 = vpop.f32.mrb[0].mxu0
  %v1166 = vadd.f32 %v185, %v1165
  %v1167 = vpop.f32.mrb[0].mxu0
  %1168 = vmatprep.mubr.bf16.mxu0 0
  %1169 = vmatmul.mubr.bf16.gmra.mrb[0].mxu0 %v696
  %v1170 = vpop.f32.mrb[0].mxu0
  %v1171 = vadd.f32 %v185, %v1170
  %v1172 = vpop.f32.mrb[0].mxu0
  %v1173 = vpop.f32.mrb[0].mxu0
  %v1174 = vadd.f32 %v185, %v1173
  %v1175 = vpop.f32.mrb[0].mxu0
  %1176 = vmatprep.mubr.bf16.mxu0 0
  %1177 = vmatmul.mubr.bf16.gmra.mrb[0].mxu0 %v699
  %v1178 = vpop.f32.mrb[0].mxu0
  %v1179 = vadd.f32 %v185, %v1178
  %v1180 = vpop.f32.mrb[0].mxu0
  %v1181 = vpop.f32.mrb[0].mxu0
  %v1182 = vadd.f32 %v185, %v1181
  %v1183 = vpop.f32.mrb[0].mxu0
  %1184 = vmatprep.mubr.bf16.mxu0 0
  %1185 = vmatmul.mubr.bf16.gmra.mrb[0].mxu0 %v702
  %v1186 = vpop.f32.mrb[0].mxu0
  %v1187 = vadd.f32 %v185, %v1186
  %v1188 = vpop.f32.mrb[0].mxu0
  %v1189 = vpop.f32.mrb[0].mxu0
  %v1190 = vadd.f32 %v185, %v1189
  %v1191 = vpop.f32.mrb[0].mxu0
  %1192 = vmatprep.mubr.bf16.mxu0 0
  %1193 = vmatmul.mubr.bf16.gmra.mrb[0].mxu0 %v705
  %v1194 = vpop.f32.mrb[0].mxu0
  %v1195 = vadd.f32 %v185, %v1194
  %v1196 = vpop.f32.mrb[0].mxu0
  %v1197 = vpop.f32.mrb[0].mxu0
  %v1198 = vadd.f32 %v185, %v1197
  %v1199 = vpop.f32.mrb[0].mxu0
  %1200 = vmatprep.mubr.bf16.mxu0 0
  %1201 = vmatmul.mubr.bf16.gmra.mrb[0].mxu0 %v708
  %v1202 = vpop.f32.mrb[0].mxu0
  %v1203 = vadd.f32 %v185, %v1202
  %v1204 = vpop.f32.mrb[0].mxu0
  %v1205 = vpop.f32.mrb[0].mxu0
  %v1206 = vadd.f32 %v185, %v1205
  %v1207 = vpop.f32.mrb[0].mxu0
  %1208 = vmatprep.mubr.bf16.mxu0 0
  %1209 = vmatmul.mubr.bf16.gmra.mrb[0].mxu0 %v711
  %v1210 = vpop.f32.mrb[0].mxu0
  %v1211 = vadd.f32 %v185, %v1210
  %v1212 = vpop.f32.mrb[0].mxu0
  %v1213 = vpop.f32.mrb[0].mxu0
  %v1214 = vadd.f32 %v185, %v1213
  %v1215 = vpop.f32.mrb[0].mxu0
  %1216 = vmatprep.mubr.bf16.mxu0 0
  %1217 = vmatmul.mubr.bf16.gmra.mrb[0].mxu0 %v714
  %v1218 = vpop.f32.mrb[0].mxu0
  %v1219 = vadd.f32 %v185, %v1218
  %v1220 = vpop.f32.mrb[0].mxu0
  %v1221 = vpop.f32.mrb[0].mxu0
  %v1222 = vadd.f32 %v185, %v1221
  %v1223 = vpop.f32.mrb[0].mxu0
  %1224 = vmatprep.mubr.bf16.mxu0 0
  %1225 = vmatmul.mubr.bf16.gmra.mrb[0].mxu0 %v717
  %v1226 = vpop.f32.mrb[0].mxu0
  %v1227 = vadd.f32 %v185, %v1226
  %v1228 = vpop.f32.mrb[0].mxu0
  %v1229 = vpop.f32.mrb[0].mxu0
  %v1230 = vadd.f32 %v185, %v1229
  %v1231 = vpop.f32.mrb[0].mxu0
  %1232 = vmatprep.mubr.bf16.mxu0 0
  %1233 = vmatmul.mubr.bf16.gmra.mrb[0].mxu0 %v720
  %v1234 = vpop.f32.mrb[0].mxu0
  %v1235 = vadd.f32 %v185, %v1234
  %v1236 = vpop.f32.mrb[0].mxu0
  %v1237 = vpop.f32.mrb[0].mxu0
  %v1238 = vadd.f32 %v185, %v1237
  %v1239 = vpop.f32.mrb[0].mxu0
  %1240 = vmatprep.mubr.bf16.mxu0 0
  %1241 = vmatmul.mubr.bf16.gmra.mrb[0].mxu0 %v723
  %v1242 = vpop.f32.mrb[0].mxu0
  %v1243 = vadd.f32 %v185, %v1242
  %v1244 = vpop.f32.mrb[0].mxu0
  %v1245 = vpop.f32.mrb[0].mxu0
  %v1246 = vadd.f32 %v185, %v1245
  %v1247 = vpop.f32.mrb[0].mxu0
  %1248 = vmatprep.mubr.bf16.mxu0 0
  %1249 = vmatmul.mubr.bf16.gmra.mrb[0].mxu0 %v726
  %v1250 = vpop.f32.mrb[0].mxu0
  %v1251 = vadd.f32 %v185, %v1250
  %v1252 = vpop.f32.mrb[0].mxu0
  %v1253 = vpop.f32.mrb[0].mxu0
  %v1254 = vadd.f32 %v185, %v1253
  %v1255 = vpop.f32.mrb[0].mxu0
  %1256 = vmatprep.mubr.bf16.mxu0 0
  %1257 = vmatmul.mubr.bf16.gmra.mrb[0].mxu0 %v729
  %v1258 = vpop.f32.mrb[0].mxu0
  %v1259 = vadd.f32 %v185, %v1258
  %v1260 = vpop.f32.mrb[0].mxu0
  %v1261 = vpop.f32.mrb[0].mxu0
  %v1262 = vadd.f32 %v185, %v1261
  %v1263 = vpop.f32.mrb[0].mxu0
  %1264 = vmatprep.mubr.bf16.mxu0 0
  %1265 = vmatmul.mubr.bf16.gmra.mrb[0].mxu0 %v732
  %v1266 = vpop.f32.mrb[0].mxu0
  %v1267 = vadd.f32 %v185, %v1266
  %v1268 = vpop.f32.mrb[0].mxu0
  %v1269 = vpop.f32.mrb[0].mxu0
  %v1270 = vadd.f32 %v185, %v1269
  %v1271 = vpop.f32.mrb[0].mxu0
  %1272 = vmatprep.mubr.bf16.mxu0 0
  %1273 = vmatmul.mubr.bf16.gmra.mrb[0].mxu0 %v735
  %v1274 = vpop.f32.mrb[0].mxu0
  %v1275 = vadd.f32 %v185, %v1274
  %v1276 = vpop.f32.mrb[0].mxu0
  %v1277 = vpop.f32.mrb[0].mxu0
  %v1278 = vadd.f32 %v185, %v1277
  %v1279 = vpop.f32.mrb[0].mxu0
  %1280 = vmatprep.mubr.bf16.mxu0 0
  %1281 = vmatmul.mubr.bf16.gmra.mrb[0].mxu0 %v738
  %v1282 = vpop.f32.mrb[0].mxu0
  %v1283 = vadd.f32 %v185, %v1282
  %v1284 = vpop.f32.mrb[0].mxu0
  %v1285 = vpop.f32.mrb[0].mxu0
  %v1286 = vadd.f32 %v185, %v1285
  %v1287 = vpop.f32.mrb[0].mxu0
  %1288 = vmatprep.mubr.bf16.mxu0 0
  %1289 = vmatmul.mubr.bf16.gmra.mrb[0].mxu0 %v741
  %v1290 = vpop.f32.mrb[0].mxu0
  %v1291 = vadd.f32 %v185, %v1290
  %v1292 = vpop.f32.mrb[0].mxu0
  %v1293 = vpop.f32.mrb[0].mxu0
  %v1294 = vadd.f32 %v185, %v1293
  %v1295 = vpop.f32.mrb[0].mxu0
  %1296 = vmatprep.mubr.bf16.mxu0 0
  %1297 = vmatmul.mubr.bf16.gmra.mrb[0].mxu0 %v744
  %v1298 = vpop.f32.mrb[0].mxu0
  %v1299 = vadd.f32 %v185, %v1298
  %v1300 = vpop.f32.mrb[0].mxu0
  %v1301 = vpop.f32.mrb[0].mxu0
  %v1302 = vadd.f32 %v185, %v1301
  %v1303 = vpop.f32.mrb[0].mxu0
  %1304 = vmatprep.mubr.bf16.mxu0 0
  %1305 = vmatmul.mubr.bf16.gmra.mrb[0].mxu0 %v747
  %v1306 = vpop.f32.mrb[0].mxu0
  %v1307 = vadd.f32 %v185, %v1306
  %v1308 = vpop.f32.mrb[0].mxu0
  %v1309 = vpop.f32.mrb[0].mxu0
  %v1310 = vadd.f32 %v185, %v1309
  %v1311 = vpop.f32.mrb[0].mxu0
  %1312 = vmatprep.mubr.bf16.mxu0 0
  %1313 = vmatmul.mubr.bf16.gmra.mrb[0].mxu0 %v750
  %v1314 = vpop.f32.mrb[0].mxu0
  %v1315 = vadd.f32 %v185, %v1314
  %v1316 = vpop.f32.mrb[0].mxu0
  %v1317 = vpop.f32.mrb[0].mxu0
  %v1318 = vadd.f32 %v185, %v1317
  %v1319 = vpop.f32.mrb[0].mxu0
  %1320 = vmatprep.mubr.bf16.mxu0 0
  %1321 = vmatmul.mubr.bf16.gmra.mrb[0].mxu0 %v753
  %v1322 = vpop.f32.mrb[0].mxu0
  %v1323 = vadd.f32 %v185, %v1322
  %v1324 = vpop.f32.mrb[0].mxu0
  %v1325 = vpop.f32.mrb[0].mxu0
  %v1326 = vadd.f32 %v185, %v1325
  %v1327 = vpop.f32.mrb[0].mxu0
  %1328 = vmatprep.mubr.bf16.mxu0 0
  %1329 = vmatmul.mubr.bf16.gmra.mrb[0].mxu0 %v756
  %v1330 = vpop.f32.mrb[0].mxu0
  %v1331 = vadd.f32 %v185, %v1330
  %v1332 = vpop.f32.mrb[0].mxu0
  %v1333 = vpop.f32.mrb[0].mxu0
  %v1334 = vadd.f32 %v185, %v1333
  %v1335 = vpop.f32.mrb[0].mxu0
  %1336 = vmatprep.mubr.bf16.mxu0 0
  %1337 = vmatmul.mubr.bf16.gmra.mrb[0].mxu0 %v759
  %v1338 = vpop.f32.mrb[0].mxu0
  %v1339 = vadd.f32 %v185, %v1338
  %v1340 = vpop.f32.mrb[0].mxu0
  %v1341 = vpop.f32.mrb[0].mxu0
  %v1342 = vadd.f32 %v185, %v1341
  %v1343 = vpop.f32.mrb[0].mxu0
  %1344 = vmatprep.mubr.bf16.mxu0 0
  %1345 = vmatmul.mubr.bf16.gmra.mrb[0].mxu0 %v762
  %v1346 = vpop.f32.mrb[0].mxu0
  %v1347 = vadd.f32 %v185, %v1346
  %v1348 = vpop.f32.mrb[0].mxu0
  %v1349 = vpop.f32.mrb[0].mxu0
  %v1350 = vadd.f32 %v185, %v1349
  %v1351 = vpop.f32.mrb[0].mxu0
  %1352 = vmatprep.mubr.bf16.mxu0 0
  %1353 = vmatmul.mubr.bf16.gmra.mrb[0].mxu0 %v765
  %v1354 = vpop.f32.mrb[0].mxu0
  %v1355 = vadd.f32 %v185, %v1354
  %v1356 = vpop.f32.mrb[0].mxu0
  %v1357 = vpop.f32.mrb[0].mxu0
  %v1358 = vadd.f32 %v185, %v1357
  %v1359 = vpop.f32.mrb[0].mxu0
  %1360 = vmatprep.mubr.bf16.mxu0 0
  %1361 = vmatmul.mubr.bf16.gmra.mrb[0].mxu0 %v768
  %v1362 = vpop.f32.mrb[0].mxu0
  %v1363 = vadd.f32 %v185, %v1362
  %v1364 = vpop.f32.mrb[0].mxu0
  %v1365 = vpop.f32.mrb[0].mxu0
  %v1366 = vadd.f32 %v185, %v1365
  %v1367 = vpop.f32.mrb[0].mxu0
  %1368 = vmatprep.mubr.bf16.mxu0 0
  %1369 = vmatmul.mubr.bf16.gmra.mrb[0].mxu0 %v771
  %v1370 = vpop.f32.mrb[0].mxu0
  %v1371 = vadd.f32 %v185, %v1370
  %v1372 = vpop.f32.mrb[0].mxu0
  %v1373 = vpop.f32.mrb[0].mxu0
  %v1374 = vadd.f32 %v185, %v1373
  %v1375 = vpop.f32.mrb[0].mxu0
  %1376 = vmatprep.mubr.bf16.mxu0 0
  %1377 = vmatmul.mubr.bf16.gmra.mrb[0].mxu0 %v774
  %v1378 = vpop.f32.mrb[0].mxu0
  %v1379 = vadd.f32 %v185, %v1378
  %v1380 = vpop.f32.mrb[0].mxu0
  %v1381 = vpop.f32.mrb[0].mxu0
  %v1382 = vadd.f32 %v185, %v1381
  %v1383 = vpop.f32.mrb[0].mxu0
  %1384 = vdwg.mxu0
  %v1385 = vmax.f32 %v811, 0.0
  %v1386 = vmax.f32 %v814, 0.0
  %v1387 = vmax.f32 %v819, 0.0
  %v1388 = vmax.f32 %v822, 0.0
  %v1389 = vmax.f32 %v827, 0.0
  %v1390 = vmax.f32 %v830, 0.0
  %v1391 = vmax.f32 %v835, 0.0
  %v1392 = vmax.f32 %v838, 0.0
  %v1393 = vmax.f32 %v843, 0.0
  %v1394 = vmax.f32 %v846, 0.0
  %v1395 = vmax.f32 %v851, 0.0
  %v1396 = vmax.f32 %v854, 0.0
  %v1397 = vmax.f32 %v859, 0.0
  %v1398 = vmax.f32 %v862, 0.0
  %v1399 = vmax.f32 %v867, 0.0
  %v1400 = vmax.f32 %v870, 0.0
  %v1401 = vmax.f32 %v875, 0.0
  %v1402 = vmax.f32 %v878, 0.0
  %v1403 = vmax.f32 %v883, 0.0
  %v1404 = vmax.f32 %v886, 0.0
  %v1405 = vmax.f32 %v891, 0.0
  %v1406 = vmax.f32 %v894, 0.0
  %v1407 = vmax.f32 %v899, 0.0
  %v1408 = vmax.f32 %v902, 0.0
  %v1409 = vmax.f32 %v907, 0.0
  %v1410 = vmax.f32 %v910, 0.0
  %v1411 = vmax.f32 %v915, 0.0
  %v1412 = vmax.f32 %v918, 0.0
  %v1413 = vmax.f32 %v923, 0.0
  %v1414 = vmax.f32 %v926, 0.0
  %v1415 = vmax.f32 %v931, 0.0
  %v1416 = vmax.f32 %v934, 0.0
  %v1417 = vmax.f32 %v939, 0.0
  %v1418 = vmax.f32 %v942, 0.0
  %v1419 = vmax.f32 %v947, 0.0
  %v1420 = vmax.f32 %v950, 0.0
  %v1421 = vmax.f32 %v955, 0.0
  %v1422 = vmax.f32 %v958, 0.0
  %v1423 = vmax.f32 %v963, 0.0
  %v1424 = vmax.f32 %v966, 0.0
  %v1425 = vmax.f32 %v971, 0.0
  %v1426 = vmax.f32 %v974, 0.0
  %v1427 = vmax.f32 %v979, 0.0
  %v1428 = vmax.f32 %v982, 0.0
  %v1429 = vmax.f32 %v987, 0.0
  %v1430 = vmax.f32 %v990, 0.0
  %v1431 = vmax.f32 %v995, 0.0
  %v1432 = vmax.f32 %v998, 0.0
  %v1433 = vmax.f32 %v1003, 0.0
  %v1434 = vmax.f32 %v1006, 0.0
  %v1435 = vmax.f32 %v1011, 0.0
  %v1436 = vmax.f32 %v1014, 0.0
  %v1437 = vmax.f32 %v1019, 0.0
  %v1438 = vmax.f32 %v1022, 0.0
  %v1439 = vmax.f32 %v1027, 0.0
  %v1440 = vmax.f32 %v1030, 0.0
  %v1441 = vmax.f32 %v1035, 0.0
  %v1442 = vmax.f32 %v1038, 0.0
  %v1443 = vmax.f32 %v1043, 0.0
  %v1444 = vmax.f32 %v1046, 0.0
  %v1445 = vmax.f32 %v1051, 0.0
  %v1446 = vmax.f32 %v1054, 0.0
  %v1447 = vmax.f32 %v1059, 0.0
  %v1448 = vmax.f32 %v1062, 0.0
  %v1449 = vmax.f32 %v1067, 0.0
  %v1450 = vmax.f32 %v1070, 0.0
  %v1451 = vmax.f32 %v1075, 0.0
  %v1452 = vmax.f32 %v1078, 0.0
  %v1453 = vmax.f32 %v1083, 0.0
  %v1454 = vmax.f32 %v1086, 0.0
  %v1455 = vmax.f32 %v1091, 0.0
  %v1456 = vmax.f32 %v1094, 0.0
  %v1457 = vmax.f32 %v1099, 0.0
  %v1458 = vmax.f32 %v1102, 0.0
  %v1459 = vmax.f32 %v1107, 0.0
  %v1460 = vmax.f32 %v1110, 0.0
  %v1461 = vmax.f32 %v1115, 0.0
  %v1462 = vmax.f32 %v1118, 0.0
  %v1463 = vmax.f32 %v1123, 0.0
  %v1464 = vmax.f32 %v1126, 0.0
  %v1465 = vmax.f32 %v1131, 0.0
  %v1466 = vmax.f32 %v1134, 0.0
  %v1467 = vmax.f32 %v1139, 0.0
  %v1468 = vmax.f32 %v1142, 0.0
  %v1469 = vmax.f32 %v1147, 0.0
  %v1470 = vmax.f32 %v1150, 0.0
  %v1471 = vmax.f32 %v1155, 0.0
  %v1472 = vmax.f32 %v1158, 0.0
  %v1473 = vmax.f32 %v1163, 0.0
  %v1474 = vmax.f32 %v1166, 0.0
  %v1475 = vmax.f32 %v1171, 0.0
  %v1476 = vmax.f32 %v1174, 0.0
  %v1477 = vmax.f32 %v1179, 0.0
  %v1478 = vmax.f32 %v1182, 0.0
  %v1479 = vmax.f32 %v1187, 0.0
  %v1480 = vmax.f32 %v1190, 0.0
  %v1481 = vmax.f32 %v1195, 0.0
  %v1482 = vmax.f32 %v1198, 0.0
  %v1483 = vmax.f32 %v1203, 0.0
  %v1484 = vmax.f32 %v1206, 0.0
  %v1485 = vmax.f32 %v1211, 0.0
  %v1486 = vmax.f32 %v1214, 0.0
  %v1487 = vmax.f32 %v1219, 0.0
  %v1488 = vmax.f32 %v1222, 0.0
  %v1489 = vmax.f32 %v1227, 0.0
  %v1490 = vmax.f32 %v1230, 0.0
  %v1491 = vmax.f32 %v1235, 0.0
  %v1492 = vmax.f32 %v1238, 0.0
  %v1493 = vmax.f32 %v1243, 0.0
  %v1494 = vmax.f32 %v1246, 0.0
  %v1495 = vmax.f32 %v1251, 0.0
  %v1496 = vmax.f32 %v1254, 0.0
  %v1497 = vmax.f32 %v1259, 0.0
  %v1498 = vmax.f32 %v1262, 0.0
  %v1499 = vmax.f32 %v1267, 0.0
  %v1500 = vmax.f32 %v1270, 0.0
  %v1501 = vmax.f32 %v1275, 0.0
  %v1502 = vmax.f32 %v1278, 0.0
  %v1503 = vmax.f32 %v1283, 0.0
  %v1504 = vmax.f32 %v1286, 0.0
  %v1505 = vmax.f32 %v1291, 0.0
  %v1506 = vmax.f32 %v1294, 0.0
  %v1507 = vmax.f32 %v1299, 0.0
  %v1508 = vmax.f32 %v1302, 0.0
  %v1509 = vmax.f32 %v1307, 0.0
  %v1510 = vmax.f32 %v1310, 0.0
  %v1511 = vmax.f32 %v1315, 0.0
  %v1512 = vmax.f32 %v1318, 0.0
  %v1513 = vmax.f32 %v1323, 0.0
  %v1514 = vmax.f32 %v1326, 0.0
  %v1515 = vmax.f32 %v1331, 0.0
  %v1516 = vmax.f32 %v1334, 0.0
  %v1517 = vmax.f32 %v1339, 0.0
  %v1518 = vmax.f32 %v1342, 0.0
  %v1519 = vmax.f32 %v1347, 0.0
  %v1520 = vmax.f32 %v1350, 0.0
  %v1521 = vmax.f32 %v1355, 0.0
  %v1522 = vmax.f32 %v1358, 0.0
  %v1523 = vmax.f32 %v1363, 0.0
  %v1524 = vmax.f32 %v1366, 0.0
  %v1525 = vmax.f32 %v1371, 0.0
  %v1526 = vmax.f32 %v1374, 0.0
  %v1527 = vmax.f32 %v1379, 0.0
  %v1528 = vmax.f32 %v1382, 0.0
  %1529 = vst [vmem:[%s8] sm:$0xff] %v1385
  %1530 = vst [vmem:[%s8 + $0x8] sm:$0xff] %v1386
  %1531 = vst [vmem:[%s8 + $0x10] sm:$0xff] %v1387
  %1532 = vst [vmem:[%s8 + $0x18] sm:$0xff] %v1388
  %1533 = vst [vmem:[%s8 + $0x20] sm:$0xff] %v1389
  %1534 = vst [vmem:[%s8 + $0x28] sm:$0xff] %v1390
  %1535 = vst [vmem:[%s8 + $0x30] sm:$0xff] %v1391
  %1536 = vst [vmem:[%s8 + $0x38] sm:$0xff] %v1392
  %1537 = vst [vmem:[%s8 + $0x40] sm:$0xff] %v1393
  %1538 = vst [vmem:[%s8 + $0x48] sm:$0xff] %v1394
  %1539 = vst [vmem:[%s8 + $0x50] sm:$0xff] %v1395
  %1540 = vst [vmem:[%s8 + $0x58] sm:$0xff] %v1396
  %1541 = vst [vmem:[%s8 + $0x60] sm:$0xff] %v1397
  %1542 = vst [vmem:[%s8 + $0x68] sm:$0xff] %v1398
  %1543 = vst [vmem:[%s8 + $0x70] sm:$0xff] %v1399
  %1544 = vst [vmem:[%s8 + $0x78] sm:$0xff] %v1400
  %1545 = vst [vmem:[%s8 + $0x80] sm:$0xff] %v1401
  %1546 = vst [vmem:[%s8 + $0x88] sm:$0xff] %v1402
  %1547 = vst [vmem:[%s8 + $0x90] sm:$0xff] %v1403
  %1548 = vst [vmem:[%s8 + $0x98] sm:$0xff] %v1404
  %1549 = vst [vmem:[%s8 + $0xa0] sm:$0xff] %v1405
  %1550 = vst [vmem:[%s8 + $0xa8] sm:$0xff] %v1406
  %1551 = vst [vmem:[%s8 + $0xb0] sm:$0xff] %v1407
  %1552 = vst [vmem:[%s8 + $0xb8] sm:$0xff] %v1408
  %1553 = vst [vmem:[%s8 + $0xc0] sm:$0xff] %v1409
  %1554 = vst [vmem:[%s8 + $0xc8] sm:$0xff] %v1410
  %1555 = vst [vmem:[%s8 + $0xd0] sm:$0xff] %v1411
  %1556 = vst [vmem:[%s8 + $0xd8] sm:$0xff] %v1412
  %1557 = vst [vmem:[%s8 + $0xe0] sm:$0xff] %v1413
  %1558 = vst [vmem:[%s8 + $0xe8] sm:$0xff] %v1414
  %1559 = vst [vmem:[%s8 + $0xf0] sm:$0xff] %v1415
  %1560 = vst [vmem:[%s8 + $0xf8] sm:$0xff] %v1416
  %1561 = vst [vmem:[%s8 + $0x100] sm:$0xff] %v1417
  %1562 = vst [vmem:[%s8 + $0x108] sm:$0xff] %v1418
  %1563 = vst [vmem:[%s8 + $0x110] sm:$0xff] %v1419
  %1564 = vst [vmem:[%s8 + $0x118] sm:$0xff] %v1420
  %1565 = vst [vmem:[%s8 + $0x120] sm:$0xff] %v1421
  %1566 = vst [vmem:[%s8 + $0x128] sm:$0xff] %v1422
  %1567 = vst [vmem:[%s8 + $0x130] sm:$0xff] %v1423
  %1568 = vst [vmem:[%s8 + $0x138] sm:$0xff] %v1424
  %1569 = vst [vmem:[%s8 + $0x140] sm:$0xff] %v1425
  %1570 = vst [vmem:[%s8 + $0x148] sm:$0xff] %v1426
  %1571 = vst [vmem:[%s8 + $0x150] sm:$0xff] %v1427
  %1572 = vst [vmem:[%s8 + $0x158] sm:$0xff] %v1428
  %1573 = vst [vmem:[%s8 + $0x160] sm:$0xff] %v1429
  %1574 = vst [vmem:[%s8 + $0x168] sm:$0xff] %v1430
  %1575 = vst [vmem:[%s8 + $0x170] sm:$0xff] %v1431
  %1576 = vst [vmem:[%s8 + $0x178] sm:$0xff] %v1432
  %1577 = vst [vmem:[%s8 + $0x180] sm:$0xff] %v1433
  %1578 = vst [vmem:[%s8 + $0x188] sm:$0xff] %v1434
  %1579 = vst [vmem:[%s8 + $0x190] sm:$0xff] %v1435
  %1580 = vst [vmem:[%s8 + $0x198] sm:$0xff] %v1436
  %1581 = vst [vmem:[%s8 + $0x1a0] sm:$0xff] %v1437
  %1582 = vst [vmem:[%s8 + $0x1a8] sm:$0xff] %v1438
  %1583 = vst [vmem:[%s8 + $0x1b0] sm:$0xff] %v1439
  %1584 = vst [vmem:[%s8 + $0x1b8] sm:$0xff] %v1440
  %1585 = vst [vmem:[%s8 + $0x1c0] sm:$0xff] %v1441
  %1586 = vst [vmem:[%s8 + $0x1c8] sm:$0xff] %v1442
  %1587 = vst [vmem:[%s8 + $0x1d0] sm:$0xff] %v1443
  %1588 = vst [vmem:[%s8 + $0x1d8] sm:$0xff] %v1444
  %1589 = vst [vmem:[%s8 + $0x1e0] sm:$0xff] %v1445
  %1590 = vst [vmem:[%s8 + $0x1e8] sm:$0xff] %v1446
  %1591 = vst [vmem:[%s8 + $0x1f0] sm:$0xff] %v1447
  %1592 = vst [vmem:[%s8 + $0x1f8] sm:$0xff] %v1448
  %1593 = vst [vmem:[%s8 + $0x200] sm:$0xff] %v1449
  %1594 = vst [vmem:[%s8 + $0x208] sm:$0xff] %v1450
  %1595 = vst [vmem:[%s8 + $0x210] sm:$0xff] %v1451
  %1596 = vst [vmem:[%s8 + $0x218] sm:$0xff] %v1452
  %1597 = vst [vmem:[%s8 + $0x220] sm:$0xff] %v1453
  %1598 = vst [vmem:[%s8 + $0x228] sm:$0xff] %v1454
  %1599 = vst [vmem:[%s8 + $0x230] sm:$0xff] %v1455
  %1600 = vst [vmem:[%s8 + $0x238] sm:$0xff] %v1456
  %1601 = vst [vmem:[%s8 + $0x240] sm:$0xff] %v1457
  %1602 = vst [vmem:[%s8 + $0x248] sm:$0xff] %v1458
  %1603 = vst [vmem:[%s8 + $0x250] sm:$0xff] %v1459
  %1604 = vst [vmem:[%s8 + $0x258] sm:$0xff] %v1460
  %1605 = vst [vmem:[%s8 + $0x260] sm:$0xff] %v1461
  %1606 = vst [vmem:[%s8 + $0x268] sm:$0xff] %v1462
  %1607 = vst [vmem:[%s8 + $0x270] sm:$0xff] %v1463
  %1608 = vst [vmem:[%s8 + $0x278] sm:$0xff] %v1464
  %1609 = vst [vmem:[%s8 + $0x280] sm:$0xff] %v1465
  %1610 = vst [vmem:[%s8 + $0x288] sm:$0xff] %v1466
  %1611 = vst [vmem:[%s8 + $0x290] sm:$0xff] %v1467
  %1612 = vst [vmem:[%s8 + $0x298] sm:$0xff] %v1468
  %1613 = vst [vmem:[%s8 + $0x2a0] sm:$0xff] %v1469
  %1614 = vst [vmem:[%s8 + $0x2a8] sm:$0xff] %v1470
  %1615 = vst [vmem:[%s8 + $0x2b0] sm:$0xff] %v1471
  %1616 = vst [vmem:[%s8 + $0x2b8] sm:$0xff] %v1472
  %1617 = vst [vmem:[%s8 + $0x2c0] sm:$0xff] %v1473
  %1618 = vst [vmem:[%s8 + $0x2c8] sm:$0xff] %v1474
  %1619 = vst [vmem:[%s8 + $0x2d0] sm:$0xff] %v1475
  %1620 = vst [vmem:[%s8 + $0x2d8] sm:$0xff] %v1476
  %1621 = vst [vmem:[%s8 + $0x2e0] sm:$0xff] %v1477
  %1622 = vst [vmem:[%s8 + $0x2e8] sm:$0xff] %v1478
  %1623 = vst [vmem:[%s8 + $0x2f0] sm:$0xff] %v1479
  %1624 = vst [vmem:[%s8 + $0x2f8] sm:$0xff] %v1480
  %1625 = vst [vmem:[%s8 + $0x300] sm:$0xff] %v1481
  %1626 = vst [vmem:[%s8 + $0x308] sm:$0xff] %v1482
  %1627 = vst [vmem:[%s8 + $0x310] sm:$0xff] %v1483
  %1628 = vst [vmem:[%s8 + $0x318] sm:$0xff] %v1484
  %1629 = vst [vmem:[%s8 + $0x320] sm:$0xff] %v1485
  %1630 = vst [vmem:[%s8 + $0x328] sm:$0xff] %v1486
  %1631 = vst [vmem:[%s8 + $0x330] sm:$0xff] %v1487
  %1632 = vst [vmem:[%s8 + $0x338] sm:$0xff] %v1488
  %1633 = vst [vmem:[%s8 + $0x340] sm:$0xff] %v1489
  %1634 = vst [vmem:[%s8 + $0x348] sm:$0xff] %v1490
  %1635 = vst [vmem:[%s8 + $0x350] sm:$0xff] %v1491
  %1636 = vst [vmem:[%s8 + $0x358] sm:$0xff] %v1492
  %1637 = vst [vmem:[%s8 + $0x360] sm:$0xff] %v1493
  %1638 = vst [vmem:[%s8 + $0x368] sm:$0xff] %v1494
  %1639 = vst [vmem:[%s8 + $0x370] sm:$0xff] %v1495
  %1640 = vst [vmem:[%s8 + $0x378] sm:$0xff] %v1496
  %1641 = vst [vmem:[%s8 + $0x380] sm:$0xff] %v1497
  %1642 = vst [vmem:[%s8 + $0x388] sm:$0xff] %v1498
  %1643 = vst [vmem:[%s8 + $0x390] sm:$0xff] %v1499
  %1644 = vst [vmem:[%s8 + $0x398] sm:$0xff] %v1500
  %1645 = vst [vmem:[%s8 + $0x3a0] sm:$0xff] %v1501
  %1646 = vst [vmem:[%s8 + $0x3a8] sm:$0xff] %v1502
  %1647 = vst [vmem:[%s8 + $0x3b0] sm:$0xff] %v1503
  %1648 = vst [vmem:[%s8 + $0x3b8] sm:$0xff] %v1504
  %1649 = vst [vmem:[%s8 + $0x3c0] sm:$0xff] %v1505
  %1650 = vst [vmem:[%s8 + $0x3c8] sm:$0xff] %v1506
  %1651 = vst [vmem:[%s8 + $0x3d0] sm:$0xff] %v1507
  %1652 = vst [vmem:[%s8 + $0x3d8] sm:$0xff] %v1508
  %1653 = vst [vmem:[%s8 + $0x3e0] sm:$0xff] %v1509
  %1654 = vst [vmem:[%s8 + $0x3e8] sm:$0xff] %v1510
  %1655 = vst [vmem:[%s8 + $0x3f0] sm:$0xff] %v1511
  %1656 = vst [vmem:[%s8 + $0x3f8] sm:$0xff] %v1512
  %1657 = vst [vmem:[%s8 + $0x400] sm:$0xff] %v1513
  %1658 = vst [vmem:[%s8 + $0x408] sm:$0xff] %v1514
  %1659 = vst [vmem:[%s8 + $0x410] sm:$0xff] %v1515
  %1660 = vst [vmem:[%s8 + $0x418] sm:$0xff] %v1516
  %1661 = vst [vmem:[%s8 + $0x420] sm:$0xff] %v1517
  %1662 = vst [vmem:[%s8 + $0x428] sm:$0xff] %v1518
  %1663 = vst [vmem:[%s8 + $0x430] sm:$0xff] %v1519
  %1664 = vst [vmem:[%s8 + $0x438] sm:$0xff] %v1520
  %1665 = vst [vmem:[%s8 + $0x440] sm:$0xff] %v1521
  %1666 = vst [vmem:[%s8 + $0x448] sm:$0xff] %v1522
  %1667 = vst [vmem:[%s8 + $0x450] sm:$0xff] %v1523
  %1668 = vst [vmem:[%s8 + $0x458] sm:$0xff] %v1524
  %1669 = vst [vmem:[%s8 + $0x460] sm:$0xff] %v1525
  %1670 = vst [vmem:[%s8 + $0x468] sm:$0xff] %v1526
  %1671 = vst [vmem:[%s8 + $0x470] sm:$0xff] %v1527
  %1672 = vst [vmem:[%s8 + $0x478] sm:$0xff] %v1528
  %v1673 = vld [vmem:[%s1] sm:$0xf]
  %v1674 = vld [vmem:[%s1 + $0x4] sm:$0xf]
  %v1675 = vld [vmem:[%s1 + $0x8] sm:$0xf]
  %v1676 = vld [vmem:[%s1 + $0xc] sm:$0xf]
  %v1677 = vld [vmem:[%s1 + $0x10] sm:$0xf]
  %v1678 = vld [vmem:[%s1 + $0x14] sm:$0xf]
  %v1679 = vld [vmem:[%s1 + $0x18] sm:$0xf]
  %v1680 = vld [vmem:[%s1 + $0x1c] sm:$0xf]
  %v1681 = vld [vmem:[%s1 + $0x20] sm:$0xf]
  %v1682 = vld [vmem:[%s1 + $0x24] sm:$0xf]
  %v1683 = vld [vmem:[%s1 + $0x28] sm:$0xf]
  %v1684 = vld [vmem:[%s1 + $0x2c] sm:$0xf]
  %v1685 = vld [vmem:[%s1 + $0x30] sm:$0xf]
  %v1686 = vld [vmem:[%s1 + $0x34] sm:$0xf]
  %v1687 = vld [vmem:[%s1 + $0x38] sm:$0xf]
  %v1688 = vld [vmem:[%s1 + $0x3c] sm:$0xf]
  %v1689 = vld [vmem:[%s1 + $0x40] sm:$0xf]
  %v1690 = vld [vmem:[%s1 + $0x44] sm:$0xf]
  %v1691 = vld [vmem:[%s1 + $0x48] sm:$0xf]
  %v1692 = vld [vmem:[%s1 + $0x4c] sm:$0xf]
  %v1693 = vld [vmem:[%s1 + $0x50] sm:$0xf]
  %v1694 = vld [vmem:[%s1 + $0x54] sm:$0xf]
  %v1695 = vld [vmem:[%s1 + $0x58] sm:$0xf]
  %v1696 = vld [vmem:[%s1 + $0x5c] sm:$0xf]
  %v1697 = vld [vmem:[%s1 + $0x60] sm:$0xf]
  %v1698 = vld [vmem:[%s1 + $0x64] sm:$0xf]
  %v1699 = vld [vmem:[%s1 + $0x68] sm:$0xf]
  %v1700 = vld [vmem:[%s1 + $0x6c] sm:$0xf]
  %v1701 = vld [vmem:[%s1 + $0x70] sm:$0xf]
  %v1702 = vld [vmem:[%s1 + $0x74] sm:$0xf]
  %v1703 = vld [vmem:[%s1 + $0x78] sm:$0xf]
  %v1704 = vld [vmem:[%s1 + $0x7c] sm:$0xf]
  %v1705 = vld [vmem:[%s1 + $0x80] sm:$0xf]
  %v1706 = vld [vmem:[%s1 + $0x84] sm:$0xf]
  %v1707 = vld [vmem:[%s1 + $0x88] sm:$0xf]
  %v1708 = vld [vmem:[%s1 + $0x8c] sm:$0xf]
  %v1709 = vld [vmem:[%s1 + $0x90] sm:$0xf]
  %v1710 = vld [vmem:[%s1 + $0x94] sm:$0xf]
  %v1711 = vld [vmem:[%s1 + $0x98] sm:$0xf]
  %v1712 = vld [vmem:[%s1 + $0x9c] sm:$0xf]
  %v1713 = vld [vmem:[%s1 + $0xa0] sm:$0xf]
  %v1714 = vld [vmem:[%s1 + $0xa4] sm:$0xf]
  %v1715 = vld [vmem:[%s1 + $0xa8] sm:$0xf]
  %v1716 = vld [vmem:[%s1 + $0xac] sm:$0xf]
  %v1717 = vld [vmem:[%s1 + $0xb0] sm:$0xf]
  %v1718 = vld [vmem:[%s1 + $0xb4] sm:$0xf]
  %v1719 = vld [vmem:[%s1 + $0xb8] sm:$0xf]
  %v1720 = vld [vmem:[%s1 + $0xbc] sm:$0xf]
  %v1721 = vld [vmem:[%s1 + $0xc0] sm:$0xf]
  %v1722 = vld [vmem:[%s1 + $0xc4] sm:$0xf]
  %v1723 = vld [vmem:[%s1 + $0xc8] sm:$0xf]
  %v1724 = vld [vmem:[%s1 + $0xcc] sm:$0xf]
  %v1725 = vld [vmem:[%s1 + $0xd0] sm:$0xf]
  %v1726 = vld [vmem:[%s1 + $0xd4] sm:$0xf]
  %v1727 = vld [vmem:[%s1 + $0xd8] sm:$0xf]
  %v1728 = vld [vmem:[%s1 + $0xdc] sm:$0xf]
  %v1729 = vld [vmem:[%s1 + $0xe0] sm:$0xf]
  %v1730 = vld [vmem:[%s1 + $0xe4] sm:$0xf]
  %v1731 = vld [vmem:[%s1 + $0xe8] sm:$0xf]
  %v1732 = vld [vmem:[%s1 + $0xec] sm:$0xf]
  %v1733 = vld [vmem:[%s1 + $0xf0] sm:$0xf]
  %v1734 = vld [vmem:[%s1 + $0xf4] sm:$0xf]
  %v1735 = vld [vmem:[%s1 + $0xf8] sm:$0xf]
  %v1736 = vld [vmem:[%s1 + $0xfc] sm:$0xf]
  %v1737 = vld [vmem:[%s1 + $0x100] sm:$0xf]
  %v1738 = vld [vmem:[%s1 + $0x104] sm:$0xf]
  %v1739 = vld [vmem:[%s1 + $0x108] sm:$0xf]
  %v1740 = vld [vmem:[%s1 + $0x10c] sm:$0xf]
  %v1741 = vld [vmem:[%s1 + $0x110] sm:$0xf]
  %v1742 = vld [vmem:[%s1 + $0x114] sm:$0xf]
  %v1743 = vld [vmem:[%s1 + $0x118] sm:$0xf]
  %v1744 = vld [vmem:[%s1 + $0x11c] sm:$0xf]
  %v1745 = vld [vmem:[%s1 + $0x120] sm:$0xf]
  %v1746 = vld [vmem:[%s1 + $0x124] sm:$0xf]
  %v1747 = vld [vmem:[%s1 + $0x128] sm:$0xf]
  %v1748 = vld [vmem:[%s1 + $0x12c] sm:$0xf]
  %v1749 = vld [vmem:[%s1 + $0x130] sm:$0xf]
  %v1750 = vld [vmem:[%s1 + $0x134] sm:$0xf]
  %v1751 = vld [vmem:[%s1 + $0x138] sm:$0xf]
  %v1752 = vld [vmem:[%s1 + $0x13c] sm:$0xf]
  %v1753 = vld [vmem:[%s1 + $0x140] sm:$0xf]
  %v1754 = vld [vmem:[%s1 + $0x144] sm:$0xf]
  %v1755 = vld [vmem:[%s1 + $0x148] sm:$0xf]
  %v1756 = vld [vmem:[%s1 + $0x14c] sm:$0xf]
  %v1757 = vld [vmem:[%s1 + $0x150] sm:$0xf]
  %v1758 = vld [vmem:[%s1 + $0x154] sm:$0xf]
  %v1759 = vld [vmem:[%s1 + $0x158] sm:$0xf]
  %v1760 = vld [vmem:[%s1 + $0x15c] sm:$0xf]
  %v1761 = vld [vmem:[%s1 + $0x160] sm:$0xf]
  %v1762 = vld [vmem:[%s1 + $0x164] sm:$0xf]
  %v1763 = vld [vmem:[%s1 + $0x168] sm:$0xf]
  %v1764 = vld [vmem:[%s1 + $0x16c] sm:$0xf]
  %v1765 = vld [vmem:[%s1 + $0x170] sm:$0xf]
  %v1766 = vld [vmem:[%s1 + $0x174] sm:$0xf]
  %v1767 = vld [vmem:[%s1 + $0x178] sm:$0xf]
  %v1768 = vld [vmem:[%s1 + $0x17c] sm:$0xf]
  %v1769 = vld [vmem:[%s1 + $0x180] sm:$0xf]
  %v1770 = vld [vmem:[%s1 + $0x184] sm:$0xf]
  %v1771 = vld [vmem:[%s1 + $0x188] sm:$0xf]
  %v1772 = vld [vmem:[%s1 + $0x18c] sm:$0xf]
  %v1773 = vld [vmem:[%s4] sm:$0xff]
  %v1774 = vld [vmem:[%s4 + $0x8] sm:$0xff]
  %v1775 = vld [vmem:[%s4 + $0x10] sm:$0xff]
  %v1776 = vld [vmem:[%s4 + $0x18] sm:$0xff]
  %v1777 = vld [vmem:[%s4 + $0x20] sm:$0xff]
  %v1778 = vld [vmem:[%s4 + $0x28] sm:$0xff]
  %v1779 = vld [vmem:[%s4 + $0x30] sm:$0xff]
  %v1780 = vld [vmem:[%s4 + $0x38] sm:$0xff]
  %v1781 = vld [vmem:[%s4 + $0x40] sm:$0xff]
  %v1782 = vld [vmem:[%s4 + $0x48] sm:$0xff]
  %v1783 = vld [vmem:[%s4 + $0x50] sm:$0xff]
  %v1784 = vld [vmem:[%s4 + $0x58] sm:$0xff]
  %v1785 = vld [vmem:[%s4 + $0x60] sm:$0xff]
  %v1786 = vld [vmem:[%s4 + $0x68] sm:$0xff]
  %v1787 = vld [vmem:[%s4 + $0x70] sm:$0xff]
  %v1788 = vld [vmem:[%s4 + $0x78] sm:$0xff]
  %v1789 = vld [vmem:[%s5] sm:$0x3]
  %v1791 = vlaneseq
  %v1792 = vshrl.u32 %v1791, 7
  %v1793 = vsub.s32 0, %v1792
  %v1794 = vrot.slane %v1789, %v1793
  %v1795 = vlaneseq
  %v1796 = vshrl.u32 %v1795, 7
  %v1797 = vsub.s32 1, %v1796
  %v1798 = vrot.slane %v1789, %v1797
  %v1901 = vunpack.c.l.b16 %v1673
  %v1902 = vunpack.c.l.b16 %v1674
  %v1903 = vunpack.c.l.b16 %v1675
  %v1904 = vunpack.c.l.b16 %v1676
  %v1905 = vunpack.c.l.b16 %v1677
  %v1906 = vunpack.c.l.b16 %v1678
  %v1907 = vunpack.c.l.b16 %v1679
  %v1908 = vunpack.c.l.b16 %v1680
  %v1909 = vunpack.c.l.b16 %v1681
  %v1910 = vunpack.c.l.b16 %v1682
  %v1911 = vunpack.c.l.b16 %v1683
  %v1912 = vunpack.c.l.b16 %v1684
  %v1913 = vunpack.c.l.b16 %v1685
  %v1914 = vunpack.c.l.b16 %v1686
  %v1915 = vunpack.c.l.b16 %v1687
  %v1916 = vunpack.c.l.b16 %v1688
  %v1917 = vunpack.c.l.b16 %v1689
  %v1918 = vunpack.c.l.b16 %v1690
  %v1919 = vunpack.c.l.b16 %v1691
  %v1920 = vunpack.c.l.b16 %v1692
  %v1921 = vunpack.c.l.b16 %v1693
  %v1922 = vunpack.c.l.b16 %v1694
  %v1923 = vunpack.c.l.b16 %v1695
  %v1924 = vunpack.c.l.b16 %v1696
  %v1925 = vunpack.c.l.b16 %v1697
  %v1926 = vunpack.c.l.b16 %v1698
  %v1927 = vunpack.c.l.b16 %v1699
  %v1928 = vunpack.c.l.b16 %v1700
  %v1929 = vunpack.c.l.b16 %v1701
  %v1930 = vunpack.c.l.b16 %v1702
  %v1931 = vunpack.c.l.b16 %v1703
  %v1932 = vunpack.c.l.b16 %v1704
  %v1933 = vunpack.c.l.b16 %v1705
  %v1934 = vunpack.c.l.b16 %v1706
  %v1935 = vunpack.c.l.b16 %v1707
  %v1936 = vunpack.c.l.b16 %v1708
  %v1937 = vunpack.c.l.b16 %v1709
  %v1938 = vunpack.c.l.b16 %v1710
  %v1939 = vunpack.c.l.b16 %v1711
  %v1940 = vunpack.c.l.b16 %v1712
  %v1941 = vunpack.c.l.b16 %v1713
  %v1942 = vunpack.c.l.b16 %v1714
  %v1943 = vunpack.c.l.b16 %v1715
  %v1944 = vunpack.c.l.b16 %v1716
  %v1945 = vunpack.c.l.b16 %v1717
  %v1946 = vunpack.c.l.b16 %v1718
  %v1947 = vunpack.c.l.b16 %v1719
  %v1948 = vunpack.c.l.b16 %v1720
  %v1949 = vunpack.c.l.b16 %v1721
  %v1950 = vunpack.c.l.b16 %v1722
  %v1951 = vunpack.c.l.b16 %v1723
  %v1952 = vunpack.c.l.b16 %v1724
  %v1953 = vunpack.c.l.b16 %v1725
  %v1954 = vunpack.c.l.b16 %v1726
  %v1955 = vunpack.c.l.b16 %v1727
  %v1956 = vunpack.c.l.b16 %v1728
  %v1957 = vunpack.c.l.b16 %v1729
  %v1958 = vunpack.c.l.b16 %v1730
  %v1959 = vunpack.c.l.b16 %v1731
  %v1960 = vunpack.c.l.b16 %v1732
  %v1961 = vunpack.c.l.b16 %v1733
  %v1962 = vunpack.c.l.b16 %v1734
  %v1963 = vunpack.c.l.b16 %v1735
  %v1964 = vunpack.c.l.b16 %v1736
  %v1965 = vunpack.c.l.b16 %v1737
  %v1966 = vunpack.c.l.b16 %v1738
  %v1967 = vunpack.c.l.b16 %v1739
  %v1968 = vunpack.c.l.b16 %v1740
  %v1969 = vunpack.c.l.b16 %v1741
  %v1970 = vunpack.c.l.b16 %v1742
  %v1971 = vunpack.c.l.b16 %v1743
  %v1972 = vunpack.c.l.b16 %v1744
  %v1973 = vunpack.c.l.b16 %v1745
  %v1974 = vunpack.c.l.b16 %v1746
  %v1975 = vunpack.c.l.b16 %v1747
  %v1976 = vunpack.c.l.b16 %v1748
  %v1977 = vunpack.c.l.b16 %v1749
  %v1978 = vunpack.c.l.b16 %v1750
  %v1979 = vunpack.c.l.b16 %v1751
  %v1980 = vunpack.c.l.b16 %v1752
  %v1981 = vunpack.c.l.b16 %v1753
  %v1982 = vunpack.c.l.b16 %v1754
  %v1983 = vunpack.c.l.b16 %v1755
  %v1984 = vunpack.c.l.b16 %v1756
  %v1985 = vunpack.c.l.b16 %v1757
  %v1986 = vunpack.c.l.b16 %v1758
  %v1987 = vunpack.c.l.b16 %v1759
  %v1988 = vunpack.c.l.b16 %v1760
  %v1989 = vunpack.c.l.b16 %v1761
  %v1990 = vunpack.c.l.b16 %v1762
  %v1991 = vunpack.c.l.b16 %v1763
  %v1992 = vunpack.c.l.b16 %v1764
  %v1993 = vunpack.c.l.b16 %v1765
  %v1994 = vunpack.c.l.b16 %v1766
  %v1995 = vunpack.c.l.b16 %v1767
  %v1996 = vunpack.c.l.b16 %v1768
  %v1997 = vunpack.c.l.b16 %v1769
  %v1998 = vunpack.c.l.b16 %v1770
  %v1999 = vunpack.c.l.b16 %v1771
  %v2000 = vunpack.c.l.b16 %v1772
  %v2001 = vpack.c.b16 %v1902, %v1901
  %v2002 = vpack.c.b16 %v1904, %v1903
  %v2003 = vpack.c.b16 %v1906, %v1905
  %v2004 = vpack.c.b16 %v1908, %v1907
  %v2005 = vpack.c.b16 %v1910, %v1909
  %v2006 = vpack.c.b16 %v1912, %v1911
  %v2007 = vpack.c.b16 %v1914, %v1913
  %v2008 = vpack.c.b16 %v1916, %v1915
  %v2009 = vpack.c.b16 %v1918, %v1917
  %v2010 = vpack.c.b16 %v1920, %v1919
  %v2011 = vpack.c.b16 %v1922, %v1921
  %v2012 = vpack.c.b16 %v1924, %v1923
  %v2013 = vpack.c.b16 %v1926, %v1925
  %v2014 = vpack.c.b16 %v1928, %v1927
  %v2015 = vpack.c.b16 %v1930, %v1929
  %v2016 = vpack.c.b16 %v1932, %v1931
  %v2017 = vpack.c.b16 %v1934, %v1933
  %v2018 = vpack.c.b16 %v1936, %v1935
  %v2019 = vpack.c.b16 %v1938, %v1937
  %v2020 = vpack.c.b16 %v1940, %v1939
  %v2021 = vpack.c.b16 %v1942, %v1941
  %v2022 = vpack.c.b16 %v1944, %v1943
  %v2023 = vpack.c.b16 %v1946, %v1945
  %v2024 = vpack.c.b16 %v1948, %v1947
  %v2025 = vpack.c.b16 %v1950, %v1949
  %v2026 = vpack.c.b16 %v1952, %v1951
  %v2027 = vpack.c.b16 %v1954, %v1953
  %v2028 = vpack.c.b16 %v1956, %v1955
  %v2029 = vpack.c.b16 %v1958, %v1957
  %v2030 = vpack.c.b16 %v1960, %v1959
  %v2031 = vpack.c.b16 %v1962, %v1961
  %v2032 = vpack.c.b16 %v1964, %v1963
  %v2033 = vpack.c.b16 %v1966, %v1965
  %v2034 = vpack.c.b16 %v1968, %v1967
  %v2035 = vpack.c.b16 %v1970, %v1969
  %v2036 = vpack.c.b16 %v1972, %v1971
  %v2037 = vpack.c.b16 %v1974, %v1973
  %v2038 = vpack.c.b16 %v1976, %v1975
  %v2039 = vpack.c.b16 %v1978, %v1977
  %v2040 = vpack.c.b16 %v1980, %v1979
  %v2041 = vpack.c.b16 %v1982, %v1981
  %v2042 = vpack.c.b16 %v1984, %v1983
  %v2043 = vpack.c.b16 %v1986, %v1985
  %v2044 = vpack.c.b16 %v1988, %v1987
  %v2045 = vpack.c.b16 %v1990, %v1989
  %v2046 = vpack.c.b16 %v1992, %v1991
  %v2047 = vpack.c.b16 %v1994, %v1993
  %v2048 = vpack.c.b16 %v1996, %v1995
  %v2049 = vpack.c.b16 %v1998, %v1997
  %v2050 = vpack.c.b16 %v2000, %v1999
  %v2117 = vunpack.c.l.b16 %v1773
  %v2118 = vunpack.c.h.b16 %v1773
  %v2119 = vunpack.c.l.b16 %v1774
  %v2120 = vunpack.c.h.b16 %v1774
  %v2121 = vunpack.c.l.b16 %v1775
  %v2122 = vunpack.c.h.b16 %v1775
  %v2123 = vunpack.c.l.b16 %v1776
  %v2124 = vunpack.c.h.b16 %v1776
  %v2125 = vunpack.c.l.b16 %v1777
  %v2126 = vunpack.c.h.b16 %v1777
  %v2127 = vunpack.c.l.b16 %v1778
  %v2128 = vunpack.c.h.b16 %v1778
  %v2129 = vunpack.c.l.b16 %v1779
  %v2130 = vunpack.c.h.b16 %v1779
  %v2131 = vunpack.c.l.b16 %v1780
  %v2132 = vunpack.c.h.b16 %v1780
  %v2133 = vunpack.c.l.b16 %v1781
  %v2134 = vunpack.c.h.b16 %v1781
  %v2135 = vunpack.c.l.b16 %v1782
  %v2136 = vunpack.c.h.b16 %v1782
  %v2137 = vunpack.c.l.b16 %v1783
  %v2138 = vunpack.c.h.b16 %v1783
  %v2139 = vunpack.c.l.b16 %v1784
  %v2140 = vunpack.c.h.b16 %v1784
  %v2141 = vunpack.c.l.b16 %v1785
  %v2142 = vunpack.c.h.b16 %v1785
  %v2143 = vunpack.c.l.b16 %v1786
  %v2144 = vunpack.c.h.b16 %v1786
  %v2145 = vunpack.c.l.b16 %v1787
  %v2146 = vunpack.c.h.b16 %v1787
  %v2147 = vunpack.c.l.b16 %v1788
  %v2148 = vunpack.c.h.b16 %v1788
  %v2149 = vpack.c.b16 %v2119, %v2117
  %v2150 = vpack.c.b16 %v2120, %v2118
  %v2151 = vpack.c.b16 %v2123, %v2121
  %v2152 = vpack.c.b16 %v2124, %v2122
  %v2153 = vpack.c.b16 %v2127, %v2125
  %v2154 = vpack.c.b16 %v2128, %v2126
  %v2155 = vpack.c.b16 %v2131, %v2129
  %v2156 = vpack.c.b16 %v2132, %v2130
  %v2157 = vpack.c.b16 %v2135, %v2133
  %v2158 = vpack.c.b16 %v2136, %v2134
  %v2159 = vpack.c.b16 %v2139, %v2137
  %v2160 = vpack.c.b16 %v2140, %v2138
  %v2161 = vpack.c.b16 %v2143, %v2141
  %v2162 = vpack.c.b16 %v2144, %v2142
  %v2163 = vpack.c.b16 %v2147, %v2145
  %v2164 = vpack.c.b16 %v2148, %v2146
  %2181 = vmatprep.subr.bf16.mxu0 %v2150
  %2182 = vmatpush1.bf16.msra.mxu0 %v2149
  %2183 = vmatprep.subr.bf16.mxu0 %v2152
  %2184 = vmatpush1.bf16.msra.mxu0 %v2151
  %2185 = vmatprep.subr.bf16.mxu0 %v2154
  %2186 = vmatpush1.bf16.msra.mxu0 %v2153
  %2187 = vmatprep.subr.bf16.mxu0 %v2156
  %2188 = vmatpush1.bf16.msra.mxu0 %v2155
  %2189 = vmatprep.subr.bf16.mxu0 %v2158
  %2190 = vmatpush1.bf16.msra.mxu0 %v2157
  %2191 = vmatprep.subr.bf16.mxu0 %v2160
  %2192 = vmatpush1.bf16.msra.mxu0 %v2159
  %2193 = vmatprep.subr.bf16.mxu0 %v2162
  %2194 = vmatpush1.bf16.msra.mxu0 %v2161
  %2195 = vmatprep.subr.bf16.mxu0 %v2164
  %2196 = vmatpush1.bf16.msra.mxu0 %v2163
  %2197 = vmatprep.subr.bf16.mxu0 0
  %2198 = vmatpush1.bf16.msra.mxu0 0
  %2199 = vmatprep.subr.bf16.mxu0 0
  %2200 = vmatpush1.bf16.msra.mxu0 0
  %2201 = vmatprep.subr.bf16.mxu0 0
  %2202 = vmatpush1.bf16.msra.mxu0 0
  %2203 = vmatprep.subr.bf16.mxu0 0
  %2204 = vmatpush1.bf16.msra.mxu0 0
  %2205 = vmatprep.subr.bf16.mxu0 0
  %2206 = vmatpush1.bf16.msra.mxu0 0
  %2207 = vmatprep.subr.bf16.mxu0 0
  %2208 = vmatpush1.bf16.msra.mxu0 0
  %2209 = vmatprep.subr.bf16.mxu0 0
  %2210 = vmatpush1.bf16.msra.mxu0 0
  %2211 = vmatprep.subr.bf16.mxu0 0
  %2212 = vmatpush1.bf16.msra.mxu0 0
  %2213 = vmatprep.mubr.bf16.mxu0 0
  %2214 = vmatmul.mubr.bf16.gmra.mrb[0].mxu0 %v2001
  %v2215 = vpop.f32.mrb[0].mxu0
  %v2216 = vadd.f32 %v1794, %v2215
  %v2217 = vpop.f32.mrb[0].mxu0
  %v2218 = vadd.f32 %v1798, %v2217
  %v2219 = vpop.f32.mrb[0].mxu0
  %v2220 = vadd.f32 %v1794, %v2219
  %v2221 = vpop.f32.mrb[0].mxu0
  %v2222 = vadd.f32 %v1798, %v2221
  %2223 = vmatprep.mubr.bf16.mxu0 0
  %2224 = vmatmul.mubr.bf16.gmra.mrb[0].mxu0 %v2002
  %v2225 = vpop.f32.mrb[0].mxu0
  %v2226 = vadd.f32 %v1794, %v2225
  %v2227 = vpop.f32.mrb[0].mxu0
  %v2228 = vadd.f32 %v1798, %v2227
  %v2229 = vpop.f32.mrb[0].mxu0
  %v2230 = vadd.f32 %v1794, %v2229
  %v2231 = vpop.f32.mrb[0].mxu0
  %v2232 = vadd.f32 %v1798, %v2231
  %2233 = vmatprep.mubr.bf16.mxu0 0
  %2234 = vmatmul.mubr.bf16.gmra.mrb[0].mxu0 %v2003
  %v2235 = vpop.f32.mrb[0].mxu0
  %v2236 = vadd.f32 %v1794, %v2235
  %v2237 = vpop.f32.mrb[0].mxu0
  %v2238 = vadd.f32 %v1798, %v2237
  %v2239 = vpop.f32.mrb[0].mxu0
  %v2240 = vadd.f32 %v1794, %v2239
  %v2241 = vpop.f32.mrb[0].mxu0
  %v2242 = vadd.f32 %v1798, %v2241
  %2243 = vmatprep.mubr.bf16.mxu0 0
  %2244 = vmatmul.mubr.bf16.gmra.mrb[0].mxu0 %v2004
  %v2245 = vpop.f32.mrb[0].mxu0
  %v2246 = vadd.f32 %v1794, %v2245
  %v2247 = vpop.f32.mrb[0].mxu0
  %v2248 = vadd.f32 %v1798, %v2247
  %v2249 = vpop.f32.mrb[0].mxu0
  %v2250 = vadd.f32 %v1794, %v2249
  %v2251 = vpop.f32.mrb[0].mxu0
  %v2252 = vadd.f32 %v1798, %v2251
  %2253 = vmatprep.mubr.bf16.mxu0 0
  %2254 = vmatmul.mubr.bf16.gmra.mrb[0].mxu0 %v2005
  %v2255 = vpop.f32.mrb[0].mxu0
  %v2256 = vadd.f32 %v1794, %v2255
  %v2257 = vpop.f32.mrb[0].mxu0
  %v2258 = vadd.f32 %v1798, %v2257
  %v2259 = vpop.f32.mrb[0].mxu0
  %v2260 = vadd.f32 %v1794, %v2259
  %v2261 = vpop.f32.mrb[0].mxu0
  %v2262 = vadd.f32 %v1798, %v2261
  %2263 = vmatprep.mubr.bf16.mxu0 0
  %2264 = vmatmul.mubr.bf16.gmra.mrb[0].mxu0 %v2006
  %v2265 = vpop.f32.mrb[0].mxu0
  %v2266 = vadd.f32 %v1794, %v2265
  %v2267 = vpop.f32.mrb[0].mxu0
  %v2268 = vadd.f32 %v1798, %v2267
  %v2269 = vpop.f32.mrb[0].mxu0
  %v2270 = vadd.f32 %v1794, %v2269
  %v2271 = vpop.f32.mrb[0].mxu0
  %v2272 = vadd.f32 %v1798, %v2271
  %2273 = vmatprep.mubr.bf16.mxu0 0
  %2274 = vmatmul.mubr.bf16.gmra.mrb[0].mxu0 %v2007
  %v2275 = vpop.f32.mrb[0].mxu0
  %v2276 = vadd.f32 %v1794, %v2275
  %v2277 = vpop.f32.mrb[0].mxu0
  %v2278 = vadd.f32 %v1798, %v2277
  %v2279 = vpop.f32.mrb[0].mxu0
  %v2280 = vadd.f32 %v1794, %v2279
  %v2281 = vpop.f32.mrb[0].mxu0
  %v2282 = vadd.f32 %v1798, %v2281
  %2283 = vmatprep.mubr.bf16.mxu0 0
  %2284 = vmatmul.mubr.bf16.gmra.mrb[0].mxu0 %v2008
  %v2285 = vpop.f32.mrb[0].mxu0
  %v2286 = vadd.f32 %v1794, %v2285
  %v2287 = vpop.f32.mrb[0].mxu0
  %v2288 = vadd.f32 %v1798, %v2287
  %v2289 = vpop.f32.mrb[0].mxu0
  %v2290 = vadd.f32 %v1794, %v2289
  %v2291 = vpop.f32.mrb[0].mxu0
  %v2292 = vadd.f32 %v1798, %v2291
  %2293 = vmatprep.mubr.bf16.mxu0 0
  %2294 = vmatmul.mubr.bf16.gmra.mrb[0].mxu0 %v2009
  %v2295 = vpop.f32.mrb[0].mxu0
  %v2296 = vadd.f32 %v1794, %v2295
  %v2297 = vpop.f32.mrb[0].mxu0
  %v2298 = vadd.f32 %v1798, %v2297
  %v2299 = vpop.f32.mrb[0].mxu0
  %v2300 = vadd.f32 %v1794, %v2299
  %v2301 = vpop.f32.mrb[0].mxu0
  %v2302 = vadd.f32 %v1798, %v2301
  %2303 = vmatprep.mubr.bf16.mxu0 0
  %2304 = vmatmul.mubr.bf16.gmra.mrb[0].mxu0 %v2010
  %v2305 = vpop.f32.mrb[0].mxu0
  %v2306 = vadd.f32 %v1794, %v2305
  %v2307 = vpop.f32.mrb[0].mxu0
  %v2308 = vadd.f32 %v1798, %v2307
  %v2309 = vpop.f32.mrb[0].mxu0
  %v2310 = vadd.f32 %v1794, %v2309
  %v2311 = vpop.f32.mrb[0].mxu0
  %v2312 = vadd.f32 %v1798, %v2311
  %2313 = vmatprep.mubr.bf16.mxu0 0
  %2314 = vmatmul.mubr.bf16.gmra.mrb[0].mxu0 %v2011
  %v2315 = vpop.f32.mrb[0].mxu0
  %v2316 = vadd.f32 %v1794, %v2315
  %v2317 = vpop.f32.mrb[0].mxu0
  %v2318 = vadd.f32 %v1798, %v2317
  %v2319 = vpop.f32.mrb[0].mxu0
  %v2320 = vadd.f32 %v1794, %v2319
  %v2321 = vpop.f32.mrb[0].mxu0
  %v2322 = vadd.f32 %v1798, %v2321
  %2323 = vmatprep.mubr.bf16.mxu0 0
  %2324 = vmatmul.mubr.bf16.gmra.mrb[0].mxu0 %v2012
  %v2325 = vpop.f32.mrb[0].mxu0
  %v2326 = vadd.f32 %v1794, %v2325
  %v2327 = vpop.f32.mrb[0].mxu0
  %v2328 = vadd.f32 %v1798, %v2327
  %v2329 = vpop.f32.mrb[0].mxu0
  %v2330 = vadd.f32 %v1794, %v2329
  %v2331 = vpop.f32.mrb[0].mxu0
  %v2332 = vadd.f32 %v1798, %v2331
  %2333 = vmatprep.mubr.bf16.mxu0 0
  %2334 = vmatmul.mubr.bf16.gmra.mrb[0].mxu0 %v2013
  %v2335 = vpop.f32.mrb[0].mxu0
  %v2336 = vadd.f32 %v1794, %v2335
  %v2337 = vpop.f32.mrb[0].mxu0
  %v2338 = vadd.f32 %v1798, %v2337
  %v2339 = vpop.f32.mrb[0].mxu0
  %v2340 = vadd.f32 %v1794, %v2339
  %v2341 = vpop.f32.mrb[0].mxu0
  %v2342 = vadd.f32 %v1798, %v2341
  %2343 = vmatprep.mubr.bf16.mxu0 0
  %2344 = vmatmul.mubr.bf16.gmra.mrb[0].mxu0 %v2014
  %v2345 = vpop.f32.mrb[0].mxu0
  %v2346 = vadd.f32 %v1794, %v2345
  %v2347 = vpop.f32.mrb[0].mxu0
  %v2348 = vadd.f32 %v1798, %v2347
  %v2349 = vpop.f32.mrb[0].mxu0
  %v2350 = vadd.f32 %v1794, %v2349
  %v2351 = vpop.f32.mrb[0].mxu0
  %v2352 = vadd.f32 %v1798, %v2351
  %2353 = vmatprep.mubr.bf16.mxu0 0
  %2354 = vmatmul.mubr.bf16.gmra.mrb[0].mxu0 %v2015
  %v2355 = vpop.f32.mrb[0].mxu0
  %v2356 = vadd.f32 %v1794, %v2355
  %v2357 = vpop.f32.mrb[0].mxu0
  %v2358 = vadd.f32 %v1798, %v2357
  %v2359 = vpop.f32.mrb[0].mxu0
  %v2360 = vadd.f32 %v1794, %v2359
  %v2361 = vpop.f32.mrb[0].mxu0
  %v2362 = vadd.f32 %v1798, %v2361
  %2363 = vmatprep.mubr.bf16.mxu0 0
  %2364 = vmatmul.mubr.bf16.gmra.mrb[0].mxu0 %v2016
  %v2365 = vpop.f32.mrb[0].mxu0
  %v2366 = vadd.f32 %v1794, %v2365
  %v2367 = vpop.f32.mrb[0].mxu0
  %v2368 = vadd.f32 %v1798, %v2367
  %v2369 = vpop.f32.mrb[0].mxu0
  %v2370 = vadd.f32 %v1794, %v2369
  %v2371 = vpop.f32.mrb[0].mxu0
  %v2372 = vadd.f32 %v1798, %v2371
  %2373 = vmatprep.mubr.bf16.mxu0 0
  %2374 = vmatmul.mubr.bf16.gmra.mrb[0].mxu0 %v2017
  %v2375 = vpop.f32.mrb[0].mxu0
  %v2376 = vadd.f32 %v1794, %v2375
  %v2377 = vpop.f32.mrb[0].mxu0
  %v2378 = vadd.f32 %v1798, %v2377
  %v2379 = vpop.f32.mrb[0].mxu0
  %v2380 = vadd.f32 %v1794, %v2379
  %v2381 = vpop.f32.mrb[0].mxu0
  %v2382 = vadd.f32 %v1798, %v2381
  %2383 = vmatprep.mubr.bf16.mxu0 0
  %2384 = vmatmul.mubr.bf16.gmra.mrb[0].mxu0 %v2018
  %v2385 = vpop.f32.mrb[0].mxu0
  %v2386 = vadd.f32 %v1794, %v2385
  %v2387 = vpop.f32.mrb[0].mxu0
  %v2388 = vadd.f32 %v1798, %v2387
  %v2389 = vpop.f32.mrb[0].mxu0
  %v2390 = vadd.f32 %v1794, %v2389
  %v2391 = vpop.f32.mrb[0].mxu0
  %v2392 = vadd.f32 %v1798, %v2391
  %2393 = vmatprep.mubr.bf16.mxu0 0
  %2394 = vmatmul.mubr.bf16.gmra.mrb[0].mxu0 %v2019
  %v2395 = vpop.f32.mrb[0].mxu0
  %v2396 = vadd.f32 %v1794, %v2395
  %v2397 = vpop.f32.mrb[0].mxu0
  %v2398 = vadd.f32 %v1798, %v2397
  %v2399 = vpop.f32.mrb[0].mxu0
  %v2400 = vadd.f32 %v1794, %v2399
  %v2401 = vpop.f32.mrb[0].mxu0
  %v2402 = vadd.f32 %v1798, %v2401
  %2403 = vmatprep.mubr.bf16.mxu0 0
  %2404 = vmatmul.mubr.bf16.gmra.mrb[0].mxu0 %v2020
  %v2405 = vpop.f32.mrb[0].mxu0
  %v2406 = vadd.f32 %v1794, %v2405
  %v2407 = vpop.f32.mrb[0].mxu0
  %v2408 = vadd.f32 %v1798, %v2407
  %v2409 = vpop.f32.mrb[0].mxu0
  %v2410 = vadd.f32 %v1794, %v2409
  %v2411 = vpop.f32.mrb[0].mxu0
  %v2412 = vadd.f32 %v1798, %v2411
  %2413 = vmatprep.mubr.bf16.mxu0 0
  %2414 = vmatmul.mubr.bf16.gmra.mrb[0].mxu0 %v2021
  %v2415 = vpop.f32.mrb[0].mxu0
  %v2416 = vadd.f32 %v1794, %v2415
  %v2417 = vpop.f32.mrb[0].mxu0
  %v2418 = vadd.f32 %v1798, %v2417
  %v2419 = vpop.f32.mrb[0].mxu0
  %v2420 = vadd.f32 %v1794, %v2419
  %v2421 = vpop.f32.mrb[0].mxu0
  %v2422 = vadd.f32 %v1798, %v2421
  %2423 = vmatprep.mubr.bf16.mxu0 0
  %2424 = vmatmul.mubr.bf16.gmra.mrb[0].mxu0 %v2022
  %v2425 = vpop.f32.mrb[0].mxu0
  %v2426 = vadd.f32 %v1794, %v2425
  %v2427 = vpop.f32.mrb[0].mxu0
  %v2428 = vadd.f32 %v1798, %v2427
  %v2429 = vpop.f32.mrb[0].mxu0
  %v2430 = vadd.f32 %v1794, %v2429
  %v2431 = vpop.f32.mrb[0].mxu0
  %v2432 = vadd.f32 %v1798, %v2431
  %2433 = vmatprep.mubr.bf16.mxu0 0
  %2434 = vmatmul.mubr.bf16.gmra.mrb[0].mxu0 %v2023
  %v2435 = vpop.f32.mrb[0].mxu0
  %v2436 = vadd.f32 %v1794, %v2435
  %v2437 = vpop.f32.mrb[0].mxu0
  %v2438 = vadd.f32 %v1798, %v2437
  %v2439 = vpop.f32.mrb[0].mxu0
  %v2440 = vadd.f32 %v1794, %v2439
  %v2441 = vpop.f32.mrb[0].mxu0
  %v2442 = vadd.f32 %v1798, %v2441
  %2443 = vmatprep.mubr.bf16.mxu0 0
  %2444 = vmatmul.mubr.bf16.gmra.mrb[0].mxu0 %v2024
  %v2445 = vpop.f32.mrb[0].mxu0
  %v2446 = vadd.f32 %v1794, %v2445
  %v2447 = vpop.f32.mrb[0].mxu0
  %v2448 = vadd.f32 %v1798, %v2447
  %v2449 = vpop.f32.mrb[0].mxu0
  %v2450 = vadd.f32 %v1794, %v2449
  %v2451 = vpop.f32.mrb[0].mxu0
  %v2452 = vadd.f32 %v1798, %v2451
  %2453 = vmatprep.mubr.bf16.mxu0 0
  %2454 = vmatmul.mubr.bf16.gmra.mrb[0].mxu0 %v2025
  %v2455 = vpop.f32.mrb[0].mxu0
  %v2456 = vadd.f32 %v1794, %v2455
  %v2457 = vpop.f32.mrb[0].mxu0
  %v2458 = vadd.f32 %v1798, %v2457
  %v2459 = vpop.f32.mrb[0].mxu0
  %v2460 = vadd.f32 %v1794, %v2459
  %v2461 = vpop.f32.mrb[0].mxu0
  %v2462 = vadd.f32 %v1798, %v2461
  %2463 = vmatprep.mubr.bf16.mxu0 0
  %2464 = vmatmul.mubr.bf16.gmra.mrb[0].mxu0 %v2026
  %v2465 = vpop.f32.mrb[0].mxu0
  %v2466 = vadd.f32 %v1794, %v2465
  %v2467 = vpop.f32.mrb[0].mxu0
  %v2468 = vadd.f32 %v1798, %v2467
  %v2469 = vpop.f32.mrb[0].mxu0
  %v2470 = vadd.f32 %v1794, %v2469
  %v2471 = vpop.f32.mrb[0].mxu0
  %v2472 = vadd.f32 %v1798, %v2471
  %2473 = vmatprep.mubr.bf16.mxu0 0
  %2474 = vmatmul.mubr.bf16.gmra.mrb[0].mxu0 %v2027
  %v2475 = vpop.f32.mrb[0].mxu0
  %v2476 = vadd.f32 %v1794, %v2475
  %v2477 = vpop.f32.mrb[0].mxu0
  %v2478 = vadd.f32 %v1798, %v2477
  %v2479 = vpop.f32.mrb[0].mxu0
  %v2480 = vadd.f32 %v1794, %v2479
  %v2481 = vpop.f32.mrb[0].mxu0
  %v2482 = vadd.f32 %v1798, %v2481
  %2483 = vmatprep.mubr.bf16.mxu0 0
  %2484 = vmatmul.mubr.bf16.gmra.mrb[0].mxu0 %v2028
  %v2485 = vpop.f32.mrb[0].mxu0
  %v2486 = vadd.f32 %v1794, %v2485
  %v2487 = vpop.f32.mrb[0].mxu0
  %v2488 = vadd.f32 %v1798, %v2487
  %v2489 = vpop.f32.mrb[0].mxu0
  %v2490 = vadd.f32 %v1794, %v2489
  %v2491 = vpop.f32.mrb[0].mxu0
  %v2492 = vadd.f32 %v1798, %v2491
  %2493 = vmatprep.mubr.bf16.mxu0 0
  %2494 = vmatmul.mubr.bf16.gmra.mrb[0].mxu0 %v2029
  %v2495 = vpop.f32.mrb[0].mxu0
  %v2496 = vadd.f32 %v1794, %v2495
  %v2497 = vpop.f32.mrb[0].mxu0
  %v2498 = vadd.f32 %v1798, %v2497
  %v2499 = vpop.f32.mrb[0].mxu0
  %v2500 = vadd.f32 %v1794, %v2499
  %v2501 = vpop.f32.mrb[0].mxu0
  %v2502 = vadd.f32 %v1798, %v2501
  %2503 = vmatprep.mubr.bf16.mxu0 0
  %2504 = vmatmul.mubr.bf16.gmra.mrb[0].mxu0 %v2030
  %v2505 = vpop.f32.mrb[0].mxu0
  %v2506 = vadd.f32 %v1794, %v2505
  %v2507 = vpop.f32.mrb[0].mxu0
  %v2508 = vadd.f32 %v1798, %v2507
  %v2509 = vpop.f32.mrb[0].mxu0
  %v2510 = vadd.f32 %v1794, %v2509
  %v2511 = vpop.f32.mrb[0].mxu0
  %v2512 = vadd.f32 %v1798, %v2511
  %2513 = vmatprep.mubr.bf16.mxu0 0
  %2514 = vmatmul.mubr.bf16.gmra.mrb[0].mxu0 %v2031
  %v2515 = vpop.f32.mrb[0].mxu0
  %v2516 = vadd.f32 %v1794, %v2515
  %v2517 = vpop.f32.mrb[0].mxu0
  %v2518 = vadd.f32 %v1798, %v2517
  %v2519 = vpop.f32.mrb[0].mxu0
  %v2520 = vadd.f32 %v1794, %v2519
  %v2521 = vpop.f32.mrb[0].mxu0
  %v2522 = vadd.f32 %v1798, %v2521
  %2523 = vmatprep.mubr.bf16.mxu0 0
  %2524 = vmatmul.mubr.bf16.gmra.mrb[0].mxu0 %v2032
  %v2525 = vpop.f32.mrb[0].mxu0
  %v2526 = vadd.f32 %v1794, %v2525
  %v2527 = vpop.f32.mrb[0].mxu0
  %v2528 = vadd.f32 %v1798, %v2527
  %v2529 = vpop.f32.mrb[0].mxu0
  %v2530 = vadd.f32 %v1794, %v2529
  %v2531 = vpop.f32.mrb[0].mxu0
  %v2532 = vadd.f32 %v1798, %v2531
  %2533 = vmatprep.mubr.bf16.mxu0 0
  %2534 = vmatmul.mubr.bf16.gmra.mrb[0].mxu0 %v2033
  %v2535 = vpop.f32.mrb[0].mxu0
  %v2536 = vadd.f32 %v1794, %v2535
  %v2537 = vpop.f32.mrb[0].mxu0
  %v2538 = vadd.f32 %v1798, %v2537
  %v2539 = vpop.f32.mrb[0].mxu0
  %v2540 = vadd.f32 %v1794, %v2539
  %v2541 = vpop.f32.mrb[0].mxu0
  %v2542 = vadd.f32 %v1798, %v2541
  %2543 = vmatprep.mubr.bf16.mxu0 0
  %2544 = vmatmul.mubr.bf16.gmra.mrb[0].mxu0 %v2034
  %v2545 = vpop.f32.mrb[0].mxu0
  %v2546 = vadd.f32 %v1794, %v2545
  %v2547 = vpop.f32.mrb[0].mxu0
  %v2548 = vadd.f32 %v1798, %v2547
  %v2549 = vpop.f32.mrb[0].mxu0
  %v2550 = vadd.f32 %v1794, %v2549
  %v2551 = vpop.f32.mrb[0].mxu0
  %v2552 = vadd.f32 %v1798, %v2551
  %2553 = vmatprep.mubr.bf16.mxu0 0
  %2554 = vmatmul.mubr.bf16.gmra.mrb[0].mxu0 %v2035
  %v2555 = vpop.f32.mrb[0].mxu0
  %v2556 = vadd.f32 %v1794, %v2555
  %v2557 = vpop.f32.mrb[0].mxu0
  %v2558 = vadd.f32 %v1798, %v2557
  %v2559 = vpop.f32.mrb[0].mxu0
  %v2560 = vadd.f32 %v1794, %v2559
  %v2561 = vpop.f32.mrb[0].mxu0
  %v2562 = vadd.f32 %v1798, %v2561
  %2563 = vmatprep.mubr.bf16.mxu0 0
  %2564 = vmatmul.mubr.bf16.gmra.mrb[0].mxu0 %v2036
  %v2565 = vpop.f32.mrb[0].mxu0
  %v2566 = vadd.f32 %v1794, %v2565
  %v2567 = vpop.f32.mrb[0].mxu0
  %v2568 = vadd.f32 %v1798, %v2567
  %v2569 = vpop.f32.mrb[0].mxu0
  %v2570 = vadd.f32 %v1794, %v2569
  %v2571 = vpop.f32.mrb[0].mxu0
  %v2572 = vadd.f32 %v1798, %v2571
  %2573 = vmatprep.mubr.bf16.mxu0 0
  %2574 = vmatmul.mubr.bf16.gmra.mrb[0].mxu0 %v2037
  %v2575 = vpop.f32.mrb[0].mxu0
  %v2576 = vadd.f32 %v1794, %v2575
  %v2577 = vpop.f32.mrb[0].mxu0
  %v2578 = vadd.f32 %v1798, %v2577
  %v2579 = vpop.f32.mrb[0].mxu0
  %v2580 = vadd.f32 %v1794, %v2579
  %v2581 = vpop.f32.mrb[0].mxu0
  %v2582 = vadd.f32 %v1798, %v2581
  %2583 = vmatprep.mubr.bf16.mxu0 0
  %2584 = vmatmul.mubr.bf16.gmra.mrb[0].mxu0 %v2038
  %v2585 = vpop.f32.mrb[0].mxu0
  %v2586 = vadd.f32 %v1794, %v2585
  %v2587 = vpop.f32.mrb[0].mxu0
  %v2588 = vadd.f32 %v1798, %v2587
  %v2589 = vpop.f32.mrb[0].mxu0
  %v2590 = vadd.f32 %v1794, %v2589
  %v2591 = vpop.f32.mrb[0].mxu0
  %v2592 = vadd.f32 %v1798, %v2591
  %2593 = vmatprep.mubr.bf16.mxu0 0
  %2594 = vmatmul.mubr.bf16.gmra.mrb[0].mxu0 %v2039
  %v2595 = vpop.f32.mrb[0].mxu0
  %v2596 = vadd.f32 %v1794, %v2595
  %v2597 = vpop.f32.mrb[0].mxu0
  %v2598 = vadd.f32 %v1798, %v2597
  %v2599 = vpop.f32.mrb[0].mxu0
  %v2600 = vadd.f32 %v1794, %v2599
  %v2601 = vpop.f32.mrb[0].mxu0
  %v2602 = vadd.f32 %v1798, %v2601
  %2603 = vmatprep.mubr.bf16.mxu0 0
  %2604 = vmatmul.mubr.bf16.gmra.mrb[0].mxu0 %v2040
  %v2605 = vpop.f32.mrb[0].mxu0
  %v2606 = vadd.f32 %v1794, %v2605
  %v2607 = vpop.f32.mrb[0].mxu0
  %v2608 = vadd.f32 %v1798, %v2607
  %v2609 = vpop.f32.mrb[0].mxu0
  %v2610 = vadd.f32 %v1794, %v2609
  %v2611 = vpop.f32.mrb[0].mxu0
  %v2612 = vadd.f32 %v1798, %v2611
  %2613 = vmatprep.mubr.bf16.mxu0 0
  %2614 = vmatmul.mubr.bf16.gmra.mrb[0].mxu0 %v2041
  %v2615 = vpop.f32.mrb[0].mxu0
  %v2616 = vadd.f32 %v1794, %v2615
  %v2617 = vpop.f32.mrb[0].mxu0
  %v2618 = vadd.f32 %v1798, %v2617
  %v2619 = vpop.f32.mrb[0].mxu0
  %v2620 = vadd.f32 %v1794, %v2619
  %v2621 = vpop.f32.mrb[0].mxu0
  %v2622 = vadd.f32 %v1798, %v2621
  %2623 = vmatprep.mubr.bf16.mxu0 0
  %2624 = vmatmul.mubr.bf16.gmra.mrb[0].mxu0 %v2042
  %v2625 = vpop.f32.mrb[0].mxu0
  %v2626 = vadd.f32 %v1794, %v2625
  %v2627 = vpop.f32.mrb[0].mxu0
  %v2628 = vadd.f32 %v1798, %v2627
  %v2629 = vpop.f32.mrb[0].mxu0
  %v2630 = vadd.f32 %v1794, %v2629
  %v2631 = vpop.f32.mrb[0].mxu0
  %v2632 = vadd.f32 %v1798, %v2631
  %2633 = vmatprep.mubr.bf16.mxu0 0
  %2634 = vmatmul.mubr.bf16.gmra.mrb[0].mxu0 %v2043
  %v2635 = vpop.f32.mrb[0].mxu0
  %v2636 = vadd.f32 %v1794, %v2635
  %v2637 = vpop.f32.mrb[0].mxu0
  %v2638 = vadd.f32 %v1798, %v2637
  %v2639 = vpop.f32.mrb[0].mxu0
  %v2640 = vadd.f32 %v1794, %v2639
  %v2641 = vpop.f32.mrb[0].mxu0
  %v2642 = vadd.f32 %v1798, %v2641
  %2643 = vmatprep.mubr.bf16.mxu0 0
  %2644 = vmatmul.mubr.bf16.gmra.mrb[0].mxu0 %v2044
  %v2645 = vpop.f32.mrb[0].mxu0
  %v2646 = vadd.f32 %v1794, %v2645
  %v2647 = vpop.f32.mrb[0].mxu0
  %v2648 = vadd.f32 %v1798, %v2647
  %v2649 = vpop.f32.mrb[0].mxu0
  %v2650 = vadd.f32 %v1794, %v2649
  %v2651 = vpop.f32.mrb[0].mxu0
  %v2652 = vadd.f32 %v1798, %v2651
  %2653 = vmatprep.mubr.bf16.mxu0 0
  %2654 = vmatmul.mubr.bf16.gmra.mrb[0].mxu0 %v2045
  %v2655 = vpop.f32.mrb[0].mxu0
  %v2656 = vadd.f32 %v1794, %v2655
  %v2657 = vpop.f32.mrb[0].mxu0
  %v2658 = vadd.f32 %v1798, %v2657
  %v2659 = vpop.f32.mrb[0].mxu0
  %v2660 = vadd.f32 %v1794, %v2659
  %v2661 = vpop.f32.mrb[0].mxu0
  %v2662 = vadd.f32 %v1798, %v2661
  %2663 = vmatprep.mubr.bf16.mxu0 0
  %2664 = vmatmul.mubr.bf16.gmra.mrb[0].mxu0 %v2046
  %v2665 = vpop.f32.mrb[0].mxu0
  %v2666 = vadd.f32 %v1794, %v2665
  %v2667 = vpop.f32.mrb[0].mxu0
  %v2668 = vadd.f32 %v1798, %v2667
  %v2669 = vpop.f32.mrb[0].mxu0
  %v2670 = vadd.f32 %v1794, %v2669
  %v2671 = vpop.f32.mrb[0].mxu0
  %v2672 = vadd.f32 %v1798, %v2671
  %2673 = vmatprep.mubr.bf16.mxu0 0
  %2674 = vmatmul.mubr.bf16.gmra.mrb[0].mxu0 %v2047
  %v2675 = vpop.f32.mrb[0].mxu0
  %v2676 = vadd.f32 %v1794, %v2675
  %v2677 = vpop.f32.mrb[0].mxu0
  %v2678 = vadd.f32 %v1798, %v2677
  %v2679 = vpop.f32.mrb[0].mxu0
  %v2680 = vadd.f32 %v1794, %v2679
  %v2681 = vpop.f32.mrb[0].mxu0
  %v2682 = vadd.f32 %v1798, %v2681
  %2683 = vmatprep.mubr.bf16.mxu0 0
  %2684 = vmatmul.mubr.bf16.gmra.mrb[0].mxu0 %v2048
  %v2685 = vpop.f32.mrb[0].mxu0
  %v2686 = vadd.f32 %v1794, %v2685
  %v2687 = vpop.f32.mrb[0].mxu0
  %v2688 = vadd.f32 %v1798, %v2687
  %v2689 = vpop.f32.mrb[0].mxu0
  %v2690 = vadd.f32 %v1794, %v2689
  %v2691 = vpop.f32.mrb[0].mxu0
  %v2692 = vadd.f32 %v1798, %v2691
  %2693 = vmatprep.mubr.bf16.mxu0 0
  %2694 = vmatmul.mubr.bf16.gmra.mrb[0].mxu0 %v2049
  %v2695 = vpop.f32.mrb[0].mxu0
  %v2696 = vadd.f32 %v1794, %v2695
  %v2697 = vpop.f32.mrb[0].mxu0
  %v2698 = vadd.f32 %v1798, %v2697
  %v2699 = vpop.f32.mrb[0].mxu0
  %v2700 = vadd.f32 %v1794, %v2699
  %v2701 = vpop.f32.mrb[0].mxu0
  %v2702 = vadd.f32 %v1798, %v2701
  %2703 = vmatprep.mubr.bf16.mxu0 0
  %2704 = vmatmul.mubr.bf16.gmra.mrb[0].mxu0 %v2050
  %v2705 = vpop.f32.mrb[0].mxu0
  %v2706 = vadd.f32 %v1794, %v2705
  %v2707 = vpop.f32.mrb[0].mxu0
  %v2708 = vadd.f32 %v1798, %v2707
  %v2709 = vpop.f32.mrb[0].mxu0
  %v2710 = vadd.f32 %v1794, %v2709
  %v2711 = vpop.f32.mrb[0].mxu0
  %v2712 = vadd.f32 %v1798, %v2711
  %2713 = vdwg.mxu0
  %v2714 = vmax.f32 %v2216, 0.0
  %v2715 = vmax.f32 %v2218, 0.0
  %v2716 = vmax.f32 %v2220, 0.0
  %v2717 = vmax.f32 %v2222, 0.0
  %v2718 = vmax.f32 %v2226, 0.0
  %v2719 = vmax.f32 %v2228, 0.0
  %v2720 = vmax.f32 %v2230, 0.0
  %v2721 = vmax.f32 %v2232, 0.0
  %v2722 = vmax.f32 %v2236, 0.0
  %v2723 = vmax.f32 %v2238, 0.0
  %v2724 = vmax.f32 %v2240, 0.0
  %v2725 = vmax.f32 %v2242, 0.0
  %v2726 = vmax.f32 %v2246, 0.0
  %v2727 = vmax.f32 %v2248, 0.0
  %v2728 = vmax.f32 %v2250, 0.0
  %v2729 = vmax.f32 %v2252, 0.0
  %v2730 = vmax.f32 %v2256, 0.0
  %v2731 = vmax.f32 %v2258, 0.0
  %v2732 = vmax.f32 %v2260, 0.0
  %v2733 = vmax.f32 %v2262, 0.0
  %v2734 = vmax.f32 %v2266, 0.0
  %v2735 = vmax.f32 %v2268, 0.0
  %v2736 = vmax.f32 %v2270, 0.0
  %v2737 = vmax.f32 %v2272, 0.0
  %v2738 = vmax.f32 %v2276, 0.0
  %v2739 = vmax.f32 %v2278, 0.0
  %v2740 = vmax.f32 %v2280, 0.0
  %v2741 = vmax.f32 %v2282, 0.0
  %v2742 = vmax.f32 %v2286, 0.0
  %v2743 = vmax.f32 %v2288, 0.0
  %v2744 = vmax.f32 %v2290, 0.0
  %v2745 = vmax.f32 %v2292, 0.0
  %v2746 = vmax.f32 %v2296, 0.0
  %v2747 = vmax.f32 %v2298, 0.0
  %v2748 = vmax.f32 %v2300, 0.0
  %v2749 = vmax.f32 %v2302, 0.0
  %v2750 = vmax.f32 %v2306, 0.0
  %v2751 = vmax.f32 %v2308, 0.0
  %v2752 = vmax.f32 %v2310, 0.0
  %v2753 = vmax.f32 %v2312, 0.0
  %v2754 = vmax.f32 %v2316, 0.0
  %v2755 = vmax.f32 %v2318, 0.0
  %v2756 = vmax.f32 %v2320, 0.0
  %v2757 = vmax.f32 %v2322, 0.0
  %v2758 = vmax.f32 %v2326, 0.0
  %v2759 = vmax.f32 %v2328, 0.0
  %v2760 = vmax.f32 %v2330, 0.0
  %v2761 = vmax.f32 %v2332, 0.0
  %v2762 = vmax.f32 %v2336, 0.0
  %v2763 = vmax.f32 %v2338, 0.0
  %v2764 = vmax.f32 %v2340, 0.0
  %v2765 = vmax.f32 %v2342, 0.0
  %v2766 = vmax.f32 %v2346, 0.0
  %v2767 = vmax.f32 %v2348, 0.0
  %v2768 = vmax.f32 %v2350, 0.0
  %v2769 = vmax.f32 %v2352, 0.0
  %v2770 = vmax.f32 %v2356, 0.0
  %v2771 = vmax.f32 %v2358, 0.0
  %v2772 = vmax.f32 %v2360, 0.0
  %v2773 = vmax.f32 %v2362, 0.0
  %v2774 = vmax.f32 %v2366, 0.0
  %v2775 = vmax.f32 %v2368, 0.0
  %v2776 = vmax.f32 %v2370, 0.0
  %v2777 = vmax.f32 %v2372, 0.0
  %v2778 = vmax.f32 %v2376, 0.0
  %v2779 = vmax.f32 %v2378, 0.0
  %v2780 = vmax.f32 %v2380, 0.0
  %v2781 = vmax.f32 %v2382, 0.0
  %v2782 = vmax.f32 %v2386, 0.0
  %v2783 = vmax.f32 %v2388, 0.0
  %v2784 = vmax.f32 %v2390, 0.0
  %v2785 = vmax.f32 %v2392, 0.0
  %v2786 = vmax.f32 %v2396, 0.0
  %v2787 = vmax.f32 %v2398, 0.0
  %v2788 = vmax.f32 %v2400, 0.0
  %v2789 = vmax.f32 %v2402, 0.0
  %v2790 = vmax.f32 %v2406, 0.0
  %v2791 = vmax.f32 %v2408, 0.0
  %v2792 = vmax.f32 %v2410, 0.0
  %v2793 = vmax.f32 %v2412, 0.0
  %v2794 = vmax.f32 %v2416, 0.0
  %v2795 = vmax.f32 %v2418, 0.0
  %v2796 = vmax.f32 %v2420, 0.0
  %v2797 = vmax.f32 %v2422, 0.0
  %v2798 = vmax.f32 %v2426, 0.0
  %v2799 = vmax.f32 %v2428, 0.0
  %v2800 = vmax.f32 %v2430, 0.0
  %v2801 = vmax.f32 %v2432, 0.0
  %v2802 = vmax.f32 %v2436, 0.0
  %v2803 = vmax.f32 %v2438, 0.0
  %v2804 = vmax.f32 %v2440, 0.0
  %v2805 = vmax.f32 %v2442, 0.0
  %v2806 = vmax.f32 %v2446, 0.0
  %v2807 = vmax.f32 %v2448, 0.0
  %v2808 = vmax.f32 %v2450, 0.0
  %v2809 = vmax.f32 %v2452, 0.0
  %v2810 = vmax.f32 %v2456, 0.0
  %v2811 = vmax.f32 %v2458, 0.0
  %v2812 = vmax.f32 %v2460, 0.0
  %v2813 = vmax.f32 %v2462, 0.0
  %v2814 = vmax.f32 %v2466, 0.0
  %v2815 = vmax.f32 %v2468, 0.0
  %v2816 = vmax.f32 %v2470, 0.0
  %v2817 = vmax.f32 %v2472, 0.0
  %v2818 = vmax.f32 %v2476, 0.0
  %v2819 = vmax.f32 %v2478, 0.0
  %v2820 = vmax.f32 %v2480, 0.0
  %v2821 = vmax.f32 %v2482, 0.0
  %v2822 = vmax.f32 %v2486, 0.0
  %v2823 = vmax.f32 %v2488, 0.0
  %v2824 = vmax.f32 %v2490, 0.0
  %v2825 = vmax.f32 %v2492, 0.0
  %v2826 = vmax.f32 %v2496, 0.0
  %v2827 = vmax.f32 %v2498, 0.0
  %v2828 = vmax.f32 %v2500, 0.0
  %v2829 = vmax.f32 %v2502, 0.0
  %v2830 = vmax.f32 %v2506, 0.0
  %v2831 = vmax.f32 %v2508, 0.0
  %v2832 = vmax.f32 %v2510, 0.0
  %v2833 = vmax.f32 %v2512, 0.0
  %v2834 = vmax.f32 %v2516, 0.0
  %v2835 = vmax.f32 %v2518, 0.0
  %v2836 = vmax.f32 %v2520, 0.0
  %v2837 = vmax.f32 %v2522, 0.0
  %v2838 = vmax.f32 %v2526, 0.0
  %v2839 = vmax.f32 %v2528, 0.0
  %v2840 = vmax.f32 %v2530, 0.0
  %v2841 = vmax.f32 %v2532, 0.0
  %v2842 = vmax.f32 %v2536, 0.0
  %v2843 = vmax.f32 %v2538, 0.0
  %v2844 = vmax.f32 %v2540, 0.0
  %v2845 = vmax.f32 %v2542, 0.0
  %v2846 = vmax.f32 %v2546, 0.0
  %v2847 = vmax.f32 %v2548, 0.0
  %v2848 = vmax.f32 %v2550, 0.0
  %v2849 = vmax.f32 %v2552, 0.0
  %v2850 = vmax.f32 %v2556, 0.0
  %v2851 = vmax.f32 %v2558, 0.0
  %v2852 = vmax.f32 %v2560, 0.0
  %v2853 = vmax.f32 %v2562, 0.0
  %v2854 = vmax.f32 %v2566, 0.0
  %v2855 = vmax.f32 %v2568, 0.0
  %v2856 = vmax.f32 %v2570, 0.0
  %v2857 = vmax.f32 %v2572, 0.0
  %v2858 = vmax.f32 %v2576, 0.0
  %v2859 = vmax.f32 %v2578, 0.0
  %v2860 = vmax.f32 %v2580, 0.0
  %v2861 = vmax.f32 %v2582, 0.0
  %v2862 = vmax.f32 %v2586, 0.0
  %v2863 = vmax.f32 %v2588, 0.0
  %v2864 = vmax.f32 %v2590, 0.0
  %v2865 = vmax.f32 %v2592, 0.0
  %v2866 = vmax.f32 %v2596, 0.0
  %v2867 = vmax.f32 %v2598, 0.0
  %v2868 = vmax.f32 %v2600, 0.0
  %v2869 = vmax.f32 %v2602, 0.0
  %v2870 = vmax.f32 %v2606, 0.0
  %v2871 = vmax.f32 %v2608, 0.0
  %v2872 = vmax.f32 %v2610, 0.0
  %v2873 = vmax.f32 %v2612, 0.0
  %v2874 = vmax.f32 %v2616, 0.0
  %v2875 = vmax.f32 %v2618, 0.0
  %v2876 = vmax.f32 %v2620, 0.0
  %v2877 = vmax.f32 %v2622, 0.0
  %v2878 = vmax.f32 %v2626, 0.0
  %v2879 = vmax.f32 %v2628, 0.0
  %v2880 = vmax.f32 %v2630, 0.0
  %v2881 = vmax.f32 %v2632, 0.0
  %v2882 = vmax.f32 %v2636, 0.0
  %v2883 = vmax.f32 %v2638, 0.0
  %v2884 = vmax.f32 %v2640, 0.0
  %v2885 = vmax.f32 %v2642, 0.0
  %v2886 = vmax.f32 %v2646, 0.0
  %v2887 = vmax.f32 %v2648, 0.0
  %v2888 = vmax.f32 %v2650, 0.0
  %v2889 = vmax.f32 %v2652, 0.0
  %v2890 = vmax.f32 %v2656, 0.0
  %v2891 = vmax.f32 %v2658, 0.0
  %v2892 = vmax.f32 %v2660, 0.0
  %v2893 = vmax.f32 %v2662, 0.0
  %v2894 = vmax.f32 %v2666, 0.0
  %v2895 = vmax.f32 %v2668, 0.0
  %v2896 = vmax.f32 %v2670, 0.0
  %v2897 = vmax.f32 %v2672, 0.0
  %v2898 = vmax.f32 %v2676, 0.0
  %v2899 = vmax.f32 %v2678, 0.0
  %v2900 = vmax.f32 %v2680, 0.0
  %v2901 = vmax.f32 %v2682, 0.0
  %v2902 = vmax.f32 %v2686, 0.0
  %v2903 = vmax.f32 %v2688, 0.0
  %v2904 = vmax.f32 %v2690, 0.0
  %v2905 = vmax.f32 %v2692, 0.0
  %v2906 = vmax.f32 %v2696, 0.0
  %v2907 = vmax.f32 %v2698, 0.0
  %v2908 = vmax.f32 %v2700, 0.0
  %v2909 = vmax.f32 %v2702, 0.0
  %v2910 = vmax.f32 %v2706, 0.0
  %v2911 = vmax.f32 %v2708, 0.0
  %v2912 = vmax.f32 %v2710, 0.0
  %v2913 = vmax.f32 %v2712, 0.0
  %v2914 = vpack.c.bf16 %v2716, %v2714
  %v2915 = vpack.c.bf16 %v2717, %v2715
  %v2916 = vpack.c.bf16 %v2720, %v2718
  %v2917 = vpack.c.bf16 %v2721, %v2719
  %v2918 = vpack.c.bf16 %v2724, %v2722
  %v2919 = vpack.c.bf16 %v2725, %v2723
  %v2920 = vpack.c.bf16 %v2728, %v2726
  %v2921 = vpack.c.bf16 %v2729, %v2727
  %v2922 = vpack.c.bf16 %v2732, %v2730
  %v2923 = vpack.c.bf16 %v2733, %v2731
  %v2924 = vpack.c.bf16 %v2736, %v2734
  %v2925 = vpack.c.bf16 %v2737, %v2735
  %v2926 = vpack.c.bf16 %v2740, %v2738
  %v2927 = vpack.c.bf16 %v2741, %v2739
  %v2928 = vpack.c.bf16 %v2744, %v2742
  %v2929 = vpack.c.bf16 %v2745, %v2743
  %v2930 = vpack.c.bf16 %v2748, %v2746
  %v2931 = vpack.c.bf16 %v2749, %v2747
  %v2932 = vpack.c.bf16 %v2752, %v2750
  %v2933 = vpack.c.bf16 %v2753, %v2751
  %v2934 = vpack.c.bf16 %v2756, %v2754
  %v2935 = vpack.c.bf16 %v2757, %v2755
  %v2936 = vpack.c.bf16 %v2760, %v2758
  %v2937 = vpack.c.bf16 %v2761, %v2759
  %v2938 = vpack.c.bf16 %v2764, %v2762
  %v2939 = vpack.c.bf16 %v2765, %v2763
  %v2940 = vpack.c.bf16 %v2768, %v2766
  %v2941 = vpack.c.bf16 %v2769, %v2767
  %v2942 = vpack.c.bf16 %v2772, %v2770
  %v2943 = vpack.c.bf16 %v2773, %v2771
  %v2944 = vpack.c.bf16 %v2776, %v2774
  %v2945 = vpack.c.bf16 %v2777, %v2775
  %v2946 = vpack.c.bf16 %v2780, %v2778
  %v2947 = vpack.c.bf16 %v2781, %v2779
  %v2948 = vpack.c.bf16 %v2784, %v2782
  %v2949 = vpack.c.bf16 %v2785, %v2783
  %v2950 = vpack.c.bf16 %v2788, %v2786
  %v2951 = vpack.c.bf16 %v2789, %v2787
  %v2952 = vpack.c.bf16 %v2792, %v2790
  %v2953 = vpack.c.bf16 %v2793, %v2791
  %v2954 = vpack.c.bf16 %v2796, %v2794
  %v2955 = vpack.c.bf16 %v2797, %v2795
  %v2956 = vpack.c.bf16 %v2800, %v2798
  %v2957 = vpack.c.bf16 %v2801, %v2799
  %v2958 = vpack.c.bf16 %v2804, %v2802
  %v2959 = vpack.c.bf16 %v2805, %v2803
  %v2960 = vpack.c.bf16 %v2808, %v2806
  %v2961 = vpack.c.bf16 %v2809, %v2807
  %v2962 = vpack.c.bf16 %v2812, %v2810
  %v2963 = vpack.c.bf16 %v2813, %v2811
  %v2964 = vpack.c.bf16 %v2816, %v2814
  %v2965 = vpack.c.bf16 %v2817, %v2815
  %v2966 = vpack.c.bf16 %v2820, %v2818
  %v2967 = vpack.c.bf16 %v2821, %v2819
  %v2968 = vpack.c.bf16 %v2824, %v2822
  %v2969 = vpack.c.bf16 %v2825, %v2823
  %v2970 = vpack.c.bf16 %v2828, %v2826
  %v2971 = vpack.c.bf16 %v2829, %v2827
  %v2972 = vpack.c.bf16 %v2832, %v2830
  %v2973 = vpack.c.bf16 %v2833, %v2831
  %v2974 = vpack.c.bf16 %v2836, %v2834
  %v2975 = vpack.c.bf16 %v2837, %v2835
  %v2976 = vpack.c.bf16 %v2840, %v2838
  %v2977 = vpack.c.bf16 %v2841, %v2839
  %v2978 = vpack.c.bf16 %v2844, %v2842
  %v2979 = vpack.c.bf16 %v2845, %v2843
  %v2980 = vpack.c.bf16 %v2848, %v2846
  %v2981 = vpack.c.bf16 %v2849, %v2847
  %v2982 = vpack.c.bf16 %v2852, %v2850
  %v2983 = vpack.c.bf16 %v2853, %v2851
  %v2984 = vpack.c.bf16 %v2856, %v2854
  %v2985 = vpack.c.bf16 %v2857, %v2855
  %v2986 = vpack.c.bf16 %v2860, %v2858
  %v2987 = vpack.c.bf16 %v2861, %v2859
  %v2988 = vpack.c.bf16 %v2864, %v2862
  %v2989 = vpack.c.bf16 %v2865, %v2863
  %v2990 = vpack.c.bf16 %v2868, %v2866
  %v2991 = vpack.c.bf16 %v2869, %v2867
  %v2992 = vpack.c.bf16 %v2872, %v2870
  %v2993 = vpack.c.bf16 %v2873, %v2871
  %v2994 = vpack.c.bf16 %v2876, %v2874
  %v2995 = vpack.c.bf16 %v2877, %v2875
  %v2996 = vpack.c.bf16 %v2880, %v2878
  %v2997 = vpack.c.bf16 %v2881, %v2879
  %v2998 = vpack.c.bf16 %v2884, %v2882
  %v2999 = vpack.c.bf16 %v2885, %v2883
  %v3000 = vpack.c.bf16 %v2888, %v2886
  %v3001 = vpack.c.bf16 %v2889, %v2887
  %v3002 = vpack.c.bf16 %v2892, %v2890
  %v3003 = vpack.c.bf16 %v2893, %v2891
  %v3004 = vpack.c.bf16 %v2896, %v2894
  %v3005 = vpack.c.bf16 %v2897, %v2895
  %v3006 = vpack.c.bf16 %v2900, %v2898
  %v3007 = vpack.c.bf16 %v2901, %v2899
  %v3008 = vpack.c.bf16 %v2904, %v2902
  %v3009 = vpack.c.bf16 %v2905, %v2903
  %v3010 = vpack.c.bf16 %v2908, %v2906
  %v3011 = vpack.c.bf16 %v2909, %v2907
  %v3012 = vpack.c.bf16 %v2912, %v2910
  %v3013 = vpack.c.bf16 %v2913, %v2911
  %v3014 = vld [vmem:[%s6] sm:$0xf]
  %v3015 = vld [vmem:[%s6 + $0x4] sm:$0xf]
  %v3016 = vld [vmem:[%s6 + $0x8] sm:$0xf]
  %v3017 = vld [vmem:[%s6 + $0xc] sm:$0xf]
  %v3018 = vld [vmem:[%s6 + $0x10] sm:$0xf]
  %v3019 = vld [vmem:[%s6 + $0x14] sm:$0xf]
  %v3020 = vld [vmem:[%s6 + $0x18] sm:$0xf]
  %v3021 = vld [vmem:[%s6 + $0x1c] sm:$0xf]
  %v3022 = vld [vmem:[%s6 + $0x20] sm:$0xf]
  %v3023 = vld [vmem:[%s6 + $0x24] sm:$0xf]
  %v3024 = vld [vmem:[%s6 + $0x28] sm:$0xf]
  %v3025 = vld [vmem:[%s6 + $0x2c] sm:$0xf]
  %v3026 = vld [vmem:[%s6 + $0x30] sm:$0xf]
  %v3027 = vld [vmem:[%s6 + $0x34] sm:$0xf]
  %v3028 = vld [vmem:[%s6 + $0x38] sm:$0xf]
  %v3029 = vld [vmem:[%s6 + $0x3c] sm:$0xf]
  %v3030 = vld [vmem:[%s6 + $0x40] sm:$0xf]
  %v3031 = vld [vmem:[%s6 + $0x44] sm:$0xf]
  %v3032 = vld [vmem:[%s6 + $0x48] sm:$0xf]
  %v3033 = vld [vmem:[%s6 + $0x4c] sm:$0xf]
  %v3034 = vld [vmem:[%s6 + $0x50] sm:$0xf]
  %v3035 = vld [vmem:[%s6 + $0x54] sm:$0xf]
  %v3036 = vld [vmem:[%s6 + $0x58] sm:$0xf]
  %v3037 = vld [vmem:[%s6 + $0x5c] sm:$0xf]
  %v3038 = vld [vmem:[%s6 + $0x60] sm:$0xf]
  %v3039 = vld [vmem:[%s6 + $0x64] sm:$0xf]
  %v3040 = vld [vmem:[%s6 + $0x68] sm:$0xf]
  %v3041 = vld [vmem:[%s6 + $0x6c] sm:$0xf]
  %v3042 = vld [vmem:[%s6 + $0x70] sm:$0xf]
  %v3043 = vld [vmem:[%s6 + $0x74] sm:$0xf]
  %v3044 = vld [vmem:[%s6 + $0x78] sm:$0xf]
  %v3045 = vld [vmem:[%s6 + $0x7c] sm:$0xf]
  %v3046 = vld [vmem:[%s7] sm:$0x1]
  %v3048 = vlaneseq
  %v3049 = vshrl.u32 %v3048, 7
  %v3050 = vsub.s32 0, %v3049
  %v3051 = vrot.slane %v3046, %v3050
  %v3085 = vunpack.c.l.b16 %v3014
  %v3086 = vunpack.c.l.b16 %v3015
  %v3087 = vunpack.c.l.b16 %v3016
  %v3088 = vunpack.c.l.b16 %v3017
  %v3089 = vunpack.c.l.b16 %v3018
  %v3090 = vunpack.c.l.b16 %v3019
  %v3091 = vunpack.c.l.b16 %v3020
  %v3092 = vunpack.c.l.b16 %v3021
  %v3093 = vunpack.c.l.b16 %v3022
  %v3094 = vunpack.c.l.b16 %v3023
  %v3095 = vunpack.c.l.b16 %v3024
  %v3096 = vunpack.c.l.b16 %v3025
  %v3097 = vunpack.c.l.b16 %v3026
  %v3098 = vunpack.c.l.b16 %v3027
  %v3099 = vunpack.c.l.b16 %v3028
  %v3100 = vunpack.c.l.b16 %v3029
  %v3101 = vunpack.c.l.b16 %v3030
  %v3102 = vunpack.c.l.b16 %v3031
  %v3103 = vunpack.c.l.b16 %v3032
  %v3104 = vunpack.c.l.b16 %v3033
  %v3105 = vunpack.c.l.b16 %v3034
  %v3106 = vunpack.c.l.b16 %v3035
  %v3107 = vunpack.c.l.b16 %v3036
  %v3108 = vunpack.c.l.b16 %v3037
  %v3109 = vunpack.c.l.b16 %v3038
  %v3110 = vunpack.c.l.b16 %v3039
  %v3111 = vunpack.c.l.b16 %v3040
  %v3112 = vunpack.c.l.b16 %v3041
  %v3113 = vunpack.c.l.b16 %v3042
  %v3114 = vunpack.c.l.b16 %v3043
  %v3115 = vunpack.c.l.b16 %v3044
  %v3116 = vunpack.c.l.b16 %v3045
  %v3117 = vpack.c.b16 %v3086, %v3085
  %v3118 = vpack.c.b16 %v3088, %v3087
  %v3119 = vpack.c.b16 %v3090, %v3089
  %v3120 = vpack.c.b16 %v3092, %v3091
  %v3121 = vpack.c.b16 %v3094, %v3093
  %v3122 = vpack.c.b16 %v3096, %v3095
  %v3123 = vpack.c.b16 %v3098, %v3097
  %v3124 = vpack.c.b16 %v3100, %v3099
  %v3125 = vpack.c.b16 %v3102, %v3101
  %v3126 = vpack.c.b16 %v3104, %v3103
  %v3127 = vpack.c.b16 %v3106, %v3105
  %v3128 = vpack.c.b16 %v3108, %v3107
  %v3129 = vpack.c.b16 %v3110, %v3109
  %v3130 = vpack.c.b16 %v3112, %v3111
  %v3131 = vpack.c.b16 %v3114, %v3113
  %v3132 = vpack.c.b16 %v3116, %v3115
  %3149 = vmatprep.subr.bf16.mxu0 0
  %3150 = vmatpush1.bf16.msra.mxu0 %v3117
  %3151 = vmatprep.subr.bf16.mxu0 0
  %3152 = vmatpush1.bf16.msra.mxu0 %v3118
  %3153 = vmatprep.subr.bf16.mxu0 0
  %3154 = vmatpush1.bf16.msra.mxu0 %v3119
  %3155 = vmatprep.subr.bf16.mxu0 0
  %3156 = vmatpush1.bf16.msra.mxu0 %v3120
  %3157 = vmatprep.subr.bf16.mxu0 0
  %3158 = vmatpush1.bf16.msra.mxu0 %v3121
  %3159 = vmatprep.subr.bf16.mxu0 0
  %3160 = vmatpush1.bf16.msra.mxu0 %v3122
  %3161 = vmatprep.subr.bf16.mxu0 0
  %3162 = vmatpush1.bf16.msra.mxu0 %v3123
  %3163 = vmatprep.subr.bf16.mxu0 0
  %3164 = vmatpush1.bf16.msra.mxu0 %v3124
  %3165 = vmatprep.subr.bf16.mxu0 0
  %3166 = vmatpush1.bf16.msra.mxu0 %v3125
  %3167 = vmatprep.subr.bf16.mxu0 0
  %3168 = vmatpush1.bf16.msra.mxu0 %v3126
  %3169 = vmatprep.subr.bf16.mxu0 0
  %3170 = vmatpush1.bf16.msra.mxu0 %v3127
  %3171 = vmatprep.subr.bf16.mxu0 0
  %3172 = vmatpush1.bf16.msra.mxu0 %v3128
  %3173 = vmatprep.subr.bf16.mxu0 0
  %3174 = vmatpush1.bf16.msra.mxu0 %v3129
  %3175 = vmatprep.subr.bf16.mxu0 0
  %3176 = vmatpush1.bf16.msra.mxu0 %v3130
  %3177 = vmatprep.subr.bf16.mxu0 0
  %3178 = vmatpush1.bf16.msra.mxu0 %v3131
  %3179 = vmatprep.subr.bf16.mxu0 0
  %3180 = vmatpush1.bf16.msra.mxu0 %v3132
  %3181 = vmatprep.mubr.bf16.mxu0 %v2915
  %3182 = vmatmul.mubr.bf16.gmra.mrb[0].mxu0 %v2914
  %v3183 = vpop.f32.mrb[0].mxu0
  %v3184 = vadd.f32 %v3051, %v3183
  %v3185 = vpop.f32.mrb[0].mxu0
  %v3186 = vpop.f32.mrb[0].mxu0
  %v3187 = vadd.f32 %v3051, %v3186
  %v3188 = vpop.f32.mrb[0].mxu0
  %3189 = vmatprep.mubr.bf16.mxu0 %v2917
  %3190 = vmatmul.mubr.bf16.gmra.mrb[0].mxu0 %v2916
  %v3191 = vpop.f32.mrb[0].mxu0
  %v3192 = vadd.f32 %v3051, %v3191
  %v3193 = vpop.f32.mrb[0].mxu0
  %v3194 = vpop.f32.mrb[0].mxu0
  %v3195 = vadd.f32 %v3051, %v3194
  %v3196 = vpop.f32.mrb[0].mxu0
  %3197 = vmatprep.mubr.bf16.mxu0 %v2919
  %3198 = vmatmul.mubr.bf16.gmra.mrb[0].mxu0 %v2918
  %v3199 = vpop.f32.mrb[0].mxu0
  %v3200 = vadd.f32 %v3051, %v3199
  %v3201 = vpop.f32.mrb[0].mxu0
  %v3202 = vpop.f32.mrb[0].mxu0
  %v3203 = vadd.f32 %v3051, %v3202
  %v3204 = vpop.f32.mrb[0].mxu0
  %3205 = vmatprep.mubr.bf16.mxu0 %v2921
  %3206 = vmatmul.mubr.bf16.gmra.mrb[0].mxu0 %v2920
  %v3207 = vpop.f32.mrb[0].mxu0
  %v3208 = vadd.f32 %v3051, %v3207
  %v3209 = vpop.f32.mrb[0].mxu0
  %v3210 = vpop.f32.mrb[0].mxu0
  %v3211 = vadd.f32 %v3051, %v3210
  %v3212 = vpop.f32.mrb[0].mxu0
  %3213 = vmatprep.mubr.bf16.mxu0 %v2923
  %3214 = vmatmul.mubr.bf16.gmra.mrb[0].mxu0 %v2922
  %v3215 = vpop.f32.mrb[0].mxu0
  %v3216 = vadd.f32 %v3051, %v3215
  %v3217 = vpop.f32.mrb[0].mxu0
  %v3218 = vpop.f32.mrb[0].mxu0
  %v3219 = vadd.f32 %v3051, %v3218
  %v3220 = vpop.f32.mrb[0].mxu0
  %3221 = vmatprep.mubr.bf16.mxu0 %v2925
  %3222 = vmatmul.mubr.bf16.gmra.mrb[0].mxu0 %v2924
  %v3223 = vpop.f32.mrb[0].mxu0
  %v3224 = vadd.f32 %v3051, %v3223
  %v3225 = vpop.f32.mrb[0].mxu0
  %v3226 = vpop.f32.mrb[0].mxu0
  %v3227 = vadd.f32 %v3051, %v3226
  %v3228 = vpop.f32.mrb[0].mxu0
  %3229 = vmatprep.mubr.bf16.mxu0 %v2927
  %3230 = vmatmul.mubr.bf16.gmra.mrb[0].mxu0 %v2926
  %v3231 = vpop.f32.mrb[0].mxu0
  %v3232 = vadd.f32 %v3051, %v3231
  %v3233 = vpop.f32.mrb[0].mxu0
  %v3234 = vpop.f32.mrb[0].mxu0
  %v3235 = vadd.f32 %v3051, %v3234
  %v3236 = vpop.f32.mrb[0].mxu0
  %3237 = vmatprep.mubr.bf16.mxu0 %v2929
  %3238 = vmatmul.mubr.bf16.gmra.mrb[0].mxu0 %v2928
  %v3239 = vpop.f32.mrb[0].mxu0
  %v3240 = vadd.f32 %v3051, %v3239
  %v3241 = vpop.f32.mrb[0].mxu0
  %v3242 = vpop.f32.mrb[0].mxu0
  %v3243 = vadd.f32 %v3051, %v3242
  %v3244 = vpop.f32.mrb[0].mxu0
  %3245 = vmatprep.mubr.bf16.mxu0 %v2931
  %3246 = vmatmul.mubr.bf16.gmra.mrb[0].mxu0 %v2930
  %v3247 = vpop.f32.mrb[0].mxu0
  %v3248 = vadd.f32 %v3051, %v3247
  %v3249 = vpop.f32.mrb[0].mxu0
  %v3250 = vpop.f32.mrb[0].mxu0
  %v3251 = vadd.f32 %v3051, %v3250
  %v3252 = vpop.f32.mrb[0].mxu0
  %3253 = vmatprep.mubr.bf16.mxu0 %v2933
  %3254 = vmatmul.mubr.bf16.gmra.mrb[0].mxu0 %v2932
  %v3255 = vpop.f32.mrb[0].mxu0
  %v3256 = vadd.f32 %v3051, %v3255
  %v3257 = vpop.f32.mrb[0].mxu0
  %v3258 = vpop.f32.mrb[0].mxu0
  %v3259 = vadd.f32 %v3051, %v3258
  %v3260 = vpop.f32.mrb[0].mxu0
  %3261 = vmatprep.mubr.bf16.mxu0 %v2935
  %3262 = vmatmul.mubr.bf16.gmra.mrb[0].mxu0 %v2934
  %v3263 = vpop.f32.mrb[0].mxu0
  %v3264 = vadd.f32 %v3051, %v3263
  %v3265 = vpop.f32.mrb[0].mxu0
  %v3266 = vpop.f32.mrb[0].mxu0
  %v3267 = vadd.f32 %v3051, %v3266
  %v3268 = vpop.f32.mrb[0].mxu0
  %3269 = vmatprep.mubr.bf16.mxu0 %v2937
  %3270 = vmatmul.mubr.bf16.gmra.mrb[0].mxu0 %v2936
  %v3271 = vpop.f32.mrb[0].mxu0
  %v3272 = vadd.f32 %v3051, %v3271
  %v3273 = vpop.f32.mrb[0].mxu0
  %v3274 = vpop.f32.mrb[0].mxu0
  %v3275 = vadd.f32 %v3051, %v3274
  %v3276 = vpop.f32.mrb[0].mxu0
  %3277 = vmatprep.mubr.bf16.mxu0 %v2939
  %3278 = vmatmul.mubr.bf16.gmra.mrb[0].mxu0 %v2938
  %v3279 = vpop.f32.mrb[0].mxu0
  %v3280 = vadd.f32 %v3051, %v3279
  %v3281 = vpop.f32.mrb[0].mxu0
  %v3282 = vpop.f32.mrb[0].mxu0
  %v3283 = vadd.f32 %v3051, %v3282
  %v3284 = vpop.f32.mrb[0].mxu0
  %3285 = vmatprep.mubr.bf16.mxu0 %v2941
  %3286 = vmatmul.mubr.bf16.gmra.mrb[0].mxu0 %v2940
  %v3287 = vpop.f32.mrb[0].mxu0
  %v3288 = vadd.f32 %v3051, %v3287
  %v3289 = vpop.f32.mrb[0].mxu0
  %v3290 = vpop.f32.mrb[0].mxu0
  %v3291 = vadd.f32 %v3051, %v3290
  %v3292 = vpop.f32.mrb[0].mxu0
  %3293 = vmatprep.mubr.bf16.mxu0 %v2943
  %3294 = vmatmul.mubr.bf16.gmra.mrb[0].mxu0 %v2942
  %v3295 = vpop.f32.mrb[0].mxu0
  %v3296 = vadd.f32 %v3051, %v3295
  %v3297 = vpop.f32.mrb[0].mxu0
  %v3298 = vpop.f32.mrb[0].mxu0
  %v3299 = vadd.f32 %v3051, %v3298
  %v3300 = vpop.f32.mrb[0].mxu0
  %3301 = vmatprep.mubr.bf16.mxu0 %v2945
  %3302 = vmatmul.mubr.bf16.gmra.mrb[0].mxu0 %v2944
  %v3303 = vpop.f32.mrb[0].mxu0
  %v3304 = vadd.f32 %v3051, %v3303
  %v3305 = vpop.f32.mrb[0].mxu0
  %v3306 = vpop.f32.mrb[0].mxu0
  %v3307 = vadd.f32 %v3051, %v3306
  %v3308 = vpop.f32.mrb[0].mxu0
  %3309 = vmatprep.mubr.bf16.mxu0 %v2947
  %3310 = vmatmul.mubr.bf16.gmra.mrb[0].mxu0 %v2946
  %v3311 = vpop.f32.mrb[0].mxu0
  %v3312 = vadd.f32 %v3051, %v3311
  %v3313 = vpop.f32.mrb[0].mxu0
  %v3314 = vpop.f32.mrb[0].mxu0
  %v3315 = vadd.f32 %v3051, %v3314
  %v3316 = vpop.f32.mrb[0].mxu0
  %3317 = vmatprep.mubr.bf16.mxu0 %v2949
  %3318 = vmatmul.mubr.bf16.gmra.mrb[0].mxu0 %v2948
  %v3319 = vpop.f32.mrb[0].mxu0
  %v3320 = vadd.f32 %v3051, %v3319
  %v3321 = vpop.f32.mrb[0].mxu0
  %v3322 = vpop.f32.mrb[0].mxu0
  %v3323 = vadd.f32 %v3051, %v3322
  %v3324 = vpop.f32.mrb[0].mxu0
  %3325 = vmatprep.mubr.bf16.mxu0 %v2951
  %3326 = vmatmul.mubr.bf16.gmra.mrb[0].mxu0 %v2950
  %v3327 = vpop.f32.mrb[0].mxu0
  %v3328 = vadd.f32 %v3051, %v3327
  %v3329 = vpop.f32.mrb[0].mxu0
  %v3330 = vpop.f32.mrb[0].mxu0
  %v3331 = vadd.f32 %v3051, %v3330
  %v3332 = vpop.f32.mrb[0].mxu0
  %3333 = vmatprep.mubr.bf16.mxu0 %v2953
  %3334 = vmatmul.mubr.bf16.gmra.mrb[0].mxu0 %v2952
  %v3335 = vpop.f32.mrb[0].mxu0
  %v3336 = vadd.f32 %v3051, %v3335
  %v3337 = vpop.f32.mrb[0].mxu0
  %v3338 = vpop.f32.mrb[0].mxu0
  %v3339 = vadd.f32 %v3051, %v3338
  %v3340 = vpop.f32.mrb[0].mxu0
  %3341 = vmatprep.mubr.bf16.mxu0 %v2955
  %3342 = vmatmul.mubr.bf16.gmra.mrb[0].mxu0 %v2954
  %v3343 = vpop.f32.mrb[0].mxu0
  %v3344 = vadd.f32 %v3051, %v3343
  %v3345 = vpop.f32.mrb[0].mxu0
  %v3346 = vpop.f32.mrb[0].mxu0
  %v3347 = vadd.f32 %v3051, %v3346
  %v3348 = vpop.f32.mrb[0].mxu0
  %3349 = vmatprep.mubr.bf16.mxu0 %v2957
  %3350 = vmatmul.mubr.bf16.gmra.mrb[0].mxu0 %v2956
  %v3351 = vpop.f32.mrb[0].mxu0
  %v3352 = vadd.f32 %v3051, %v3351
  %v3353 = vpop.f32.mrb[0].mxu0
  %v3354 = vpop.f32.mrb[0].mxu0
  %v3355 = vadd.f32 %v3051, %v3354
  %v3356 = vpop.f32.mrb[0].mxu0
  %3357 = vmatprep.mubr.bf16.mxu0 %v2959
  %3358 = vmatmul.mubr.bf16.gmra.mrb[0].mxu0 %v2958
  %v3359 = vpop.f32.mrb[0].mxu0
  %v3360 = vadd.f32 %v3051, %v3359
  %v3361 = vpop.f32.mrb[0].mxu0
  %v3362 = vpop.f32.mrb[0].mxu0
  %v3363 = vadd.f32 %v3051, %v3362
  %v3364 = vpop.f32.mrb[0].mxu0
  %3365 = vmatprep.mubr.bf16.mxu0 %v2961
  %3366 = vmatmul.mubr.bf16.gmra.mrb[0].mxu0 %v2960
  %v3367 = vpop.f32.mrb[0].mxu0
  %v3368 = vadd.f32 %v3051, %v3367
  %v3369 = vpop.f32.mrb[0].mxu0
  %v3370 = vpop.f32.mrb[0].mxu0
  %v3371 = vadd.f32 %v3051, %v3370
  %v3372 = vpop.f32.mrb[0].mxu0
  %3373 = vmatprep.mubr.bf16.mxu0 %v2963
  %3374 = vmatmul.mubr.bf16.gmra.mrb[0].mxu0 %v2962
  %v3375 = vpop.f32.mrb[0].mxu0
  %v3376 = vadd.f32 %v3051, %v3375
  %v3377 = vpop.f32.mrb[0].mxu0
  %v3378 = vpop.f32.mrb[0].mxu0
  %v3379 = vadd.f32 %v3051, %v3378
  %v3380 = vpop.f32.mrb[0].mxu0
  %3381 = vmatprep.mubr.bf16.mxu0 %v2965
  %3382 = vmatmul.mubr.bf16.gmra.mrb[0].mxu0 %v2964
  %v3383 = vpop.f32.mrb[0].mxu0
  %v3384 = vadd.f32 %v3051, %v3383
  %v3385 = vpop.f32.mrb[0].mxu0
  %v3386 = vpop.f32.mrb[0].mxu0
  %v3387 = vadd.f32 %v3051, %v3386
  %v3388 = vpop.f32.mrb[0].mxu0
  %3389 = vmatprep.mubr.bf16.mxu0 %v2967
  %3390 = vmatmul.mubr.bf16.gmra.mrb[0].mxu0 %v2966
  %v3391 = vpop.f32.mrb[0].mxu0
  %v3392 = vadd.f32 %v3051, %v3391
  %v3393 = vpop.f32.mrb[0].mxu0
  %v3394 = vpop.f32.mrb[0].mxu0
  %v3395 = vadd.f32 %v3051, %v3394
  %v3396 = vpop.f32.mrb[0].mxu0
  %3397 = vmatprep.mubr.bf16.mxu0 %v2969
  %3398 = vmatmul.mubr.bf16.gmra.mrb[0].mxu0 %v2968
  %v3399 = vpop.f32.mrb[0].mxu0
  %v3400 = vadd.f32 %v3051, %v3399
  %v3401 = vpop.f32.mrb[0].mxu0
  %v3402 = vpop.f32.mrb[0].mxu0
  %v3403 = vadd.f32 %v3051, %v3402
  %v3404 = vpop.f32.mrb[0].mxu0
  %3405 = vmatprep.mubr.bf16.mxu0 %v2971
  %3406 = vmatmul.mubr.bf16.gmra.mrb[0].mxu0 %v2970
  %v3407 = vpop.f32.mrb[0].mxu0
  %v3408 = vadd.f32 %v3051, %v3407
  %v3409 = vpop.f32.mrb[0].mxu0
  %v3410 = vpop.f32.mrb[0].mxu0
  %v3411 = vadd.f32 %v3051, %v3410
  %v3412 = vpop.f32.mrb[0].mxu0
  %3413 = vmatprep.mubr.bf16.mxu0 %v2973
  %3414 = vmatmul.mubr.bf16.gmra.mrb[0].mxu0 %v2972
  %v3415 = vpop.f32.mrb[0].mxu0
  %v3416 = vadd.f32 %v3051, %v3415
  %v3417 = vpop.f32.mrb[0].mxu0
  %v3418 = vpop.f32.mrb[0].mxu0
  %v3419 = vadd.f32 %v3051, %v3418
  %v3420 = vpop.f32.mrb[0].mxu0
  %3421 = vmatprep.mubr.bf16.mxu0 %v2975
  %3422 = vmatmul.mubr.bf16.gmra.mrb[0].mxu0 %v2974
  %v3423 = vpop.f32.mrb[0].mxu0
  %v3424 = vadd.f32 %v3051, %v3423
  %v3425 = vpop.f32.mrb[0].mxu0
  %v3426 = vpop.f32.mrb[0].mxu0
  %v3427 = vadd.f32 %v3051, %v3426
  %v3428 = vpop.f32.mrb[0].mxu0
  %3429 = vmatprep.mubr.bf16.mxu0 %v2977
  %3430 = vmatmul.mubr.bf16.gmra.mrb[0].mxu0 %v2976
  %v3431 = vpop.f32.mrb[0].mxu0
  %v3432 = vadd.f32 %v3051, %v3431
  %v3433 = vpop.f32.mrb[0].mxu0
  %v3434 = vpop.f32.mrb[0].mxu0
  %v3435 = vadd.f32 %v3051, %v3434
  %v3436 = vpop.f32.mrb[0].mxu0
  %3437 = vmatprep.mubr.bf16.mxu0 %v2979
  %3438 = vmatmul.mubr.bf16.gmra.mrb[0].mxu0 %v2978
  %v3439 = vpop.f32.mrb[0].mxu0
  %v3440 = vadd.f32 %v3051, %v3439
  %v3441 = vpop.f32.mrb[0].mxu0
  %v3442 = vpop.f32.mrb[0].mxu0
  %v3443 = vadd.f32 %v3051, %v3442
  %v3444 = vpop.f32.mrb[0].mxu0
  %3445 = vmatprep.mubr.bf16.mxu0 %v2981
  %3446 = vmatmul.mubr.bf16.gmra.mrb[0].mxu0 %v2980
  %v3447 = vpop.f32.mrb[0].mxu0
  %v3448 = vadd.f32 %v3051, %v3447
  %v3449 = vpop.f32.mrb[0].mxu0
  %v3450 = vpop.f32.mrb[0].mxu0
  %v3451 = vadd.f32 %v3051, %v3450
  %v3452 = vpop.f32.mrb[0].mxu0
  %3453 = vmatprep.mubr.bf16.mxu0 %v2983
  %3454 = vmatmul.mubr.bf16.gmra.mrb[0].mxu0 %v2982
  %v3455 = vpop.f32.mrb[0].mxu0
  %v3456 = vadd.f32 %v3051, %v3455
  %v3457 = vpop.f32.mrb[0].mxu0
  %v3458 = vpop.f32.mrb[0].mxu0
  %v3459 = vadd.f32 %v3051, %v3458
  %v3460 = vpop.f32.mrb[0].mxu0
  %3461 = vmatprep.mubr.bf16.mxu0 %v2985
  %3462 = vmatmul.mubr.bf16.gmra.mrb[0].mxu0 %v2984
  %v3463 = vpop.f32.mrb[0].mxu0
  %v3464 = vadd.f32 %v3051, %v3463
  %v3465 = vpop.f32.mrb[0].mxu0
  %v3466 = vpop.f32.mrb[0].mxu0
  %v3467 = vadd.f32 %v3051, %v3466
  %v3468 = vpop.f32.mrb[0].mxu0
  %3469 = vmatprep.mubr.bf16.mxu0 %v2987
  %3470 = vmatmul.mubr.bf16.gmra.mrb[0].mxu0 %v2986
  %v3471 = vpop.f32.mrb[0].mxu0
  %v3472 = vadd.f32 %v3051, %v3471
  %v3473 = vpop.f32.mrb[0].mxu0
  %v3474 = vpop.f32.mrb[0].mxu0
  %v3475 = vadd.f32 %v3051, %v3474
  %v3476 = vpop.f32.mrb[0].mxu0
  %3477 = vmatprep.mubr.bf16.mxu0 %v2989
  %3478 = vmatmul.mubr.bf16.gmra.mrb[0].mxu0 %v2988
  %v3479 = vpop.f32.mrb[0].mxu0
  %v3480 = vadd.f32 %v3051, %v3479
  %v3481 = vpop.f32.mrb[0].mxu0
  %v3482 = vpop.f32.mrb[0].mxu0
  %v3483 = vadd.f32 %v3051, %v3482
  %v3484 = vpop.f32.mrb[0].mxu0
  %3485 = vmatprep.mubr.bf16.mxu0 %v2991
  %3486 = vmatmul.mubr.bf16.gmra.mrb[0].mxu0 %v2990
  %v3487 = vpop.f32.mrb[0].mxu0
  %v3488 = vadd.f32 %v3051, %v3487
  %v3489 = vpop.f32.mrb[0].mxu0
  %v3490 = vpop.f32.mrb[0].mxu0
  %v3491 = vadd.f32 %v3051, %v3490
  %v3492 = vpop.f32.mrb[0].mxu0
  %3493 = vmatprep.mubr.bf16.mxu0 %v2993
  %3494 = vmatmul.mubr.bf16.gmra.mrb[0].mxu0 %v2992
  %v3495 = vpop.f32.mrb[0].mxu0
  %v3496 = vadd.f32 %v3051, %v3495
  %v3497 = vpop.f32.mrb[0].mxu0
  %v3498 = vpop.f32.mrb[0].mxu0
  %v3499 = vadd.f32 %v3051, %v3498
  %v3500 = vpop.f32.mrb[0].mxu0
  %3501 = vmatprep.mubr.bf16.mxu0 %v2995
  %3502 = vmatmul.mubr.bf16.gmra.mrb[0].mxu0 %v2994
  %v3503 = vpop.f32.mrb[0].mxu0
  %v3504 = vadd.f32 %v3051, %v3503
  %v3505 = vpop.f32.mrb[0].mxu0
  %v3506 = vpop.f32.mrb[0].mxu0
  %v3507 = vadd.f32 %v3051, %v3506
  %v3508 = vpop.f32.mrb[0].mxu0
  %3509 = vmatprep.mubr.bf16.mxu0 %v2997
  %3510 = vmatmul.mubr.bf16.gmra.mrb[0].mxu0 %v2996
  %v3511 = vpop.f32.mrb[0].mxu0
  %v3512 = vadd.f32 %v3051, %v3511
  %v3513 = vpop.f32.mrb[0].mxu0
  %v3514 = vpop.f32.mrb[0].mxu0
  %v3515 = vadd.f32 %v3051, %v3514
  %v3516 = vpop.f32.mrb[0].mxu0
  %3517 = vmatprep.mubr.bf16.mxu0 %v2999
  %3518 = vmatmul.mubr.bf16.gmra.mrb[0].mxu0 %v2998
  %v3519 = vpop.f32.mrb[0].mxu0
  %v3520 = vadd.f32 %v3051, %v3519
  %v3521 = vpop.f32.mrb[0].mxu0
  %v3522 = vpop.f32.mrb[0].mxu0
  %v3523 = vadd.f32 %v3051, %v3522
  %v3524 = vpop.f32.mrb[0].mxu0
  %3525 = vmatprep.mubr.bf16.mxu0 %v3001
  %3526 = vmatmul.mubr.bf16.gmra.mrb[0].mxu0 %v3000
  %v3527 = vpop.f32.mrb[0].mxu0
  %v3528 = vadd.f32 %v3051, %v3527
  %v3529 = vpop.f32.mrb[0].mxu0
  %v3530 = vpop.f32.mrb[0].mxu0
  %v3531 = vadd.f32 %v3051, %v3530
  %v3532 = vpop.f32.mrb[0].mxu0
  %3533 = vmatprep.mubr.bf16.mxu0 %v3003
  %3534 = vmatmul.mubr.bf16.gmra.mrb[0].mxu0 %v3002
  %v3535 = vpop.f32.mrb[0].mxu0
  %v3536 = vadd.f32 %v3051, %v3535
  %v3537 = vpop.f32.mrb[0].mxu0
  %v3538 = vpop.f32.mrb[0].mxu0
  %v3539 = vadd.f32 %v3051, %v3538
  %v3540 = vpop.f32.mrb[0].mxu0
  %3541 = vmatprep.mubr.bf16.mxu0 %v3005
  %3542 = vmatmul.mubr.bf16.gmra.mrb[0].mxu0 %v3004
  %v3543 = vpop.f32.mrb[0].mxu0
  %v3544 = vadd.f32 %v3051, %v3543
  %v3545 = vpop.f32.mrb[0].mxu0
  %v3546 = vpop.f32.mrb[0].mxu0
  %v3547 = vadd.f32 %v3051, %v3546
  %v3548 = vpop.f32.mrb[0].mxu0
  %3549 = vmatprep.mubr.bf16.mxu0 %v3007
  %3550 = vmatmul.mubr.bf16.gmra.mrb[0].mxu0 %v3006
  %v3551 = vpop.f32.mrb[0].mxu0
  %v3552 = vadd.f32 %v3051, %v3551
  %v3553 = vpop.f32.mrb[0].mxu0
  %v3554 = vpop.f32.mrb[0].mxu0
  %v3555 = vadd.f32 %v3051, %v3554
  %v3556 = vpop.f32.mrb[0].mxu0
  %3557 = vmatprep.mubr.bf16.mxu0 %v3009
  %3558 = vmatmul.mubr.bf16.gmra.mrb[0].mxu0 %v3008
  %v3559 = vpop.f32.mrb[0].mxu0
  %v3560 = vadd.f32 %v3051, %v3559
  %v3561 = vpop.f32.mrb[0].mxu0
  %v3562 = vpop.f32.mrb[0].mxu0
  %v3563 = vadd.f32 %v3051, %v3562
  %v3564 = vpop.f32.mrb[0].mxu0
  %3565 = vmatprep.mubr.bf16.mxu0 %v3011
  %3566 = vmatmul.mubr.bf16.gmra.mrb[0].mxu0 %v3010
  %v3567 = vpop.f32.mrb[0].mxu0
  %v3568 = vadd.f32 %v3051, %v3567
  %v3569 = vpop.f32.mrb[0].mxu0
  %v3570 = vpop.f32.mrb[0].mxu0
  %v3571 = vadd.f32 %v3051, %v3570
  %v3572 = vpop.f32.mrb[0].mxu0
  %3573 = vmatprep.mubr.bf16.mxu0 %v3013
  %3574 = vmatmul.mubr.bf16.gmra.mrb[0].mxu0 %v3012
  %v3575 = vpop.f32.mrb[0].mxu0
  %v3576 = vadd.f32 %v3051, %v3575
  %v3577 = vpop.f32.mrb[0].mxu0
  %v3578 = vpop.f32.mrb[0].mxu0
  %v3579 = vadd.f32 %v3051, %v3578
  %v3580 = vpop.f32.mrb[0].mxu0
  %3581 = vdwg.mxu0
  %v3582 = vmax.f32 %v3184, %v3283
  %v3583 = vmax.f32 %v3187, %v3288
  %v3584 = vmax.f32 %v3192, %v3291
  %v3585 = vmax.f32 %v3195, %v3296
  %v3586 = vmax.f32 %v3200, %v3299
  %v3587 = vmax.f32 %v3203, %v3304
  %v3588 = vmax.f32 %v3208, %v3307
  %v3589 = vmax.f32 %v3211, %v3312
  %v3590 = vmax.f32 %v3216, %v3315
  %v3591 = vmax.f32 %v3219, %v3320
  %v3592 = vmax.f32 %v3224, %v3323
  %v3593 = vmax.f32 %v3227, %v3328
  %v3594 = vmax.f32 %v3232, %v3331
  %v3595 = vmax.f32 %v3235, %v3336
  %v3596 = vmax.f32 %v3240, %v3339
  %v3597 = vmax.f32 %v3243, %v3344
  %v3598 = vmax.f32 %v3248, %v3347
  %v3599 = vmax.f32 %v3251, %v3352
  %v3600 = vmax.f32 %v3256, %v3355
  %v3601 = vmax.f32 %v3259, %v3360
  %v3602 = vmax.f32 %v3264, %v3363
  %v3603 = vmax.f32 %v3267, %v3368
  %v3604 = vmax.f32 %v3272, %v3371
  %v3605 = vmax.f32 %v3275, %v3376
  %v3606 = vmax.f32 %v3280, %v3379
  %v3607 = vmax.f32 %v3384, %v3483
  %v3608 = vmax.f32 %v3387, %v3488
  %v3609 = vmax.f32 %v3392, %v3491
  %v3610 = vmax.f32 %v3395, %v3496
  %v3611 = vmax.f32 %v3400, %v3499
  %v3612 = vmax.f32 %v3403, %v3504
  %v3613 = vmax.f32 %v3408, %v3507
  %v3614 = vmax.f32 %v3411, %v3512
  %v3615 = vmax.f32 %v3416, %v3515
  %v3616 = vmax.f32 %v3419, %v3520
  %v3617 = vmax.f32 %v3424, %v3523
  %v3618 = vmax.f32 %v3427, %v3528
  %v3619 = vmax.f32 %v3432, %v3531
  %v3620 = vmax.f32 %v3435, %v3536
  %v3621 = vmax.f32 %v3440, %v3539
  %v3622 = vmax.f32 %v3443, %v3544
  %v3623 = vmax.f32 %v3448, %v3547
  %v3624 = vmax.f32 %v3451, %v3552
  %v3625 = vmax.f32 %v3456, %v3555
  %v3626 = vmax.f32 %v3459, %v3560
  %v3627 = vmax.f32 %v3464, %v3563
  %v3628 = vmax.f32 %v3467, %v3568
  %v3629 = vmax.f32 %v3472, %v3571
  %v3630 = vmax.f32 %v3475, %v3576
  %v3631 = vmax.f32 %v3480, %v3579
  %v3632 = vmax.f32 %v3582, %v3607
  %v3633 = vmax.f32 %v3583, %v3608
  %v3634 = vmax.f32 %v3584, %v3609
  %v3635 = vmax.f32 %v3585, %v3610
  %v3636 = vmax.f32 %v3586, %v3611
  %v3637 = vmax.f32 %v3587, %v3612
  %v3638 = vmax.f32 %v3588, %v3613
  %v3639 = vmax.f32 %v3589, %v3614
  %v3640 = vmax.f32 %v3590, %v3615
  %v3641 = vmax.f32 %v3591, %v3616
  %v3642 = vmax.f32 %v3592, %v3617
  %v3643 = vmax.f32 %v3593, %v3618
  %v3644 = vmax.f32 %v3594, %v3619
  %v3645 = vmax.f32 %v3595, %v3620
  %v3646 = vmax.f32 %v3596, %v3621
  %v3647 = vmax.f32 %v3597, %v3622
  %v3648 = vmax.f32 %v3598, %v3623
  %v3649 = vmax.f32 %v3599, %v3624
  %v3650 = vmax.f32 %v3600, %v3625
  %v3651 = vmax.f32 %v3601, %v3626
  %v3652 = vmax.f32 %v3602, %v3627
  %v3653 = vmax.f32 %v3603, %v3628
  %v3654 = vmax.f32 %v3604, %v3629
  %v3655 = vmax.f32 %v3605, %v3630
  %v3656 = vmax.f32 %v3606, %v3631
  %v3657 = vmax.f32 %v3632, 0.0
  %v3658 = vmax.f32 %v3633, 0.0
  %v3659 = vmax.f32 %v3634, 0.0
  %v3660 = vmax.f32 %v3635, 0.0
  %v3661 = vmax.f32 %v3636, 0.0
  %v3662 = vmax.f32 %v3637, 0.0
  %v3663 = vmax.f32 %v3638, 0.0
  %v3664 = vmax.f32 %v3639, 0.0
  %v3665 = vmax.f32 %v3640, 0.0
  %v3666 = vmax.f32 %v3641, 0.0
  %v3667 = vmax.f32 %v3642, 0.0
  %v3668 = vmax.f32 %v3643, 0.0
  %v3669 = vmax.f32 %v3644, 0.0
  %v3670 = vmax.f32 %v3645, 0.0
  %v3671 = vmax.f32 %v3646, 0.0
  %v3672 = vmax.f32 %v3647, 0.0
  %v3673 = vmax.f32 %v3648, 0.0
  %v3674 = vmax.f32 %v3649, 0.0
  %v3675 = vmax.f32 %v3650, 0.0
  %v3676 = vmax.f32 %v3651, 0.0
  %v3677 = vmax.f32 %v3652, 0.0
  %v3678 = vmax.f32 %v3653, 0.0
  %v3679 = vmax.f32 %v3654, 0.0
  %v3680 = vmax.f32 %v3655, 0.0
  %v3681 = vmax.f32 %v3656, 0.0
  %3682 = vst [vmem:[%s9] sm:$0xff] %v3657
  %3683 = vst [vmem:[%s9 + $0x8] sm:$0xff] %v3658
  %3684 = vst [vmem:[%s9 + $0x10] sm:$0xff] %v3659
  %3685 = vst [vmem:[%s9 + $0x18] sm:$0xff] %v3660
  %3686 = vst [vmem:[%s9 + $0x20] sm:$0xff] %v3661
  %3687 = vst [vmem:[%s9 + $0x28] sm:$0xff] %v3662
  %3688 = vst [vmem:[%s9 + $0x30] sm:$0xff] %v3663
  %3689 = vst [vmem:[%s9 + $0x38] sm:$0xff] %v3664
  %3690 = vst [vmem:[%s9 + $0x40] sm:$0xff] %v3665
  %3691 = vst [vmem:[%s9 + $0x48] sm:$0xff] %v3666
  %3692 = vst [vmem:[%s9 + $0x50] sm:$0xff] %v3667
  %3693 = vst [vmem:[%s9 + $0x58] sm:$0xff] %v3668
  %3694 = vst [vmem:[%s9 + $0x60] sm:$0xff] %v3669
  %3695 = vst [vmem:[%s9 + $0x68] sm:$0xff] %v3670
  %3696 = vst [vmem:[%s9 + $0x70] sm:$0xff] %v3671
  %3697 = vst [vmem:[%s9 + $0x78] sm:$0xff] %v3672
  %3698 = vst [vmem:[%s9 + $0x80] sm:$0xff] %v3673
  %3699 = vst [vmem:[%s9 + $0x88] sm:$0xff] %v3674
  %3700 = vst [vmem:[%s9 + $0x90] sm:$0xff] %v3675
  %3701 = vst [vmem:[%s9 + $0x98] sm:$0xff] %v3676
  %3702 = vst [vmem:[%s9 + $0xa0] sm:$0xff] %v3677
  %3703 = vst [vmem:[%s9 + $0xa8] sm:$0xff] %v3678
  %3704 = vst [vmem:[%s9 + $0xb0] sm:$0xff] %v3679
  %3705 = vst [vmem:[%s9 + $0xb8] sm:$0xff] %v3680
  %3706 = vst [vmem:[%s9 + $0xc0] sm:$0xff] %v3681
  // Predicated region
  $region34: #{cnn_forward.2} parent=0 // pred_check
    _
  $region35: #{cnn_forward.2} parent=0 // pred_check_branch
    %3708 = sbr.rel (0) target = $region37
  $region36: #{cnn_forward.2} parent=0 // pred_region
    _
  $region37: #{cnn_forward.2} parent=0 // pred_fallthru
    _
  // Predicated region
  $region38: #{cnn_forward.2} parent=0 // pred_check
    _
  $region39: #{cnn_forward.2} parent=0 // pred_check_branch
    %3710 = sbr.rel (0) target = $region41
  $region40: #{cnn_forward.2} parent=0 // pred_region
    _
  $region41: #{cnn_forward.2} parent=0 // pred_fallthru
    _
  // Predicated region
  $region42: #{cnn_forward.2} parent=0 // pred_check
    _
  $region43: #{cnn_forward.2} parent=0 // pred_check_branch
    %3712 = sbr.rel (0) target = $region45
  $region44: #{cnn_forward.2} parent=0 // pred_region
    _
  $region45: #{cnn_forward.2} parent=0 // pred_fallthru
    _
  // Predicated region
  $region46: #{cnn_forward.2} parent=0 // pred_check
    _
  $region47: #{cnn_forward.2} parent=0 // pred_check_branch
    %3714 = sbr.rel (0) target = $region49
  $region48: #{cnn_forward.2} parent=0 // pred_region
    _
  $region49: #{cnn_forward.2} parent=0 // pred_fallthru
    _

</llo_original>
